<compile_context>
chip_gen: v5e
topology: v5e:2x2
jax: 0.10.0
libtpu: 0.0.40
codegen_flags: <defaults>
</compile_context>

<pallas_src>
import functools

import numpy as np
import jax
import jax.numpy as jnp
from jax import lax
from jax.experimental import pallas as pl
from jax.experimental.pallas import tpu as pltpu


# -----------------------------------------------------------------------------
# ResNet34 backbone (plain JAX glue, NHWC).
# -----------------------------------------------------------------------------
_LAYER_SPECS = ((64, 3, 1), (128, 4, 2), (256, 6, 2), (512, 3, 2))
_BN_SCALE = 1.0 / np.sqrt(1.0 + 1e-5)  # eval BN with mean=0, var=1, gamma=1, beta=0


def _conv2d(x, w, stride, padding):
    return jax.lax.conv_general_dilated(
        x, w, window_strides=(stride, stride),
        padding=((padding, padding), (padding, padding)),
        dimension_numbers=("NHWC", "HWIO", "NHWC"))


def _bn(x):
    return x * _BN_SCALE


def _relu(x):
    return jnp.maximum(x, 0.0)


def _maxpool_3x3_s2(x):
    return jax.lax.reduce_window(
        x, -jnp.inf, jax.lax.max,
        window_dimensions=(1, 3, 3, 1), window_strides=(1, 2, 2, 1),
        padding=((0, 0), (1, 1), (1, 1), (0, 0)))


def _he_normal(key, shape):
    # HWIO weights: fan_in = kh * kw * in_c
    fan_in = shape[0] * shape[1] * shape[2]
    return jax.random.normal(key, shape, jnp.float32) * np.sqrt(2.0 / fan_in)


def init_backbone_params(key):
    key, k_stem = jax.random.split(key)
    params = {"stem": _he_normal(k_stem, (7, 7, 3, 64)), "layers": []}
    in_c = 64
    for out_c, n_blocks, stride in _LAYER_SPECS:
        blocks = []
        for i in range(n_blocks):
            key, k1, k2, k3 = jax.random.split(key, 4)
            s = stride if i == 0 else 1
            ic = in_c if i == 0 else out_c
            p = {"conv1": _he_normal(k1, (3, 3, ic, out_c)),
                 "conv2": _he_normal(k2, (3, 3, out_c, out_c))}
            if s != 1 or ic != out_c:
                p["down"] = _he_normal(k3, (1, 1, ic, out_c))
            blocks.append(p)
        params["layers"].append(blocks)
        in_c = out_c
    return params


def _basic_block(x, p, stride):
    out = _relu(_bn(_conv2d(x, p["conv1"], stride, 1)))
    out = _bn(_conv2d(out, p["conv2"], 1, 1))
    identity = x if "down" not in p else _bn(_conv2d(x, p["down"], stride, 0))
    return _relu(out + identity)


def backbone_features(x, bp):
    """x: (N,H,W,3) NHWC -> [feat1 (N,H/4,W/4,64), feat2 (N,H/8,W/8,128),
    feat3 (N,H/16,W/16,256), feat4 (N,H/32,W/32,512)]."""
    x = _relu(_bn(_conv2d(x, bp["stem"], 2, 3)))
    x = _maxpool_3x3_s2(x)
    feats = []
    for blocks, (_, _, stride) in zip(bp["layers"], _LAYER_SPECS):
        for i, p in enumerate(blocks):
            x = _basic_block(x, p, stride if i == 0 else 1)
        feats.append(x)
    return feats


# -----------------------------------------------------------------------------
# Pallas FPN-MIL head kernel.
# -----------------------------------------------------------------------------
def _pick_chunk(hw, target=512):
    """Largest divisor of hw <= target, preferring sublane-aligned (%8==0)."""
    if hw <= target:
        return hw
    best_aligned, best_any = None, 1
    for c in range(1, target + 1):
        if hw % c == 0:
            best_any = c
            if c % 8 == 0:
                best_aligned = c
    return best_aligned if best_aligned is not None else best_any


def _vmem_bytes_per_instance(feat_arrays):
    """Rough VMEM footprint of one instance's 4 feature blocks (lane-padded)."""
    total = 0
    for a in feat_arrays:
        hw, c = a.shape[2], a.shape[3]
        sub = ((hw + 7) // 8) * 8
        lanes = ((c + 127) // 128) * 128
        total += sub * lanes * a.dtype.itemsize
    return total


def _pick_kb(k, per_inst_bytes, budget_bytes=20 * 1024 * 1024, kb_cap=8):
    """Largest divisor of k <= kb_cap whose double-buffered blocks fit budget."""
    kb_max = max(1, min(kb_cap, budget_bytes // max(1, 2 * per_inst_bytes)))
    kb = 1
    for c in range(1, int(kb_max) + 1):
        if k % c == 0:
            kb = c
    return kb


def _proj_relu_gapsum(f_ref, j, w_ref, b_ref, hw, chunk):
    """1x1-conv projection + bias + ReLU + spatial row-sum -> (1, 512) f32.

    f_ref: (KB, HW, Cin) bf16 ref, j: instance index within the block,
    w_ref: (Cin, 512) bf16, b_ref: (1, 512) f32.  HW is processed in
    sublane-aligned chunks so the (HW, 512) activation never materializes.
    Weight/bias loads stay inside the chunk body so the RHS streams from the
    resident VMEM block (no ~64-vreg live range across the loop).
    """
    nchunks = hw // chunk

    def partial_sum(x):
        y = jnp.dot(x, w_ref[...], preferred_element_type=jnp.float32)  # MXU
        y = jnp.maximum(y + b_ref[...], 0.0)
        return jnp.sum(y, axis=0, keepdims=True)                        # (1,512)

    if nchunks == 1:
        return partial_sum(f_ref[j])

    def body(i, acc):
        start = pl.multiple_of(i * chunk, chunk)
        return acc + partial_sum(f_ref[j, pl.ds(start, chunk), :])

    return lax.fori_loop(0, nchunks, body, jnp.zeros((1, 512), jnp.float32))


def _gapsum_f32(f_ref, j, hw, chunk):
    """Spatial row-sum of instance j of a (KB, HW, 512) ref in f32 -> (1, 512)."""
    nchunks = hw // chunk

    def partial_sum(x):
        return jnp.sum(x.astype(jnp.float32), axis=0, keepdims=True)

    if nchunks == 1:
        return partial_sum(f_ref[j])

    def body(i, acc):
        start = pl.multiple_of(i * chunk, chunk)
        return acc + partial_sum(f_ref[j, pl.ds(start, chunk), :])

    return lax.fori_loop(0, nchunks, body, jnp.zeros((1, 512), jnp.float32))


def _fpnmil_head_kernel(f1_ref, f2_ref, f3_ref, f4_ref,
                        w1_ref, b1_ref, w2_ref, b2_ref, w3_ref, b3_ref,
                        out_ref, *, hw_sizes, chunks, kb):
    """Grid = (bag, instance_block).  out_ref (1, 512) f32 is the resident
    MIL max; each step folds KB instances into a local max first."""
    hw1, hw2, hw3, hw4 = hw_sizes
    c1, c2, c3, c4 = chunks

    def one_instance(j):
        g1 = _proj_relu_gapsum(f1_ref, j, w1_ref, b1_ref, hw1, c1) * (1.0 / hw1)
        g2 = _proj_relu_gapsum(f2_ref, j, w2_ref, b2_ref, hw2, c2) * (1.0 / hw2)
        g3 = _proj_relu_gapsum(f3_ref, j, w3_ref, b3_ref, hw3, c3) * (1.0 / hw3)
        g4 = _gapsum_f32(f4_ref, j, hw4, c4) * (1.0 / hw4)    # no conv / relu
        return g1 + g2 + g3 + g4                               # (1, 512) f32

    def body(j, cur_max):
        return jnp.maximum(cur_max, one_instance(j))

    local_max = lax.fori_loop(0, kb, body,
                              jnp.full((1, 512), -jnp.inf, jnp.float32))

    ki = pl.program_id(1)

    @pl.when(ki == 0)
    def _():
        out_ref[...] = local_max

    @pl.when(ki != 0)
    def _():
        out_ref[...] = jnp.maximum(out_ref[...], local_max)    # running MIL max


def fpnmil_head(f1, f2, f3, f4, head_params, k):
    """f_i: backbone features in NHWC.  Returns (B, n_classes)."""
    n = f1.shape[0]
    assert n % k == 0, f"number of instances {n} must be a multiple of k={k}"
    b = n // k

    def to_bkhwc(f, dtype):
        _, h, w, c = f.shape
        # NHWC -> (bags, instances, HW, C): pure reshape (no transpose).
        # TODO(synk): verify the f32->bf16 cast fuses into the backbone's final
        # ReLU fusion (otherwise it is an extra HBM pass over the feature map).
        return f.reshape(b, k, h * w, c).astype(dtype)

    # feat1/2/3 feed MXU matmuls -> bf16 streaming; feat4 feeds no matmul -> f32.
    f1b = to_bkhwc(f1, jnp.bfloat16)
    f2b = to_bkhwc(f2, jnp.bfloat16)
    f3b = to_bkhwc(f3, jnp.bfloat16)
    f4b = to_bkhwc(f4, jnp.float32)

    w1, b1, w2, b2, w3, b3, wc, bc = head_params
    w1b, w2b, w3b = (w.astype(jnp.bfloat16) for w in (w1, w2, w3))

    hw_sizes = tuple(f.shape[2] for f in (f1b, f2b, f3b, f4b))
    chunks = tuple(_pick_chunk(hw) for hw in hw_sizes)

    kb = _pick_kb(k, _vmem_bytes_per_instance((f1b, f2b, f3b, f4b)))

    def feat_spec(a):
        hw, c = a.shape[2], a.shape[3]
        # KB instances per block; bag dim squeezed -> kernel sees (KB, HW, C).
        return pl.BlockSpec((None, kb, hw, c), lambda bi, ki: (bi, ki, 0, 0))

    def full_spec(a):
        nd = a.ndim
        return pl.BlockSpec(a.shape, lambda bi, ki: (0,) * nd)

    kernel = functools.partial(_fpnmil_head_kernel,
                               hw_sizes=hw_sizes, chunks=chunks, kb=kb)

    mil = pl.pallas_call(
        kernel,
        out_shape=jax.ShapeDtypeStruct((b, 1, 512), jnp.float32),
        grid_spec=pltpu.PrefetchScalarGridSpec(
            num_scalar_prefetch=0,
            grid=(b, k // kb),                 # instance axis last (accumulator)
            in_specs=[feat_spec(f1b), feat_spec(f2b), feat_spec(f3b), feat_spec(f4b),
                      full_spec(w1b), full_spec(b1),
                      full_spec(w2b), full_spec(b2),
                      full_spec(w3b), full_spec(b3)],
            out_specs=pl.BlockSpec((None, 1, 512), lambda bi, ki: (bi, 0, 0)),
        ),
        compiler_params=pltpu.CompilerParams(
            dimension_semantics=("parallel", "arbitrary"),
            vmem_limit_bytes=32 * 1024 * 1024),   # safe on v7x (64 MiB physical)
    )(f1b, f2b, f3b, f4b, w1b, b1, w2b, b2, w3b, b3)

    mil = mil.reshape(b, 512)
    # Classifier hoisted out of the kernel: one batched (b,512)@(512,n) XLA dot.
    return jnp.dot(mil, wc) + bc


def fpnmil_forward(x, backbone_params, head_params, k):
    """Implements FPNMIL.forward.  x: (..., 3, H, W)."""
    h, w = x.shape[-2], x.shape[-1]
    x = x.reshape(-1, 3, h, w)
    x = jnp.transpose(x, (0, 2, 3, 1))      # one cheap NCHW->NHWC on the input
    feat1, feat2, feat3, feat4 = backbone_features(x, backbone_params)
    return fpnmil_head(feat1, feat2, feat3, feat4, head_params, k)


# -----------------------------------------------------------------------------
# Parameter init (deterministic, torch-style fan-in uniform for the head).
# -----------------------------------------------------------------------------
def init_head_params(key, n_classes):
    ks = jax.random.split(key, 8)

    def u(kk, shape, fan_in):
        bound = 1.0 / np.sqrt(fan_in)
        return jax.random.uniform(kk, shape, jnp.float32, -bound, bound)

    w1 = u(ks[0], (64, 512), 64);    b1 = u(ks[1], (1, 512), 64)
    w2 = u(ks[2], (128, 512), 128);  b2 = u(ks[3], (1, 512), 128)
    w3 = u(ks[4], (256, 512), 256);  b3 = u(ks[5], (1, 512), 256)
    wc = u(ks[6], (512, n_classes), 512)    # (512, n_classes) == torch weight.T
    bc = u(ks[7], (1, n_classes), 512)
    return (w1, b1, w2, b2, w3, b3, wc, bc)


# -----------------------------------------------------------------------------
# Pure-JAX reference of the head (NHWC, mirrors the torch op graph).
# -----------------------------------------------------------------------------
def ref_head(feats, head_params, k):
    w1, b1, w2, b2, w3, b3, wc, bc = head_params
    f1, f2, f3, f4 = feats
    hp = jax.lax.Precision.HIGHEST

    def proj_gap(f, w, bb):
        y = jnp.einsum("nhwc,cd->nhwd", f, w, precision=hp) + bb.reshape(1, 1, 1, -1)
        y = jnp.maximum(y, 0.0)
        return jnp.mean(y, axis=(1, 2))

    g = (proj_gap(f1, w1, b1) + proj_gap(f2, w2, b2) + proj_gap(f3, w3, b3)
         + jnp.mean(f4, axis=(1, 2)))
    g = g.reshape(-1, k, 512)
    mx = jnp.max(g, axis=1)
    return jnp.dot(mx, wc, precision=hp) + bc


if __name__ == "__main__":
    B, K, N_CLASSES = 2, 4, 1          # small-shape stand-ins (module default k=50)
    H = W = 32

    key = jax.random.PRNGKey(0)
    key, kx, kb_key, kh = jax.random.split(key, 4)
    x = jax.random.normal(kx, (B, K, 3, H, W), jnp.float32)
    backbone_params = init_backbone_params(kb_key)
    head_params = init_head_params(kh, N_CLASSES)

    fwd = jax.jit(functools.partial(fpnmil_forward, k=K))
    out = fwd(x, backbone_params, head_params)
    out = jax.block_until_ready(out)

    # Check the Pallas head against a pure-JAX reference of the torch op graph.
    # feat1/2/3 and the projection weights are rounded to bf16 in the reference
    # too (matching the kernel's bf16 streaming dtype; all accumulation is f32
    # in both), feat4 stays f32 in both, so only reduction-order differences
    # remain -> tight tolerance.
    xn = jnp.transpose(x.reshape(-1, 3, H, W), (0, 2, 3, 1))
    feats = backbone_features(xn, backbone_params)

    def _r16(a):
        return a.astype(jnp.bfloat16).astype(jnp.float32)

    w1, b1, w2, b2, w3, b3, wc, bc = head_params
    feats16 = [_r16(feats[0]), _r16(feats[1]), _r16(feats[2]), feats[3]]
    hp16 = (_r16(w1), b1, _r16(w2), b2, _r16(w3), b3, wc, bc)
    ref = ref_head(feats16, hp16, K)

    np.testing.assert_allclose(np.asarray(out), np.asarray(ref), rtol=1e-2, atol=1e-2)
    assert out.shape == (B, N_CLASSES)

    print("KERNEL_OK")
</pallas_src>

<mosaic_0001>
module attributes {stable_mosaic.version = 11 : i64} {
  func.func @_fpnmil_head_kernel(%arg0: i32, %arg1: i32, %arg2: memref<1x4x64x64xbf16, #tpu.memory_space<vmem>>, %arg3: memref<1x4x16x128xbf16, #tpu.memory_space<vmem>>, %arg4: memref<1x4x4x256xbf16, #tpu.memory_space<vmem>>, %arg5: memref<1x4x1x512xf32, #tpu.memory_space<vmem>>, %arg6: memref<64x512xbf16, #tpu.memory_space<vmem>>, %arg7: memref<1x512xf32, #tpu.memory_space<vmem>>, %arg8: memref<128x512xbf16, #tpu.memory_space<vmem>>, %arg9: memref<1x512xf32, #tpu.memory_space<vmem>>, %arg10: memref<256x512xbf16, #tpu.memory_space<vmem>>, %arg11: memref<1x512xf32, #tpu.memory_space<vmem>>, %arg12: memref<1x1x512xf32, #tpu.memory_space<vmem>>) attributes {dimension_semantics = [#tpu.dimension_semantics<parallel>, #tpu.dimension_semantics<arbitrary>], iteration_bounds = array<i64: 2, 1>, scalar_prefetch = 0 : i64, scratch_operands = 0 : i64, tpu.core_type = #tpu.core_type<tc>, window_params = [{transform_indices = @transform_0, window_bounds = array<i64: 1, 4, 64, 64>}, {transform_indices = @transform_1, window_bounds = array<i64: 1, 4, 16, 128>}, {transform_indices = @transform_2, window_bounds = array<i64: 1, 4, 4, 256>}, {transform_indices = @transform_3, window_bounds = array<i64: 1, 4, 1, 512>}, {pipeline_mode = #tpu.pipeline_mode<synchronous>, transform_indices = @transform_4, window_bounds = array<i64: 64, 512>}, {pipeline_mode = #tpu.pipeline_mode<synchronous>, transform_indices = @transform_5, window_bounds = array<i64: 1, 512>}, {pipeline_mode = #tpu.pipeline_mode<synchronous>, transform_indices = @transform_6, window_bounds = array<i64: 128, 512>}, {pipeline_mode = #tpu.pipeline_mode<synchronous>, transform_indices = @transform_7, window_bounds = array<i64: 1, 512>}, {pipeline_mode = #tpu.pipeline_mode<synchronous>, transform_indices = @transform_8, window_bounds = array<i64: 256, 512>}, {pipeline_mode = #tpu.pipeline_mode<synchronous>, transform_indices = @transform_9, window_bounds = array<i64: 1, 512>}, {transform_indices = @transform_10, window_bounds = array<i64: 1, 1, 512>}]} {
    %cst = arith.constant 0xFF800000 : f32
    %0 = vector.broadcast %cst : f32 to vector<1x512xf32>
    %c0_i32 = arith.constant 0 : i32
    %c4_i32 = arith.constant 4 : i32
    %1 = arith.addi %c0_i32, %c4_i32 : i32
    %c1_i32 = arith.constant 1 : i32
    %2 = scf.for %arg13 = %c0_i32 to %1 step %c1_i32 iter_args(%arg14 = %0) -> (vector<1x512xf32>)  : i32 {
      %c0 = arith.constant 0 : index
      %9 = arith.index_cast %arg13 : i32 to index
      %c0_5 = arith.constant 0 : index
      %c0_6 = arith.constant 0 : index
      %10 = vector.load %arg2[%c0, %9, %c0_5, %c0_6] : memref<1x4x64x64xbf16, #tpu.memory_space<vmem>>, vector<1x1x64x64xbf16>
      %11 = vector.shape_cast %10 : vector<1x1x64x64xbf16> to vector<64x64xbf16>
      %c0_7 = arith.constant 0 : index
      %c0_8 = arith.constant 0 : index
      %12 = vector.load %arg6[%c0_7, %c0_8] : memref<64x512xbf16, #tpu.memory_space<vmem>>, vector<64x512xbf16>
      %cst_9 = arith.constant dense<0.000000e+00> : vector<64x512xf32>
      %13 = tpu.matmul %11, %12, %cst_9 {dimension_numbers = #tpu.dot_dimension_numbers<[1], [0], [0], [1], [0, 0, 1, 1], [], []>} : vector<64x64xbf16>, vector<64x512xbf16>, vector<64x512xf32> -> vector<64x512xf32>
      %c0_10 = arith.constant 0 : index
      %c0_11 = arith.constant 0 : index
      %14 = vector.load %arg7[%c0_10, %c0_11] : memref<1x512xf32, #tpu.memory_space<vmem>>, vector<1x512xf32>
      %15 = vector.broadcast %14 : vector<1x512xf32> to vector<64x512xf32>
      %16 = arith.addf %13, %15 : vector<64x512xf32>
      %cst_12 = arith.constant 0.000000e+00 : f32
      %17 = vector.broadcast %cst_12 : f32 to vector<64x512xf32>
      %18 = arith.maximumf %16, %17 : vector<64x512xf32>
      %cst_13 = arith.constant dense<0.000000e+00> : vector<512xf32>
      %19 = vector.multi_reduction <add>, %18, %cst_13 [0] : vector<64x512xf32> to vector<512xf32>
      %20 = vector.shape_cast %19 : vector<512xf32> to vector<1x512xf32>
      %cst_14 = arith.constant 1.562500e-02 : f32
      %21 = vector.broadcast %cst_14 : f32 to vector<1x512xf32>
      %22 = arith.mulf %20, %21 : vector<1x512xf32>
      %c0_15 = arith.constant 0 : index
      %23 = arith.index_cast %arg13 : i32 to index
      %c0_16 = arith.constant 0 : index
      %c0_17 = arith.constant 0 : index
      %24 = vector.load %arg3[%c0_15, %23, %c0_16, %c0_17] : memref<1x4x16x128xbf16, #tpu.memory_space<vmem>>, vector<1x1x16x128xbf16>
      %25 = vector.shape_cast %24 : vector<1x1x16x128xbf16> to vector<16x128xbf16>
      %c0_18 = arith.constant 0 : index
      %c0_19 = arith.constant 0 : index
      %26 = vector.load %arg8[%c0_18, %c0_19] : memref<128x512xbf16, #tpu.memory_space<vmem>>, vector<128x512xbf16>
      %cst_20 = arith.constant dense<0.000000e+00> : vector<16x512xf32>
      %27 = tpu.matmul %25, %26, %cst_20 {dimension_numbers = #tpu.dot_dimension_numbers<[1], [0], [0], [1], [0, 0, 1, 1], [], []>} : vector<16x128xbf16>, vector<128x512xbf16>, vector<16x512xf32> -> vector<16x512xf32>
      %c0_21 = arith.constant 0 : index
      %c0_22 = arith.constant 0 : index
      %28 = vector.load %arg9[%c0_21, %c0_22] : memref<1x512xf32, #tpu.memory_space<vmem>>, vector<1x512xf32>
      %29 = vector.broadcast %28 : vector<1x512xf32> to vector<16x512xf32>
      %30 = arith.addf %27, %29 : vector<16x512xf32>
      %cst_23 = arith.constant 0.000000e+00 : f32
      %31 = vector.broadcast %cst_23 : f32 to vector<16x512xf32>
      %32 = arith.maximumf %30, %31 : vector<16x512xf32>
      %cst_24 = arith.constant dense<0.000000e+00> : vector<512xf32>
      %33 = vector.multi_reduction <add>, %32, %cst_24 [0] : vector<16x512xf32> to vector<512xf32>
      %34 = vector.shape_cast %33 : vector<512xf32> to vector<1x512xf32>
      %cst_25 = arith.constant 6.250000e-02 : f32
      %35 = vector.broadcast %cst_25 : f32 to vector<1x512xf32>
      %36 = arith.mulf %34, %35 : vector<1x512xf32>
      %c0_26 = arith.constant 0 : index
      %37 = arith.index_cast %arg13 : i32 to index
      %c0_27 = arith.constant 0 : index
      %c0_28 = arith.constant 0 : index
      %38 = vector.load %arg4[%c0_26, %37, %c0_27, %c0_28] : memref<1x4x4x256xbf16, #tpu.memory_space<vmem>>, vector<1x1x4x256xbf16>
      %39 = vector.shape_cast %38 : vector<1x1x4x256xbf16> to vector<4x256xbf16>
      %c0_29 = arith.constant 0 : index
      %c0_30 = arith.constant 0 : index
      %40 = vector.load %arg10[%c0_29, %c0_30] : memref<256x512xbf16, #tpu.memory_space<vmem>>, vector<256x512xbf16>
      %cst_31 = arith.constant dense<0.000000e+00> : vector<4x512xf32>
      %41 = tpu.matmul %39, %40, %cst_31 {dimension_numbers = #tpu.dot_dimension_numbers<[1], [0], [0], [1], [0, 0, 1, 1], [], []>} : vector<4x256xbf16>, vector<256x512xbf16>, vector<4x512xf32> -> vector<4x512xf32>
      %c0_32 = arith.constant 0 : index
      %c0_33 = arith.constant 0 : index
      %42 = vector.load %arg11[%c0_32, %c0_33] : memref<1x512xf32, #tpu.memory_space<vmem>>, vector<1x512xf32>
      %43 = vector.broadcast %42 : vector<1x512xf32> to vector<4x512xf32>
      %44 = arith.addf %41, %43 : vector<4x512xf32>
      %cst_34 = arith.constant 0.000000e+00 : f32
      %45 = vector.broadcast %cst_34 : f32 to vector<4x512xf32>
      %46 = arith.maximumf %44, %45 : vector<4x512xf32>
      %cst_35 = arith.constant dense<0.000000e+00> : vector<512xf32>
      %47 = vector.multi_reduction <add>, %46, %cst_35 [0] : vector<4x512xf32> to vector<512xf32>
      %48 = vector.shape_cast %47 : vector<512xf32> to vector<1x512xf32>
      %cst_36 = arith.constant 2.500000e-01 : f32
      %49 = vector.broadcast %cst_36 : f32 to vector<1x512xf32>
      %50 = arith.mulf %48, %49 : vector<1x512xf32>
      %c0_37 = arith.constant 0 : index
      %51 = arith.index_cast %arg13 : i32 to index
      %c0_38 = arith.constant 0 : index
      %c0_39 = arith.constant 0 : index
      %52 = vector.load %arg5[%c0_37, %51, %c0_38, %c0_39] : memref<1x4x1x512xf32, #tpu.memory_space<vmem>>, vector<1x1x1x512xf32>
      %53 = vector.shape_cast %52 : vector<1x1x1x512xf32> to vector<1x512xf32>
      %cst_40 = arith.constant dense<0.000000e+00> : vector<512xf32>
      %54 = vector.multi_reduction <add>, %53, %cst_40 [0] : vector<1x512xf32> to vector<512xf32>
      %55 = vector.shape_cast %54 : vector<512xf32> to vector<1x512xf32>
      %cst_41 = arith.constant 1.000000e+00 : f32
      %56 = vector.broadcast %cst_41 : f32 to vector<1x512xf32>
      %57 = arith.mulf %55, %56 : vector<1x512xf32>
      %58 = arith.addf %22, %36 : vector<1x512xf32>
      %59 = arith.addf %58, %50 : vector<1x512xf32>
      %60 = arith.addf %59, %57 : vector<1x512xf32>
      %61 = arith.maximumf %arg14, %60 : vector<1x512xf32>
      scf.yield %61 : vector<1x512xf32>
    }
    %c4_i32_0 = arith.constant 4 : i32
    %c0_i32_1 = arith.constant 0 : i32
    %3 = arith.cmpi eq, %arg1, %c0_i32_1 : i32
    %4 = arith.extui %3 : i1 to i32
    %c0_i32_2 = arith.constant 0 : i32
    %5 = arith.cmpi ne, %4, %c0_i32_2 : i32
    scf.if %5 {
      %c0 = arith.constant 0 : index
      %c0_5 = arith.constant 0 : index
      %c0_6 = arith.constant 0 : index
      %9 = vector.load %arg12[%c0, %c0_5, %c0_6] : memref<1x1x512xf32, #tpu.memory_space<vmem>>, vector<1x1x512xf32>
      %10 = vector.shape_cast %9 : vector<1x1x512xf32> to vector<1x512xf32>
      %11 = vector.shape_cast %2 : vector<1x512xf32> to vector<1x1x512xf32>
      tpu.vector_store %arg12[%c0, %c0_5, %c0_6], %11 {strides = array<i32>} : memref<1x1x512xf32, #tpu.memory_space<vmem>>, vector<1x1x512xf32>,
    } else {
    }
    %c0_i32_3 = arith.constant 0 : i32
    %6 = arith.cmpi ne, %arg1, %c0_i32_3 : i32
    %7 = arith.extui %6 : i1 to i32
    %c0_i32_4 = arith.constant 0 : i32
    %8 = arith.cmpi ne, %7, %c0_i32_4 : i32
    scf.if %8 {
      %c0 = arith.constant 0 : index
      %c0_5 = arith.constant 0 : index
      %c0_6 = arith.constant 0 : index
      %9 = vector.load %arg12[%c0, %c0_5, %c0_6] : memref<1x1x512xf32, #tpu.memory_space<vmem>>, vector<1x1x512xf32>
      %10 = vector.shape_cast %9 : vector<1x1x512xf32> to vector<1x512xf32>
      %11 = arith.maximumf %10, %2 : vector<1x512xf32>
      %c0_7 = arith.constant 0 : index
      %c0_8 = arith.constant 0 : index
      %c0_9 = arith.constant 0 : index
      %12 = vector.load %arg12[%c0_7, %c0_8, %c0_9] : memref<1x1x512xf32, #tpu.memory_space<vmem>>, vector<1x1x512xf32>
      %13 = vector.shape_cast %12 : vector<1x1x512xf32> to vector<1x512xf32>
      %14 = vector.shape_cast %11 : vector<1x512xf32> to vector<1x1x512xf32>
      tpu.vector_store %arg12[%c0_7, %c0_8, %c0_9], %14 {strides = array<i32>} : memref<1x1x512xf32, #tpu.memory_space<vmem>>, vector<1x1x512xf32>,
    } else {
    }
    return
  }
  func.func @transform_0(%arg0: i32, %arg1: i32) -> (i32, i32, i32, i32) {
    %c0_i32 = arith.constant 0 : i32
    %c0_i32_0 = arith.constant 0 : i32
    %c0_i32_1 = arith.constant 0 : i32
    return %arg0, %arg1, %c0_i32, %c0_i32_0 : i32, i32, i32, i32
  }
  func.func @transform_1(%arg0: i32, %arg1: i32) -> (i32, i32, i32, i32) {
    %c0_i32 = arith.constant 0 : i32
    %c0_i32_0 = arith.constant 0 : i32
    %c0_i32_1 = arith.constant 0 : i32
    return %arg0, %arg1, %c0_i32, %c0_i32_0 : i32, i32, i32, i32
  }
  func.func @transform_2(%arg0: i32, %arg1: i32) -> (i32, i32, i32, i32) {
    %c0_i32 = arith.constant 0 : i32
    %c0_i32_0 = arith.constant 0 : i32
    %c0_i32_1 = arith.constant 0 : i32
    return %arg0, %arg1, %c0_i32, %c0_i32_0 : i32, i32, i32, i32
  }
  func.func @transform_3(%arg0: i32, %arg1: i32) -> (i32, i32, i32, i32) {
    %c0_i32 = arith.constant 0 : i32
    %c0_i32_0 = arith.constant 0 : i32
    %c0_i32_1 = arith.constant 0 : i32
    return %arg0, %arg1, %c0_i32, %c0_i32_0 : i32, i32, i32, i32
  }
  func.func @transform_4(%arg0: i32, %arg1: i32) -> (i32, i32) {
    %c0_i32 = arith.constant 0 : i32
    %c0_i32_0 = arith.constant 0 : i32
    %c0_i32_1 = arith.constant 0 : i32
    return %c0_i32, %c0_i32_0 : i32, i32
  }
  func.func @transform_5(%arg0: i32, %arg1: i32) -> (i32, i32) {
    %c0_i32 = arith.constant 0 : i32
    %c0_i32_0 = arith.constant 0 : i32
    %c0_i32_1 = arith.constant 0 : i32
    return %c0_i32, %c0_i32_0 : i32, i32
  }
  func.func @transform_6(%arg0: i32, %arg1: i32) -> (i32, i32) {
    %c0_i32 = arith.constant 0 : i32
    %c0_i32_0 = arith.constant 0 : i32
    %c0_i32_1 = arith.constant 0 : i32
    return %c0_i32, %c0_i32_0 : i32, i32
  }
  func.func @transform_7(%arg0: i32, %arg1: i32) -> (i32, i32) {
    %c0_i32 = arith.constant 0 : i32
    %c0_i32_0 = arith.constant 0 : i32
    %c0_i32_1 = arith.constant 0 : i32
    return %c0_i32, %c0_i32_0 : i32, i32
  }
  func.func @transform_8(%arg0: i32, %arg1: i32) -> (i32, i32) {
    %c0_i32 = arith.constant 0 : i32
    %c0_i32_0 = arith.constant 0 : i32
    %c0_i32_1 = arith.constant 0 : i32
    return %c0_i32, %c0_i32_0 : i32, i32
  }
  func.func @transform_9(%arg0: i32, %arg1: i32) -> (i32, i32) {
    %c0_i32 = arith.constant 0 : i32
    %c0_i32_0 = arith.constant 0 : i32
    %c0_i32_1 = arith.constant 0 : i32
    return %c0_i32, %c0_i32_0 : i32, i32
  }
  func.func @transform_10(%arg0: i32, %arg1: i32) -> (i32, i32, i32) {
    %c0_i32 = arith.constant 0 : i32
    %c0_i32_0 = arith.constant 0 : i32
    %c0_i32_1 = arith.constant 0 : i32
    return %arg0, %c0_i32, %c0_i32_0 : i32, i32, i32
  }
}

</mosaic_0001>

<llo_original>
// kernel: reverse
$region0: #{reverse}
  #allocation0 [shape = 's32[1]{0}', space=sflag, size = 0x4, scoped, tag = 'scoped memory for reverse']
  %s0 = inlined_call_operand.vmem [shape: f32[3,3,256,256], index: 0, kind: input, shape index: {}]
  %s1 = inlined_call_operand.vmem [shape: bf16[3,3,256,256], index: 1, kind: output, shape index: {}]
  %s2 = scalar_lea.vmem %s0, 4096
  %v3 = vld [vmem:[%s2] sm:$0xff]
  %s4 = scalar_lea.vmem %s0, 2560
  %v5 = vld [vmem:[%s4] sm:$0xff]
  %s6 = scalar_lea.vmem %s1, 768
  %s7 = scalar_lea.vmem %s0, 1024
  %v8 = vld [vmem:[%s7] sm:$0xff]
  %s9 = scalar_lea.vmem %s1, 1536
  %s10 = scalar_lea.vmem %s0, 3584
  %v11 = vld [vmem:[%s10] sm:$0xff]
  %s12 = scalar_lea.vmem %s1, 256
  %s13 = scalar_lea.vmem %s0, 2048
  %v14 = vld [vmem:[%s13] sm:$0xff]
  %s15 = scalar_lea.vmem %s1, 1024
  %s16 = scalar_lea.vmem %s0, 512
  %v17 = vld [vmem:[%s16] sm:$0xff]
  %s18 = scalar_lea.vmem %s1, 1792
  %s19 = scalar_lea.vmem %s0, 3072
  %v20 = vld [vmem:[%s19] sm:$0xff]
  %s21 = scalar_lea.vmem %s1, 512
  %s22 = scalar_lea.vmem %s0, 1536
  %v23 = vld [vmem:[%s22] sm:$0xff]
  %s24 = scalar_lea.vmem %s1, 1280
  %v25 = vld [vmem:[%s0] sm:$0xff]
  %s26 = scalar_lea.vmem %s1, 2048
  %s27 = scalar_lea.vmem %s0, 4112
  %v28 = vld [vmem:[%s27] sm:$0xff]
  %s29 = scalar_lea.vmem %s1, 8
  %s30 = scalar_lea.vmem %s0, 2576
  %v31 = vld [vmem:[%s30] sm:$0xff]
  %s32 = scalar_lea.vmem %s1, 776
  %s33 = scalar_lea.vmem %s0, 1040
  %v34 = vld [vmem:[%s33] sm:$0xff]
  %s35 = scalar_lea.vmem %s1, 1544
  %s36 = scalar_lea.vmem %s0, 3600
  %v37 = vld [vmem:[%s36] sm:$0xff]
  %s38 = scalar_lea.vmem %s1, 264
  %s39 = scalar_lea.vmem %s0, 2064
  %v40 = vld [vmem:[%s39] sm:$0xff]
  %s41 = scalar_lea.vmem %s1, 1032
  %s42 = scalar_lea.vmem %s0, 528
  %v43 = vld [vmem:[%s42] sm:$0xff]
  %s44 = scalar_lea.vmem %s1, 1800
  %s45 = scalar_lea.vmem %s0, 3088
  %v46 = vld [vmem:[%s45] sm:$0xff]
  %s47 = scalar_lea.vmem %s1, 520
  %s48 = scalar_lea.vmem %s0, 1552
  %v49 = vld [vmem:[%s48] sm:$0xff]
  %s50 = scalar_lea.vmem %s1, 1288
  %s51 = scalar_lea.vmem %s0, 16
  %v52 = vld [vmem:[%s51] sm:$0xff]
  %s53 = scalar_lea.vmem %s1, 2056
  %s54 = scalar_lea.vmem %s0, 4128
  %v55 = vld [vmem:[%s54] sm:$0xff]
  %s56 = scalar_lea.vmem %s1, 16
  %s57 = scalar_lea.vmem %s0, 2592
  %v58 = vld [vmem:[%s57] sm:$0xff]
  %s59 = scalar_lea.vmem %s1, 784
  %s60 = scalar_lea.vmem %s0, 1056
  %v61 = vld [vmem:[%s60] sm:$0xff]
  %s62 = scalar_lea.vmem %s1, 1552
  %s63 = scalar_lea.vmem %s0, 3616
  %v64 = vld [vmem:[%s63] sm:$0xff]
  %s65 = scalar_lea.vmem %s1, 272
  %s66 = scalar_lea.vmem %s0, 2080
  %v67 = vld [vmem:[%s66] sm:$0xff]
  %s68 = scalar_lea.vmem %s1, 1040
  %s69 = scalar_lea.vmem %s0, 544
  %v70 = vld [vmem:[%s69] sm:$0xff]
  %s71 = scalar_lea.vmem %s1, 1808
  %s72 = scalar_lea.vmem %s0, 3104
  %v73 = vld [vmem:[%s72] sm:$0xff]
  %s74 = scalar_lea.vmem %s1, 528
  %s75 = scalar_lea.vmem %s0, 1568
  %v76 = vld [vmem:[%s75] sm:$0xff]
  %s77 = scalar_lea.vmem %s1, 1296
  %s78 = scalar_lea.vmem %s0, 32
  %v79 = vld [vmem:[%s78] sm:$0xff]
  %s80 = scalar_lea.vmem %s1, 2064
  %s81 = scalar_lea.vmem %s0, 4144
  %v82 = vld [vmem:[%s81] sm:$0xff]
  %s83 = scalar_lea.vmem %s1, 24
  %s84 = scalar_lea.vmem %s0, 2608
  %v85 = vld [vmem:[%s84] sm:$0xff]
  %s86 = scalar_lea.vmem %s1, 792
  %s87 = scalar_lea.vmem %s0, 1072
  %v88 = vld [vmem:[%s87] sm:$0xff]
  %s89 = scalar_lea.vmem %s1, 1560
  %s90 = scalar_lea.vmem %s0, 3632
  %v91 = vld [vmem:[%s90] sm:$0xff]
  %s92 = scalar_lea.vmem %s1, 280
  %s93 = scalar_lea.vmem %s0, 2096
  %v94 = vld [vmem:[%s93] sm:$0xff]
  %s95 = scalar_lea.vmem %s1, 1048
  %s96 = scalar_lea.vmem %s0, 560
  %v97 = vld [vmem:[%s96] sm:$0xff]
  %s98 = scalar_lea.vmem %s1, 1816
  %s99 = scalar_lea.vmem %s0, 3120
  %v100 = vld [vmem:[%s99] sm:$0xff]
  %s101 = scalar_lea.vmem %s1, 536
  %s102 = scalar_lea.vmem %s0, 1584
  %v103 = vld [vmem:[%s102] sm:$0xff]
  %s104 = scalar_lea.vmem %s1, 1304
  %s105 = scalar_lea.vmem %s0, 48
  %v106 = vld [vmem:[%s105] sm:$0xff]
  %s107 = scalar_lea.vmem %s1, 2072
  %s108 = scalar_lea.vmem %s0, 4160
  %v109 = vld [vmem:[%s108] sm:$0xff]
  %s110 = scalar_lea.vmem %s1, 32
  %s111 = scalar_lea.vmem %s0, 2624
  %v112 = vld [vmem:[%s111] sm:$0xff]
  %s113 = scalar_lea.vmem %s1, 800
  %s114 = scalar_lea.vmem %s0, 1088
  %v115 = vld [vmem:[%s114] sm:$0xff]
  %s116 = scalar_lea.vmem %s1, 1568
  %s117 = scalar_lea.vmem %s0, 3648
  %v118 = vld [vmem:[%s117] sm:$0xff]
  %s119 = scalar_lea.vmem %s1, 288
  %s120 = scalar_lea.vmem %s0, 2112
  %v121 = vld [vmem:[%s120] sm:$0xff]
  %s122 = scalar_lea.vmem %s1, 1056
  %s123 = scalar_lea.vmem %s0, 576
  %v124 = vld [vmem:[%s123] sm:$0xff]
  %s125 = scalar_lea.vmem %s1, 1824
  %s126 = scalar_lea.vmem %s0, 3136
  %v127 = vld [vmem:[%s126] sm:$0xff]
  %s128 = scalar_lea.vmem %s1, 544
  %s129 = scalar_lea.vmem %s0, 1600
  %v130 = vld [vmem:[%s129] sm:$0xff]
  %s131 = scalar_lea.vmem %s1, 1312
  %s132 = scalar_lea.vmem %s0, 64
  %v133 = vld [vmem:[%s132] sm:$0xff]
  %s134 = scalar_lea.vmem %s1, 2080
  %s135 = scalar_lea.vmem %s0, 4176
  %v136 = vld [vmem:[%s135] sm:$0xff]
  %s137 = scalar_lea.vmem %s1, 40
  %s138 = scalar_lea.vmem %s0, 2640
  %v139 = vld [vmem:[%s138] sm:$0xff]
  %s140 = scalar_lea.vmem %s1, 808
  %s141 = scalar_lea.vmem %s0, 1104
  %v142 = vld [vmem:[%s141] sm:$0xff]
  %s143 = scalar_lea.vmem %s1, 1576
  %s144 = scalar_lea.vmem %s0, 3664
  %v145 = vld [vmem:[%s144] sm:$0xff]
  %s146 = scalar_lea.vmem %s1, 296
  %s147 = scalar_lea.vmem %s0, 2128
  %v148 = vld [vmem:[%s147] sm:$0xff]
  %s149 = scalar_lea.vmem %s1, 1064
  %s150 = scalar_lea.vmem %s0, 592
  %v151 = vld [vmem:[%s150] sm:$0xff]
  %s152 = scalar_lea.vmem %s1, 1832
  %s153 = scalar_lea.vmem %s0, 3152
  %v154 = vld [vmem:[%s153] sm:$0xff]
  %s155 = scalar_lea.vmem %s1, 552
  %s156 = scalar_lea.vmem %s0, 1616
  %v157 = vld [vmem:[%s156] sm:$0xff]
  %s158 = scalar_lea.vmem %s1, 1320
  %s159 = scalar_lea.vmem %s0, 80
  %v160 = vld [vmem:[%s159] sm:$0xff]
  %s161 = scalar_lea.vmem %s1, 2088
  %s162 = scalar_lea.vmem %s0, 4192
  %v163 = vld [vmem:[%s162] sm:$0xff]
  %s164 = scalar_lea.vmem %s1, 48
  %s165 = scalar_lea.vmem %s0, 2656
  %v166 = vld [vmem:[%s165] sm:$0xff]
  %s167 = scalar_lea.vmem %s1, 816
  %s168 = scalar_lea.vmem %s0, 1120
  %v169 = vld [vmem:[%s168] sm:$0xff]
  %s170 = scalar_lea.vmem %s1, 1584
  %s171 = scalar_lea.vmem %s0, 3680
  %v172 = vld [vmem:[%s171] sm:$0xff]
  %s173 = scalar_lea.vmem %s1, 304
  %s174 = scalar_lea.vmem %s0, 2144
  %v175 = vld [vmem:[%s174] sm:$0xff]
  %s176 = scalar_lea.vmem %s1, 1072
  %s177 = scalar_lea.vmem %s0, 608
  %v178 = vld [vmem:[%s177] sm:$0xff]
  %s179 = scalar_lea.vmem %s1, 1840
  %s180 = scalar_lea.vmem %s0, 3168
  %v181 = vld [vmem:[%s180] sm:$0xff]
  %s182 = scalar_lea.vmem %s1, 560
  %s183 = scalar_lea.vmem %s0, 1632
  %v184 = vld [vmem:[%s183] sm:$0xff]
  %s185 = scalar_lea.vmem %s1, 1328
  %s186 = scalar_lea.vmem %s0, 96
  %v187 = vld [vmem:[%s186] sm:$0xff]
  %s188 = scalar_lea.vmem %s1, 2096
  %s189 = scalar_lea.vmem %s0, 4208
  %v190 = vld [vmem:[%s189] sm:$0xff]
  %s191 = scalar_lea.vmem %s1, 56
  %s192 = scalar_lea.vmem %s0, 2672
  %v193 = vld [vmem:[%s192] sm:$0xff]
  %s194 = scalar_lea.vmem %s1, 824
  %s195 = scalar_lea.vmem %s0, 1136
  %v196 = vld [vmem:[%s195] sm:$0xff]
  %s197 = scalar_lea.vmem %s1, 1592
  %s198 = scalar_lea.vmem %s0, 3696
  %v199 = vld [vmem:[%s198] sm:$0xff]
  %s200 = scalar_lea.vmem %s1, 312
  %s201 = scalar_lea.vmem %s0, 2160
  %v202 = vld [vmem:[%s201] sm:$0xff]
  %s203 = scalar_lea.vmem %s1, 1080
  %s204 = scalar_lea.vmem %s0, 624
  %v205 = vld [vmem:[%s204] sm:$0xff]
  %s206 = scalar_lea.vmem %s1, 1848
  %s207 = scalar_lea.vmem %s0, 3184
  %v208 = vld [vmem:[%s207] sm:$0xff]
  %s209 = scalar_lea.vmem %s1, 568
  %s210 = scalar_lea.vmem %s0, 1648
  %v211 = vld [vmem:[%s210] sm:$0xff]
  %s212 = scalar_lea.vmem %s1, 1336
  %s213 = scalar_lea.vmem %s0, 112
  %v214 = vld [vmem:[%s213] sm:$0xff]
  %s215 = scalar_lea.vmem %s1, 2104
  %s216 = scalar_lea.vmem %s0, 4224
  %v217 = vld [vmem:[%s216] sm:$0xff]
  %s218 = scalar_lea.vmem %s1, 64
  %s219 = scalar_lea.vmem %s0, 2688
  %v220 = vld [vmem:[%s219] sm:$0xff]
  %s221 = scalar_lea.vmem %s1, 832
  %s222 = scalar_lea.vmem %s0, 1152
  %v223 = vld [vmem:[%s222] sm:$0xff]
  %s224 = scalar_lea.vmem %s1, 1600
  %s225 = scalar_lea.vmem %s0, 3712
  %v226 = vld [vmem:[%s225] sm:$0xff]
  %s227 = scalar_lea.vmem %s1, 320
  %s228 = scalar_lea.vmem %s0, 2176
  %v229 = vld [vmem:[%s228] sm:$0xff]
  %s230 = scalar_lea.vmem %s1, 1088
  %s231 = scalar_lea.vmem %s0, 640
  %v232 = vld [vmem:[%s231] sm:$0xff]
  %s233 = scalar_lea.vmem %s1, 1856
  %s234 = scalar_lea.vmem %s0, 3200
  %v235 = vld [vmem:[%s234] sm:$0xff]
  %s236 = scalar_lea.vmem %s1, 576
  %s237 = scalar_lea.vmem %s0, 1664
  %v238 = vld [vmem:[%s237] sm:$0xff]
  %s239 = scalar_lea.vmem %s1, 1344
  %s240 = scalar_lea.vmem %s0, 128
  %v241 = vld [vmem:[%s240] sm:$0xff]
  %s242 = scalar_lea.vmem %s1, 2112
  %s243 = scalar_lea.vmem %s0, 4240
  %v244 = vld [vmem:[%s243] sm:$0xff]
  %s245 = scalar_lea.vmem %s1, 72
  %s246 = scalar_lea.vmem %s0, 2704
  %v247 = vld [vmem:[%s246] sm:$0xff]
  %s248 = scalar_lea.vmem %s1, 840
  %s249 = scalar_lea.vmem %s0, 1168
  %v250 = vld [vmem:[%s249] sm:$0xff]
  %s251 = scalar_lea.vmem %s1, 1608
  %s252 = scalar_lea.vmem %s0, 3728
  %v253 = vld [vmem:[%s252] sm:$0xff]
  %s254 = scalar_lea.vmem %s1, 328
  %s255 = scalar_lea.vmem %s0, 2192
  %v256 = vld [vmem:[%s255] sm:$0xff]
  %s257 = scalar_lea.vmem %s1, 1096
  %s258 = scalar_lea.vmem %s0, 656
  %v259 = vld [vmem:[%s258] sm:$0xff]
  %s260 = scalar_lea.vmem %s1, 1864
  %s261 = scalar_lea.vmem %s0, 3216
  %v262 = vld [vmem:[%s261] sm:$0xff]
  %s263 = scalar_lea.vmem %s1, 584
  %s264 = scalar_lea.vmem %s0, 1680
  %v265 = vld [vmem:[%s264] sm:$0xff]
  %s266 = scalar_lea.vmem %s1, 1352
  %s267 = scalar_lea.vmem %s0, 144
  %v268 = vld [vmem:[%s267] sm:$0xff]
  %s269 = scalar_lea.vmem %s1, 2120
  %s270 = scalar_lea.vmem %s0, 4256
  %v271 = vld [vmem:[%s270] sm:$0xff]
  %s272 = scalar_lea.vmem %s1, 80
  %s273 = scalar_lea.vmem %s0, 2720
  %v274 = vld [vmem:[%s273] sm:$0xff]
  %s275 = scalar_lea.vmem %s1, 848
  %s276 = scalar_lea.vmem %s0, 1184
  %v277 = vld [vmem:[%s276] sm:$0xff]
  %s278 = scalar_lea.vmem %s1, 1616
  %s279 = scalar_lea.vmem %s0, 3744
  %v280 = vld [vmem:[%s279] sm:$0xff]
  %s281 = scalar_lea.vmem %s1, 336
  %s282 = scalar_lea.vmem %s0, 2208
  %v283 = vld [vmem:[%s282] sm:$0xff]
  %s284 = scalar_lea.vmem %s1, 1104
  %s285 = scalar_lea.vmem %s0, 672
  %v286 = vld [vmem:[%s285] sm:$0xff]
  %s287 = scalar_lea.vmem %s1, 1872
  %s288 = scalar_lea.vmem %s0, 3232
  %v289 = vld [vmem:[%s288] sm:$0xff]
  %s290 = scalar_lea.vmem %s1, 592
  %s291 = scalar_lea.vmem %s0, 1696
  %v292 = vld [vmem:[%s291] sm:$0xff]
  %s293 = scalar_lea.vmem %s1, 1360
  %s294 = scalar_lea.vmem %s0, 160
  %v295 = vld [vmem:[%s294] sm:$0xff]
  %s296 = scalar_lea.vmem %s1, 2128
  %s297 = scalar_lea.vmem %s0, 4272
  %v298 = vld [vmem:[%s297] sm:$0xff]
  %s299 = scalar_lea.vmem %s1, 88
  %s300 = scalar_lea.vmem %s0, 2736
  %v301 = vld [vmem:[%s300] sm:$0xff]
  %s302 = scalar_lea.vmem %s1, 856
  %s303 = scalar_lea.vmem %s0, 1200
  %v304 = vld [vmem:[%s303] sm:$0xff]
  %s305 = scalar_lea.vmem %s1, 1624
  %s306 = scalar_lea.vmem %s0, 3760
  %v307 = vld [vmem:[%s306] sm:$0xff]
  %s308 = scalar_lea.vmem %s1, 344
  %s309 = scalar_lea.vmem %s0, 2224
  %v310 = vld [vmem:[%s309] sm:$0xff]
  %s311 = scalar_lea.vmem %s1, 1112
  %s312 = scalar_lea.vmem %s0, 688
  %v313 = vld [vmem:[%s312] sm:$0xff]
  %s314 = scalar_lea.vmem %s1, 1880
  %s315 = scalar_lea.vmem %s0, 3248
  %v316 = vld [vmem:[%s315] sm:$0xff]
  %s317 = scalar_lea.vmem %s1, 600
  %s318 = scalar_lea.vmem %s0, 1712
  %v319 = vld [vmem:[%s318] sm:$0xff]
  %s320 = scalar_lea.vmem %s1, 1368
  %s321 = scalar_lea.vmem %s0, 176
  %v322 = vld [vmem:[%s321] sm:$0xff]
  %s323 = scalar_lea.vmem %s1, 2136
  %s324 = scalar_lea.vmem %s0, 4288
  %v325 = vld [vmem:[%s324] sm:$0xff]
  %s326 = scalar_lea.vmem %s1, 96
  %s327 = scalar_lea.vmem %s0, 2752
  %v328 = vld [vmem:[%s327] sm:$0xff]
  %s329 = scalar_lea.vmem %s1, 864
  %s330 = scalar_lea.vmem %s0, 1216
  %v331 = vld [vmem:[%s330] sm:$0xff]
  %s332 = scalar_lea.vmem %s1, 1632
  %s333 = scalar_lea.vmem %s0, 3776
  %v334 = vld [vmem:[%s333] sm:$0xff]
  %s335 = scalar_lea.vmem %s1, 352
  %s336 = scalar_lea.vmem %s0, 2240
  %v337 = vld [vmem:[%s336] sm:$0xff]
  %s338 = scalar_lea.vmem %s1, 1120
  %s339 = scalar_lea.vmem %s0, 704
  %v340 = vld [vmem:[%s339] sm:$0xff]
  %s341 = scalar_lea.vmem %s1, 1888
  %s342 = scalar_lea.vmem %s0, 3264
  %v343 = vld [vmem:[%s342] sm:$0xff]
  %s344 = scalar_lea.vmem %s1, 608
  %s345 = scalar_lea.vmem %s0, 1728
  %v346 = vld [vmem:[%s345] sm:$0xff]
  %s347 = scalar_lea.vmem %s1, 1376
  %s348 = scalar_lea.vmem %s0, 192
  %v349 = vld [vmem:[%s348] sm:$0xff]
  %s350 = scalar_lea.vmem %s1, 2144
  %s351 = scalar_lea.vmem %s0, 4304
  %v352 = vld [vmem:[%s351] sm:$0xff]
  %s353 = scalar_lea.vmem %s1, 104
  %s354 = scalar_lea.vmem %s0, 2768
  %v355 = vld [vmem:[%s354] sm:$0xff]
  %s356 = scalar_lea.vmem %s1, 872
  %s357 = scalar_lea.vmem %s0, 1232
  %v358 = vld [vmem:[%s357] sm:$0xff]
  %s359 = scalar_lea.vmem %s1, 1640
  %s360 = scalar_lea.vmem %s0, 3792
  %v361 = vld [vmem:[%s360] sm:$0xff]
  %s362 = scalar_lea.vmem %s1, 360
  %s363 = scalar_lea.vmem %s0, 2256
  %v364 = vld [vmem:[%s363] sm:$0xff]
  %s365 = scalar_lea.vmem %s1, 1128
  %s366 = scalar_lea.vmem %s0, 720
  %v367 = vld [vmem:[%s366] sm:$0xff]
  %s368 = scalar_lea.vmem %s1, 1896
  %s369 = scalar_lea.vmem %s0, 3280
  %v370 = vld [vmem:[%s369] sm:$0xff]
  %s371 = scalar_lea.vmem %s1, 616
  %s372 = scalar_lea.vmem %s0, 1744
  %v373 = vld [vmem:[%s372] sm:$0xff]
  %s374 = scalar_lea.vmem %s1, 1384
  %s375 = scalar_lea.vmem %s0, 208
  %v376 = vld [vmem:[%s375] sm:$0xff]
  %s377 = scalar_lea.vmem %s1, 2152
  %s378 = scalar_lea.vmem %s0, 4320
  %v379 = vld [vmem:[%s378] sm:$0xff]
  %s380 = scalar_lea.vmem %s1, 112
  %s381 = scalar_lea.vmem %s0, 2784
  %v382 = vld [vmem:[%s381] sm:$0xff]
  %s383 = scalar_lea.vmem %s1, 880
  %s384 = scalar_lea.vmem %s0, 1248
  %v385 = vld [vmem:[%s384] sm:$0xff]
  %s386 = scalar_lea.vmem %s1, 1648
  %s387 = scalar_lea.vmem %s0, 3808
  %v388 = vld [vmem:[%s387] sm:$0xff]
  %s389 = scalar_lea.vmem %s1, 368
  %s390 = scalar_lea.vmem %s0, 2272
  %v391 = vld [vmem:[%s390] sm:$0xff]
  %s392 = scalar_lea.vmem %s1, 1136
  %s393 = scalar_lea.vmem %s0, 736
  %v394 = vld [vmem:[%s393] sm:$0xff]
  %s395 = scalar_lea.vmem %s1, 1904
  %s396 = scalar_lea.vmem %s0, 3296
  %v397 = vld [vmem:[%s396] sm:$0xff]
  %s398 = scalar_lea.vmem %s1, 624
  %s399 = scalar_lea.vmem %s0, 1760
  %v400 = vld [vmem:[%s399] sm:$0xff]
  %s401 = scalar_lea.vmem %s1, 1392
  %s402 = scalar_lea.vmem %s0, 224
  %v403 = vld [vmem:[%s402] sm:$0xff]
  %s404 = scalar_lea.vmem %s1, 2160
  %s405 = scalar_lea.vmem %s0, 4336
  %v406 = vld [vmem:[%s405] sm:$0xff]
  %s407 = scalar_lea.vmem %s1, 120
  %s408 = scalar_lea.vmem %s0, 2800
  %v409 = vld [vmem:[%s408] sm:$0xff]
  %s410 = scalar_lea.vmem %s1, 888
  %s411 = scalar_lea.vmem %s0, 1264
  %v412 = vld [vmem:[%s411] sm:$0xff]
  %s413 = scalar_lea.vmem %s1, 1656
  %s414 = scalar_lea.vmem %s0, 3824
  %v415 = vld [vmem:[%s414] sm:$0xff]
  %s416 = scalar_lea.vmem %s1, 376
  %s417 = scalar_lea.vmem %s0, 2288
  %v418 = vld [vmem:[%s417] sm:$0xff]
  %s419 = scalar_lea.vmem %s1, 1144
  %s420 = scalar_lea.vmem %s0, 752
  %v421 = vld [vmem:[%s420] sm:$0xff]
  %s422 = scalar_lea.vmem %s1, 1912
  %s423 = scalar_lea.vmem %s0, 3312
  %v424 = vld [vmem:[%s423] sm:$0xff]
  %s425 = scalar_lea.vmem %s1, 632
  %s426 = scalar_lea.vmem %s0, 1776
  %v427 = vld [vmem:[%s426] sm:$0xff]
  %s428 = scalar_lea.vmem %s1, 1400
  %s429 = scalar_lea.vmem %s0, 240
  %v430 = vld [vmem:[%s429] sm:$0xff]
  %s431 = scalar_lea.vmem %s1, 2168
  %s432 = scalar_lea.vmem %s0, 4352
  %v433 = vld [vmem:[%s432] sm:$0xff]
  %s434 = scalar_lea.vmem %s1, 128
  %s435 = scalar_lea.vmem %s0, 2816
  %v436 = vld [vmem:[%s435] sm:$0xff]
  %s437 = scalar_lea.vmem %s1, 896
  %s438 = scalar_lea.vmem %s0, 1280
  %v439 = vld [vmem:[%s438] sm:$0xff]
  %s440 = scalar_lea.vmem %s1, 1664
  %s441 = scalar_lea.vmem %s0, 3840
  %v442 = vld [vmem:[%s441] sm:$0xff]
  %s443 = scalar_lea.vmem %s1, 384
  %s444 = scalar_lea.vmem %s0, 2304
  %v445 = vld [vmem:[%s444] sm:$0xff]
  %s446 = scalar_lea.vmem %s1, 1152
  %s447 = scalar_lea.vmem %s0, 768
  %v448 = vld [vmem:[%s447] sm:$0xff]
  %s449 = scalar_lea.vmem %s1, 1920
  %s450 = scalar_lea.vmem %s0, 3328
  %v451 = vld [vmem:[%s450] sm:$0xff]
  %s452 = scalar_lea.vmem %s1, 640
  %s453 = scalar_lea.vmem %s0, 1792
  %v454 = vld [vmem:[%s453] sm:$0xff]
  %s455 = scalar_lea.vmem %s1, 1408
  %s456 = scalar_lea.vmem %s0, 256
  %v457 = vld [vmem:[%s456] sm:$0xff]
  %s458 = scalar_lea.vmem %s1, 2176
  %s459 = scalar_lea.vmem %s0, 4368
  %v460 = vld [vmem:[%s459] sm:$0xff]
  %s461 = scalar_lea.vmem %s1, 136
  %s462 = scalar_lea.vmem %s0, 2832
  %v463 = vld [vmem:[%s462] sm:$0xff]
  %s464 = scalar_lea.vmem %s1, 904
  %s465 = scalar_lea.vmem %s0, 1296
  %v466 = vld [vmem:[%s465] sm:$0xff]
  %s467 = scalar_lea.vmem %s1, 1672
  %s468 = scalar_lea.vmem %s0, 3856
  %v469 = vld [vmem:[%s468] sm:$0xff]
  %s470 = scalar_lea.vmem %s1, 392
  %s471 = scalar_lea.vmem %s0, 2320
  %v472 = vld [vmem:[%s471] sm:$0xff]
  %s473 = scalar_lea.vmem %s1, 1160
  %s474 = scalar_lea.vmem %s0, 784
  %v475 = vld [vmem:[%s474] sm:$0xff]
  %s476 = scalar_lea.vmem %s1, 1928
  %s477 = scalar_lea.vmem %s0, 3344
  %v478 = vld [vmem:[%s477] sm:$0xff]
  %s479 = scalar_lea.vmem %s1, 648
  %s480 = scalar_lea.vmem %s0, 1808
  %v481 = vld [vmem:[%s480] sm:$0xff]
  %s482 = scalar_lea.vmem %s1, 1416
  %s483 = scalar_lea.vmem %s0, 272
  %v484 = vld [vmem:[%s483] sm:$0xff]
  %s485 = scalar_lea.vmem %s1, 2184
  %s486 = scalar_lea.vmem %s0, 4384
  %v487 = vld [vmem:[%s486] sm:$0xff]
  %s488 = scalar_lea.vmem %s1, 144
  %s489 = scalar_lea.vmem %s0, 2848
  %v490 = vld [vmem:[%s489] sm:$0xff]
  %s491 = scalar_lea.vmem %s1, 912
  %s492 = scalar_lea.vmem %s0, 1312
  %v493 = vld [vmem:[%s492] sm:$0xff]
  %s494 = scalar_lea.vmem %s1, 1680
  %s495 = scalar_lea.vmem %s0, 3872
  %v496 = vld [vmem:[%s495] sm:$0xff]
  %s497 = scalar_lea.vmem %s1, 400
  %s498 = scalar_lea.vmem %s0, 2336
  %v499 = vld [vmem:[%s498] sm:$0xff]
  %s500 = scalar_lea.vmem %s1, 1168
  %s501 = scalar_lea.vmem %s0, 800
  %v502 = vld [vmem:[%s501] sm:$0xff]
  %s503 = scalar_lea.vmem %s1, 1936
  %s504 = scalar_lea.vmem %s0, 3360
  %v505 = vld [vmem:[%s504] sm:$0xff]
  %s506 = scalar_lea.vmem %s1, 656
  %s507 = scalar_lea.vmem %s0, 1824
  %v508 = vld [vmem:[%s507] sm:$0xff]
  %s509 = scalar_lea.vmem %s1, 1424
  %s510 = scalar_lea.vmem %s0, 288
  %v511 = vld [vmem:[%s510] sm:$0xff]
  %s512 = scalar_lea.vmem %s1, 2192
  %s513 = scalar_lea.vmem %s0, 4400
  %v514 = vld [vmem:[%s513] sm:$0xff]
  %s515 = scalar_lea.vmem %s1, 152
  %s516 = scalar_lea.vmem %s0, 2864
  %v517 = vld [vmem:[%s516] sm:$0xff]
  %s518 = scalar_lea.vmem %s1, 920
  %s519 = scalar_lea.vmem %s0, 1328
  %v520 = vld [vmem:[%s519] sm:$0xff]
  %s521 = scalar_lea.vmem %s1, 1688
  %s522 = scalar_lea.vmem %s0, 3888
  %v523 = vld [vmem:[%s522] sm:$0xff]
  %s524 = scalar_lea.vmem %s1, 408
  %s525 = scalar_lea.vmem %s0, 2352
  %v526 = vld [vmem:[%s525] sm:$0xff]
  %s527 = scalar_lea.vmem %s1, 1176
  %s528 = scalar_lea.vmem %s0, 816
  %v529 = vld [vmem:[%s528] sm:$0xff]
  %s530 = scalar_lea.vmem %s1, 1944
  %s531 = scalar_lea.vmem %s0, 3376
  %v532 = vld [vmem:[%s531] sm:$0xff]
  %s533 = scalar_lea.vmem %s1, 664
  %s534 = scalar_lea.vmem %s0, 1840
  %v535 = vld [vmem:[%s534] sm:$0xff]
  %s536 = scalar_lea.vmem %s1, 1432
  %s537 = scalar_lea.vmem %s0, 304
  %v538 = vld [vmem:[%s537] sm:$0xff]
  %s539 = scalar_lea.vmem %s1, 2200
  %s540 = scalar_lea.vmem %s0, 4416
  %v541 = vld [vmem:[%s540] sm:$0xff]
  %s542 = scalar_lea.vmem %s1, 160
  %s543 = scalar_lea.vmem %s0, 2880
  %v544 = vld [vmem:[%s543] sm:$0xff]
  %s545 = scalar_lea.vmem %s1, 928
  %s546 = scalar_lea.vmem %s0, 1344
  %v547 = vld [vmem:[%s546] sm:$0xff]
  %s548 = scalar_lea.vmem %s1, 1696
  %s549 = scalar_lea.vmem %s0, 3904
  %v550 = vld [vmem:[%s549] sm:$0xff]
  %s551 = scalar_lea.vmem %s1, 416
  %s552 = scalar_lea.vmem %s0, 2368
  %v553 = vld [vmem:[%s552] sm:$0xff]
  %s554 = scalar_lea.vmem %s1, 1184
  %s555 = scalar_lea.vmem %s0, 832
  %v556 = vld [vmem:[%s555] sm:$0xff]
  %s557 = scalar_lea.vmem %s1, 1952
  %s558 = scalar_lea.vmem %s0, 3392
  %v559 = vld [vmem:[%s558] sm:$0xff]
  %s560 = scalar_lea.vmem %s1, 672
  %s561 = scalar_lea.vmem %s0, 1856
  %v562 = vld [vmem:[%s561] sm:$0xff]
  %s563 = scalar_lea.vmem %s1, 1440
  %s564 = scalar_lea.vmem %s0, 320
  %v565 = vld [vmem:[%s564] sm:$0xff]
  %s566 = scalar_lea.vmem %s1, 2208
  %s567 = scalar_lea.vmem %s0, 4432
  %v568 = vld [vmem:[%s567] sm:$0xff]
  %s569 = scalar_lea.vmem %s1, 168
  %s570 = scalar_lea.vmem %s0, 2896
  %v571 = vld [vmem:[%s570] sm:$0xff]
  %s572 = scalar_lea.vmem %s1, 936
  %s573 = scalar_lea.vmem %s0, 1360
  %v574 = vld [vmem:[%s573] sm:$0xff]
  %s575 = scalar_lea.vmem %s1, 1704
  %s576 = scalar_lea.vmem %s0, 3920
  %v577 = vld [vmem:[%s576] sm:$0xff]
  %s578 = scalar_lea.vmem %s1, 424
  %s579 = scalar_lea.vmem %s0, 2384
  %v580 = vld [vmem:[%s579] sm:$0xff]
  %s581 = scalar_lea.vmem %s1, 1192
  %s582 = scalar_lea.vmem %s0, 848
  %v583 = vld [vmem:[%s582] sm:$0xff]
  %s584 = scalar_lea.vmem %s1, 1960
  %s585 = scalar_lea.vmem %s0, 3408
  %v586 = vld [vmem:[%s585] sm:$0xff]
  %s587 = scalar_lea.vmem %s1, 680
  %s588 = scalar_lea.vmem %s0, 1872
  %v589 = vld [vmem:[%s588] sm:$0xff]
  %s590 = scalar_lea.vmem %s1, 1448
  %s591 = scalar_lea.vmem %s0, 336
  %v592 = vld [vmem:[%s591] sm:$0xff]
  %s593 = scalar_lea.vmem %s1, 2216
  %s594 = scalar_lea.vmem %s0, 4448
  %v595 = vld [vmem:[%s594] sm:$0xff]
  %s596 = scalar_lea.vmem %s1, 176
  %s597 = scalar_lea.vmem %s0, 2912
  %v598 = vld [vmem:[%s597] sm:$0xff]
  %s599 = scalar_lea.vmem %s1, 944
  %s600 = scalar_lea.vmem %s0, 1376
  %v601 = vld [vmem:[%s600] sm:$0xff]
  %s602 = scalar_lea.vmem %s1, 1712
  %s603 = scalar_lea.vmem %s0, 3936
  %v604 = vld [vmem:[%s603] sm:$0xff]
  %s605 = scalar_lea.vmem %s1, 432
  %s606 = scalar_lea.vmem %s0, 2400
  %v607 = vld [vmem:[%s606] sm:$0xff]
  %s608 = scalar_lea.vmem %s1, 1200
  %s609 = scalar_lea.vmem %s0, 864
  %v610 = vld [vmem:[%s609] sm:$0xff]
  %s611 = scalar_lea.vmem %s1, 1968
  %s612 = scalar_lea.vmem %s0, 3424
  %v613 = vld [vmem:[%s612] sm:$0xff]
  %s614 = scalar_lea.vmem %s1, 688
  %s615 = scalar_lea.vmem %s0, 1888
  %v616 = vld [vmem:[%s615] sm:$0xff]
  %s617 = scalar_lea.vmem %s1, 1456
  %s618 = scalar_lea.vmem %s0, 352
  %v619 = vld [vmem:[%s618] sm:$0xff]
  %s620 = scalar_lea.vmem %s1, 2224
  %s621 = scalar_lea.vmem %s0, 4464
  %v622 = vld [vmem:[%s621] sm:$0xff]
  %s623 = scalar_lea.vmem %s1, 184
  %s624 = scalar_lea.vmem %s0, 2928
  %v625 = vld [vmem:[%s624] sm:$0xff]
  %s626 = scalar_lea.vmem %s1, 952
  %s627 = scalar_lea.vmem %s0, 1392
  %v628 = vld [vmem:[%s627] sm:$0xff]
  %s629 = scalar_lea.vmem %s1, 1720
  %s630 = scalar_lea.vmem %s0, 3952
  %v631 = vld [vmem:[%s630] sm:$0xff]
  %s632 = scalar_lea.vmem %s1, 440
  %s633 = scalar_lea.vmem %s0, 2416
  %v634 = vld [vmem:[%s633] sm:$0xff]
  %s635 = scalar_lea.vmem %s1, 1208
  %s636 = scalar_lea.vmem %s0, 880
  %v637 = vld [vmem:[%s636] sm:$0xff]
  %s638 = scalar_lea.vmem %s1, 1976
  %s639 = scalar_lea.vmem %s0, 3440
  %v640 = vld [vmem:[%s639] sm:$0xff]
  %s641 = scalar_lea.vmem %s1, 696
  %s642 = scalar_lea.vmem %s0, 1904
  %v643 = vld [vmem:[%s642] sm:$0xff]
  %s644 = scalar_lea.vmem %s1, 1464
  %s645 = scalar_lea.vmem %s0, 368
  %v646 = vld [vmem:[%s645] sm:$0xff]
  %s647 = scalar_lea.vmem %s1, 2232
  %s648 = scalar_lea.vmem %s0, 4480
  %v649 = vld [vmem:[%s648] sm:$0xff]
  %s650 = scalar_lea.vmem %s1, 192
  %s651 = scalar_lea.vmem %s0, 2944
  %v652 = vld [vmem:[%s651] sm:$0xff]
  %s653 = scalar_lea.vmem %s1, 960
  %s654 = scalar_lea.vmem %s0, 1408
  %v655 = vld [vmem:[%s654] sm:$0xff]
  %s656 = scalar_lea.vmem %s1, 1728
  %s657 = scalar_lea.vmem %s0, 3968
  %v658 = vld [vmem:[%s657] sm:$0xff]
  %s659 = scalar_lea.vmem %s1, 448
  %s660 = scalar_lea.vmem %s0, 2432
  %v661 = vld [vmem:[%s660] sm:$0xff]
  %s662 = scalar_lea.vmem %s1, 1216
  %s663 = scalar_lea.vmem %s0, 896
  %v664 = vld [vmem:[%s663] sm:$0xff]
  %s665 = scalar_lea.vmem %s1, 1984
  %s666 = scalar_lea.vmem %s0, 3456
  %v667 = vld [vmem:[%s666] sm:$0xff]
  %s668 = scalar_lea.vmem %s1, 704
  %s669 = scalar_lea.vmem %s0, 1920
  %v670 = vld [vmem:[%s669] sm:$0xff]
  %s671 = scalar_lea.vmem %s1, 1472
  %s672 = scalar_lea.vmem %s0, 384
  %v673 = vld [vmem:[%s672] sm:$0xff]
  %s674 = scalar_lea.vmem %s1, 2240
  %s675 = scalar_lea.vmem %s0, 4496
  %v676 = vld [vmem:[%s675] sm:$0xff]
  %s677 = scalar_lea.vmem %s1, 200
  %s678 = scalar_lea.vmem %s0, 2960
  %v679 = vld [vmem:[%s678] sm:$0xff]
  %s680 = scalar_lea.vmem %s1, 968
  %s681 = scalar_lea.vmem %s0, 1424
  %v682 = vld [vmem:[%s681] sm:$0xff]
  %s683 = scalar_lea.vmem %s1, 1736
  %s684 = scalar_lea.vmem %s0, 3984
  %v685 = vld [vmem:[%s684] sm:$0xff]
  %s686 = scalar_lea.vmem %s1, 456
  %s687 = scalar_lea.vmem %s0, 2448
  %v688 = vld [vmem:[%s687] sm:$0xff]
  %s689 = scalar_lea.vmem %s1, 1224
  %s690 = scalar_lea.vmem %s0, 912
  %v691 = vld [vmem:[%s690] sm:$0xff]
  %s692 = scalar_lea.vmem %s1, 1992
  %s693 = scalar_lea.vmem %s0, 3472
  %v694 = vld [vmem:[%s693] sm:$0xff]
  %s695 = scalar_lea.vmem %s1, 712
  %s696 = scalar_lea.vmem %s0, 1936
  %v697 = vld [vmem:[%s696] sm:$0xff]
  %s698 = scalar_lea.vmem %s1, 1480
  %s699 = scalar_lea.vmem %s0, 400
  %v700 = vld [vmem:[%s699] sm:$0xff]
  %s701 = scalar_lea.vmem %s1, 2248
  %s702 = scalar_lea.vmem %s0, 4512
  %v703 = vld [vmem:[%s702] sm:$0xff]
  %s704 = scalar_lea.vmem %s1, 208
  %s705 = scalar_lea.vmem %s0, 2976
  %v706 = vld [vmem:[%s705] sm:$0xff]
  %s707 = scalar_lea.vmem %s1, 976
  %s708 = scalar_lea.vmem %s0, 1440
  %v709 = vld [vmem:[%s708] sm:$0xff]
  %s710 = scalar_lea.vmem %s1, 1744
  %s711 = scalar_lea.vmem %s0, 4000
  %v712 = vld [vmem:[%s711] sm:$0xff]
  %s713 = scalar_lea.vmem %s1, 464
  %s714 = scalar_lea.vmem %s0, 2464
  %v715 = vld [vmem:[%s714] sm:$0xff]
  %s716 = scalar_lea.vmem %s1, 1232
  %s717 = scalar_lea.vmem %s0, 928
  %v718 = vld [vmem:[%s717] sm:$0xff]
  %s719 = scalar_lea.vmem %s1, 2000
  %s720 = scalar_lea.vmem %s0, 3488
  %v721 = vld [vmem:[%s720] sm:$0xff]
  %s722 = scalar_lea.vmem %s1, 720
  %s723 = scalar_lea.vmem %s0, 1952
  %v724 = vld [vmem:[%s723] sm:$0xff]
  %s725 = scalar_lea.vmem %s1, 1488
  %s726 = scalar_lea.vmem %s0, 416
  %v727 = vld [vmem:[%s726] sm:$0xff]
  %s728 = scalar_lea.vmem %s1, 2256
  %s729 = scalar_lea.vmem %s0, 4528
  %v730 = vld [vmem:[%s729] sm:$0xff]
  %s731 = scalar_lea.vmem %s1, 216
  %s732 = scalar_lea.vmem %s0, 2992
  %v733 = vld [vmem:[%s732] sm:$0xff]
  %s734 = scalar_lea.vmem %s1, 984
  %s735 = scalar_lea.vmem %s0, 1456
  %v736 = vld [vmem:[%s735] sm:$0xff]
  %s737 = scalar_lea.vmem %s1, 1752
  %s738 = scalar_lea.vmem %s0, 4016
  %v739 = vld [vmem:[%s738] sm:$0xff]
  %s740 = scalar_lea.vmem %s1, 472
  %s741 = scalar_lea.vmem %s0, 2480
  %v742 = vld [vmem:[%s741] sm:$0xff]
  %s743 = scalar_lea.vmem %s1, 1240
  %s744 = scalar_lea.vmem %s0, 944
  %v745 = vld [vmem:[%s744] sm:$0xff]
  %s746 = scalar_lea.vmem %s1, 2008
  %s747 = scalar_lea.vmem %s0, 3504
  %v748 = vld [vmem:[%s747] sm:$0xff]
  %s749 = scalar_lea.vmem %s1, 728
  %s750 = scalar_lea.vmem %s0, 1968
  %v751 = vld [vmem:[%s750] sm:$0xff]
  %s752 = scalar_lea.vmem %s1, 1496
  %s753 = scalar_lea.vmem %s0, 432
  %v754 = vld [vmem:[%s753] sm:$0xff]
  %s755 = scalar_lea.vmem %s1, 2264
  %s756 = scalar_lea.vmem %s0, 4544
  %v757 = vld [vmem:[%s756] sm:$0xff]
  %s758 = scalar_lea.vmem %s1, 224
  %s759 = scalar_lea.vmem %s0, 3008
  %v760 = vld [vmem:[%s759] sm:$0xff]
  %s761 = scalar_lea.vmem %s1, 992
  %s762 = scalar_lea.vmem %s0, 1472
  %v763 = vld [vmem:[%s762] sm:$0xff]
  %s764 = scalar_lea.vmem %s1, 1760
  %s765 = scalar_lea.vmem %s0, 4032
  %v766 = vld [vmem:[%s765] sm:$0xff]
  %s767 = scalar_lea.vmem %s1, 480
  %s768 = scalar_lea.vmem %s0, 2496
  %v769 = vld [vmem:[%s768] sm:$0xff]
  %s770 = scalar_lea.vmem %s1, 1248
  %s771 = scalar_lea.vmem %s0, 960
  %v772 = vld [vmem:[%s771] sm:$0xff]
  %s773 = scalar_lea.vmem %s1, 2016
  %s774 = scalar_lea.vmem %s0, 3520
  %v775 = vld [vmem:[%s774] sm:$0xff]
  %s776 = scalar_lea.vmem %s1, 736
  %s777 = scalar_lea.vmem %s0, 1984
  %v778 = vld [vmem:[%s777] sm:$0xff]
  %s779 = scalar_lea.vmem %s1, 1504
  %s780 = scalar_lea.vmem %s0, 448
  %v781 = vld [vmem:[%s780] sm:$0xff]
  %s782 = scalar_lea.vmem %s1, 2272
  %s783 = scalar_lea.vmem %s0, 4560
  %v784 = vld [vmem:[%s783] sm:$0xff]
  %s785 = scalar_lea.vmem %s1, 232
  %s786 = scalar_lea.vmem %s0, 3024
  %v787 = vld [vmem:[%s786] sm:$0xff]
  %s788 = scalar_lea.vmem %s1, 1000
  %s789 = scalar_lea.vmem %s0, 1488
  %v790 = vld [vmem:[%s789] sm:$0xff]
  %s791 = scalar_lea.vmem %s1, 1768
  %s792 = scalar_lea.vmem %s0, 4048
  %v793 = vld [vmem:[%s792] sm:$0xff]
  %s794 = scalar_lea.vmem %s1, 488
  %s795 = scalar_lea.vmem %s0, 2512
  %v796 = vld [vmem:[%s795] sm:$0xff]
  %s797 = scalar_lea.vmem %s1, 1256
  %s798 = scalar_lea.vmem %s0, 976
  %v799 = vld [vmem:[%s798] sm:$0xff]
  %s800 = scalar_lea.vmem %s1, 2024
  %s801 = scalar_lea.vmem %s0, 3536
  %v802 = vld [vmem:[%s801] sm:$0xff]
  %s803 = scalar_lea.vmem %s1, 744
  %s804 = scalar_lea.vmem %s0, 2000
  %v805 = vld [vmem:[%s804] sm:$0xff]
  %s806 = scalar_lea.vmem %s1, 1512
  %s807 = scalar_lea.vmem %s0, 464
  %v808 = vld [vmem:[%s807] sm:$0xff]
  %s809 = scalar_lea.vmem %s1, 2280
  %s810 = scalar_lea.vmem %s0, 4576
  %v811 = vld [vmem:[%s810] sm:$0xff]
  %s812 = scalar_lea.vmem %s1, 240
  %s813 = scalar_lea.vmem %s0, 3040
  %v814 = vld [vmem:[%s813] sm:$0xff]
  %s815 = scalar_lea.vmem %s1, 1008
  %s816 = scalar_lea.vmem %s0, 1504
  %v817 = vld [vmem:[%s816] sm:$0xff]
  %s818 = scalar_lea.vmem %s1, 1776
  %s819 = scalar_lea.vmem %s0, 4064
  %v820 = vld [vmem:[%s819] sm:$0xff]
  %s821 = scalar_lea.vmem %s1, 496
  %s822 = scalar_lea.vmem %s0, 2528
  %v823 = vld [vmem:[%s822] sm:$0xff]
  %s824 = scalar_lea.vmem %s1, 1264
  %s825 = scalar_lea.vmem %s0, 992
  %v826 = vld [vmem:[%s825] sm:$0xff]
  %s827 = scalar_lea.vmem %s1, 2032
  %s828 = scalar_lea.vmem %s0, 3552
  %v829 = vld [vmem:[%s828] sm:$0xff]
  %s830 = scalar_lea.vmem %s1, 752
  %s831 = scalar_lea.vmem %s0, 2016
  %v832 = vld [vmem:[%s831] sm:$0xff]
  %s833 = scalar_lea.vmem %s1, 1520
  %s834 = scalar_lea.vmem %s0, 480
  %v835 = vld [vmem:[%s834] sm:$0xff]
  %s836 = scalar_lea.vmem %s1, 2288
  %s837 = scalar_lea.vmem %s0, 4592
  %v838 = vld [vmem:[%s837] sm:$0xff]
  %s839 = scalar_lea.vmem %s1, 248
  %s840 = scalar_lea.vmem %s0, 3056
  %v841 = vld [vmem:[%s840] sm:$0xff]
  %s842 = scalar_lea.vmem %s1, 1016
  %s843 = scalar_lea.vmem %s0, 1520
  %v844 = vld [vmem:[%s843] sm:$0xff]
  %s845 = scalar_lea.vmem %s1, 1784
  %s846 = scalar_lea.vmem %s0, 4080
  %v847 = vld [vmem:[%s846] sm:$0xff]
  %s848 = scalar_lea.vmem %s1, 504
  %s849 = scalar_lea.vmem %s0, 2544
  %v850 = vld [vmem:[%s849] sm:$0xff]
  %s851 = scalar_lea.vmem %s1, 1272
  %s852 = scalar_lea.vmem %s0, 1008
  %v853 = vld [vmem:[%s852] sm:$0xff]
  %s854 = scalar_lea.vmem %s1, 2040
  %s855 = scalar_lea.vmem %s0, 3568
  %v856 = vld [vmem:[%s855] sm:$0xff]
  %s857 = scalar_lea.vmem %s1, 760
  %s858 = scalar_lea.vmem %s0, 2032
  %v859 = vld [vmem:[%s858] sm:$0xff]
  %s860 = scalar_lea.vmem %s1, 1528
  %s861 = scalar_lea.vmem %s0, 496
  %v862 = vld [vmem:[%s861] sm:$0xff]
  %s863 = scalar_lea.vmem %s1, 2296
  %s864 = scalar_lea.vmem %s0, 4104
  %v865 = vld [vmem:[%s864] sm:$0xff]
  %s866 = scalar_lea.vmem %s1, 4
  %s867 = scalar_lea.vmem %s866, 4294967292
  %v868 = vpack.c.bf16 %v865, %v3
  %869 = vst [vmem:[%s867] sm:$0xff] %v868
  %s870 = scalar_lea.vmem %s0, 2568
  %v871 = vld [vmem:[%s870] sm:$0xff]
  %s872 = scalar_lea.vmem %s1, 772
  %s873 = scalar_lea.vmem %s872, 4294967292
  %v874 = vpack.c.bf16 %v871, %v5
  %875 = vst [vmem:[%s873] sm:$0xff] %v874
  %s876 = scalar_lea.vmem %s0, 1032
  %v877 = vld [vmem:[%s876] sm:$0xff]
  %s878 = scalar_lea.vmem %s1, 1540
  %s879 = scalar_lea.vmem %s878, 4294967292
  %v880 = vpack.c.bf16 %v877, %v8
  %881 = vst [vmem:[%s879] sm:$0xff] %v880
  %s882 = scalar_lea.vmem %s0, 3592
  %v883 = vld [vmem:[%s882] sm:$0xff]
  %s884 = scalar_lea.vmem %s1, 260
  %s885 = scalar_lea.vmem %s884, 4294967292
  %v886 = vpack.c.bf16 %v883, %v11
  %887 = vst [vmem:[%s885] sm:$0xff] %v886
  %s888 = scalar_lea.vmem %s0, 2056
  %v889 = vld [vmem:[%s888] sm:$0xff]
  %s890 = scalar_lea.vmem %s1, 1028
  %s891 = scalar_lea.vmem %s890, 4294967292
  %v892 = vpack.c.bf16 %v889, %v14
  %893 = vst [vmem:[%s891] sm:$0xff] %v892
  %s894 = scalar_lea.vmem %s0, 520
  %v895 = vld [vmem:[%s894] sm:$0xff]
  %s896 = scalar_lea.vmem %s1, 1796
  %s897 = scalar_lea.vmem %s896, 4294967292
  %v898 = vpack.c.bf16 %v895, %v17
  %899 = vst [vmem:[%s897] sm:$0xff] %v898
  %s900 = scalar_lea.vmem %s0, 3080
  %v901 = vld [vmem:[%s900] sm:$0xff]
  %s902 = scalar_lea.vmem %s1, 516
  %s903 = scalar_lea.vmem %s902, 4294967292
  %v904 = vpack.c.bf16 %v901, %v20
  %905 = vst [vmem:[%s903] sm:$0xff] %v904
  %s906 = scalar_lea.vmem %s0, 1544
  %v907 = vld [vmem:[%s906] sm:$0xff]
  %s908 = scalar_lea.vmem %s1, 1284
  %s909 = scalar_lea.vmem %s908, 4294967292
  %v910 = vpack.c.bf16 %v907, %v23
  %911 = vst [vmem:[%s909] sm:$0xff] %v910
  %s912 = scalar_lea.vmem %s0, 8
  %v913 = vld [vmem:[%s912] sm:$0xff]
  %s914 = scalar_lea.vmem %s1, 2052
  %s915 = scalar_lea.vmem %s914, 4294967292
  %v916 = vpack.c.bf16 %v913, %v25
  %917 = vst [vmem:[%s915] sm:$0xff] %v916
  %s918 = scalar_lea.vmem %s0, 4120
  %v919 = vld [vmem:[%s918] sm:$0xff]
  %s920 = scalar_lea.vmem %s1, 12
  %s921 = scalar_lea.vmem %s920, 4294967292
  %v922 = vpack.c.bf16 %v919, %v28
  %923 = vst [vmem:[%s921] sm:$0xff] %v922
  %s924 = scalar_lea.vmem %s0, 2584
  %v925 = vld [vmem:[%s924] sm:$0xff]
  %s926 = scalar_lea.vmem %s1, 780
  %s927 = scalar_lea.vmem %s926, 4294967292
  %v928 = vpack.c.bf16 %v925, %v31
  %929 = vst [vmem:[%s927] sm:$0xff] %v928
  %s930 = scalar_lea.vmem %s0, 1048
  %v931 = vld [vmem:[%s930] sm:$0xff]
  %s932 = scalar_lea.vmem %s1, 1548
  %s933 = scalar_lea.vmem %s932, 4294967292
  %v934 = vpack.c.bf16 %v931, %v34
  %935 = vst [vmem:[%s933] sm:$0xff] %v934
  %s936 = scalar_lea.vmem %s0, 3608
  %v937 = vld [vmem:[%s936] sm:$0xff]
  %s938 = scalar_lea.vmem %s1, 268
  %s939 = scalar_lea.vmem %s938, 4294967292
  %v940 = vpack.c.bf16 %v937, %v37
  %941 = vst [vmem:[%s939] sm:$0xff] %v940
  %s942 = scalar_lea.vmem %s0, 2072
  %v943 = vld [vmem:[%s942] sm:$0xff]
  %s944 = scalar_lea.vmem %s1, 1036
  %s945 = scalar_lea.vmem %s944, 4294967292
  %v946 = vpack.c.bf16 %v943, %v40
  %947 = vst [vmem:[%s945] sm:$0xff] %v946
  %s948 = scalar_lea.vmem %s0, 536
  %v949 = vld [vmem:[%s948] sm:$0xff]
  %s950 = scalar_lea.vmem %s1, 1804
  %s951 = scalar_lea.vmem %s950, 4294967292
  %v952 = vpack.c.bf16 %v949, %v43
  %953 = vst [vmem:[%s951] sm:$0xff] %v952
  %s954 = scalar_lea.vmem %s0, 3096
  %v955 = vld [vmem:[%s954] sm:$0xff]
  %s956 = scalar_lea.vmem %s1, 524
  %s957 = scalar_lea.vmem %s956, 4294967292
  %v958 = vpack.c.bf16 %v955, %v46
  %959 = vst [vmem:[%s957] sm:$0xff] %v958
  %s960 = scalar_lea.vmem %s0, 1560
  %v961 = vld [vmem:[%s960] sm:$0xff]
  %s962 = scalar_lea.vmem %s1, 1292
  %s963 = scalar_lea.vmem %s962, 4294967292
  %v964 = vpack.c.bf16 %v961, %v49
  %965 = vst [vmem:[%s963] sm:$0xff] %v964
  %s966 = scalar_lea.vmem %s0, 24
  %v967 = vld [vmem:[%s966] sm:$0xff]
  %s968 = scalar_lea.vmem %s1, 2060
  %s969 = scalar_lea.vmem %s968, 4294967292
  %v970 = vpack.c.bf16 %v967, %v52
  %971 = vst [vmem:[%s969] sm:$0xff] %v970
  %s972 = scalar_lea.vmem %s0, 4136
  %v973 = vld [vmem:[%s972] sm:$0xff]
  %s974 = scalar_lea.vmem %s1, 20
  %s975 = scalar_lea.vmem %s974, 4294967292
  %v976 = vpack.c.bf16 %v973, %v55
  %977 = vst [vmem:[%s975] sm:$0xff] %v976
  %s978 = scalar_lea.vmem %s0, 2600
  %v979 = vld [vmem:[%s978] sm:$0xff]
  %s980 = scalar_lea.vmem %s1, 788
  %s981 = scalar_lea.vmem %s980, 4294967292
  %v982 = vpack.c.bf16 %v979, %v58
  %983 = vst [vmem:[%s981] sm:$0xff] %v982
  %s984 = scalar_lea.vmem %s0, 1064
  %v985 = vld [vmem:[%s984] sm:$0xff]
  %s986 = scalar_lea.vmem %s1, 1556
  %s987 = scalar_lea.vmem %s986, 4294967292
  %v988 = vpack.c.bf16 %v985, %v61
  %989 = vst [vmem:[%s987] sm:$0xff] %v988
  %s990 = scalar_lea.vmem %s0, 3624
  %v991 = vld [vmem:[%s990] sm:$0xff]
  %s992 = scalar_lea.vmem %s1, 276
  %s993 = scalar_lea.vmem %s992, 4294967292
  %v994 = vpack.c.bf16 %v991, %v64
  %995 = vst [vmem:[%s993] sm:$0xff] %v994
  %s996 = scalar_lea.vmem %s0, 2088
  %v997 = vld [vmem:[%s996] sm:$0xff]
  %s998 = scalar_lea.vmem %s1, 1044
  %s999 = scalar_lea.vmem %s998, 4294967292
  %v1000 = vpack.c.bf16 %v997, %v67
  %1001 = vst [vmem:[%s999] sm:$0xff] %v1000
  %s1002 = scalar_lea.vmem %s0, 552
  %v1003 = vld [vmem:[%s1002] sm:$0xff]
  %s1004 = scalar_lea.vmem %s1, 1812
  %s1005 = scalar_lea.vmem %s1004, 4294967292
  %v1006 = vpack.c.bf16 %v1003, %v70
  %1007 = vst [vmem:[%s1005] sm:$0xff] %v1006
  %s1008 = scalar_lea.vmem %s0, 3112
  %v1009 = vld [vmem:[%s1008] sm:$0xff]
  %s1010 = scalar_lea.vmem %s1, 532
  %s1011 = scalar_lea.vmem %s1010, 4294967292
  %v1012 = vpack.c.bf16 %v1009, %v73
  %1013 = vst [vmem:[%s1011] sm:$0xff] %v1012
  %s1014 = scalar_lea.vmem %s0, 1576
  %v1015 = vld [vmem:[%s1014] sm:$0xff]
  %s1016 = scalar_lea.vmem %s1, 1300
  %s1017 = scalar_lea.vmem %s1016, 4294967292
  %v1018 = vpack.c.bf16 %v1015, %v76
  %1019 = vst [vmem:[%s1017] sm:$0xff] %v1018
  %s1020 = scalar_lea.vmem %s0, 40
  %v1021 = vld [vmem:[%s1020] sm:$0xff]
  %s1022 = scalar_lea.vmem %s1, 2068
  %s1023 = scalar_lea.vmem %s1022, 4294967292
  %v1024 = vpack.c.bf16 %v1021, %v79
  %1025 = vst [vmem:[%s1023] sm:$0xff] %v1024
  %s1026 = scalar_lea.vmem %s0, 4152
  %v1027 = vld [vmem:[%s1026] sm:$0xff]
  %s1028 = scalar_lea.vmem %s1, 28
  %s1029 = scalar_lea.vmem %s1028, 4294967292
  %v1030 = vpack.c.bf16 %v1027, %v82
  %1031 = vst [vmem:[%s1029] sm:$0xff] %v1030
  %s1032 = scalar_lea.vmem %s0, 2616
  %v1033 = vld [vmem:[%s1032] sm:$0xff]
  %s1034 = scalar_lea.vmem %s1, 796
  %s1035 = scalar_lea.vmem %s1034, 4294967292
  %v1036 = vpack.c.bf16 %v1033, %v85
  %1037 = vst [vmem:[%s1035] sm:$0xff] %v1036
  %s1038 = scalar_lea.vmem %s0, 1080
  %v1039 = vld [vmem:[%s1038] sm:$0xff]
  %s1040 = scalar_lea.vmem %s1, 1564
  %s1041 = scalar_lea.vmem %s1040, 4294967292
  %v1042 = vpack.c.bf16 %v1039, %v88
  %1043 = vst [vmem:[%s1041] sm:$0xff] %v1042
  %s1044 = scalar_lea.vmem %s0, 3640
  %v1045 = vld [vmem:[%s1044] sm:$0xff]
  %s1046 = scalar_lea.vmem %s1, 284
  %s1047 = scalar_lea.vmem %s1046, 4294967292
  %v1048 = vpack.c.bf16 %v1045, %v91
  %1049 = vst [vmem:[%s1047] sm:$0xff] %v1048
  %s1050 = scalar_lea.vmem %s0, 2104
  %v1051 = vld [vmem:[%s1050] sm:$0xff]
  %s1052 = scalar_lea.vmem %s1, 1052
  %s1053 = scalar_lea.vmem %s1052, 4294967292
  %v1054 = vpack.c.bf16 %v1051, %v94
  %1055 = vst [vmem:[%s1053] sm:$0xff] %v1054
  %s1056 = scalar_lea.vmem %s0, 568
  %v1057 = vld [vmem:[%s1056] sm:$0xff]
  %s1058 = scalar_lea.vmem %s1, 1820
  %s1059 = scalar_lea.vmem %s1058, 4294967292
  %v1060 = vpack.c.bf16 %v1057, %v97
  %1061 = vst [vmem:[%s1059] sm:$0xff] %v1060
  %s1062 = scalar_lea.vmem %s0, 3128
  %v1063 = vld [vmem:[%s1062] sm:$0xff]
  %s1064 = scalar_lea.vmem %s1, 540
  %s1065 = scalar_lea.vmem %s1064, 4294967292
  %v1066 = vpack.c.bf16 %v1063, %v100
  %1067 = vst [vmem:[%s1065] sm:$0xff] %v1066
  %s1068 = scalar_lea.vmem %s0, 1592
  %v1069 = vld [vmem:[%s1068] sm:$0xff]
  %s1070 = scalar_lea.vmem %s1, 1308
  %s1071 = scalar_lea.vmem %s1070, 4294967292
  %v1072 = vpack.c.bf16 %v1069, %v103
  %1073 = vst [vmem:[%s1071] sm:$0xff] %v1072
  %s1074 = scalar_lea.vmem %s0, 56
  %v1075 = vld [vmem:[%s1074] sm:$0xff]
  %s1076 = scalar_lea.vmem %s1, 2076
  %s1077 = scalar_lea.vmem %s1076, 4294967292
  %v1078 = vpack.c.bf16 %v1075, %v106
  %1079 = vst [vmem:[%s1077] sm:$0xff] %v1078
  %s1080 = scalar_lea.vmem %s0, 4168
  %v1081 = vld [vmem:[%s1080] sm:$0xff]
  %s1082 = scalar_lea.vmem %s1, 36
  %s1083 = scalar_lea.vmem %s1082, 4294967292
  %v1084 = vpack.c.bf16 %v1081, %v109
  %1085 = vst [vmem:[%s1083] sm:$0xff] %v1084
  %s1086 = scalar_lea.vmem %s0, 2632
  %v1087 = vld [vmem:[%s1086] sm:$0xff]
  %s1088 = scalar_lea.vmem %s1, 804
  %s1089 = scalar_lea.vmem %s1088, 4294967292
  %v1090 = vpack.c.bf16 %v1087, %v112
  %1091 = vst [vmem:[%s1089] sm:$0xff] %v1090
  %s1092 = scalar_lea.vmem %s0, 1096
  %v1093 = vld [vmem:[%s1092] sm:$0xff]
  %s1094 = scalar_lea.vmem %s1, 1572
  %s1095 = scalar_lea.vmem %s1094, 4294967292
  %v1096 = vpack.c.bf16 %v1093, %v115
  %1097 = vst [vmem:[%s1095] sm:$0xff] %v1096
  %s1098 = scalar_lea.vmem %s0, 3656
  %v1099 = vld [vmem:[%s1098] sm:$0xff]
  %s1100 = scalar_lea.vmem %s1, 292
  %s1101 = scalar_lea.vmem %s1100, 4294967292
  %v1102 = vpack.c.bf16 %v1099, %v118
  %1103 = vst [vmem:[%s1101] sm:$0xff] %v1102
  %s1104 = scalar_lea.vmem %s0, 2120
  %v1105 = vld [vmem:[%s1104] sm:$0xff]
  %s1106 = scalar_lea.vmem %s1, 1060
  %s1107 = scalar_lea.vmem %s1106, 4294967292
  %v1108 = vpack.c.bf16 %v1105, %v121
  %1109 = vst [vmem:[%s1107] sm:$0xff] %v1108
  %s1110 = scalar_lea.vmem %s0, 584
  %v1111 = vld [vmem:[%s1110] sm:$0xff]
  %s1112 = scalar_lea.vmem %s1, 1828
  %s1113 = scalar_lea.vmem %s1112, 4294967292
  %v1114 = vpack.c.bf16 %v1111, %v124
  %1115 = vst [vmem:[%s1113] sm:$0xff] %v1114
  %s1116 = scalar_lea.vmem %s0, 3144
  %v1117 = vld [vmem:[%s1116] sm:$0xff]
  %s1118 = scalar_lea.vmem %s1, 548
  %s1119 = scalar_lea.vmem %s1118, 4294967292
  %v1120 = vpack.c.bf16 %v1117, %v127
  %1121 = vst [vmem:[%s1119] sm:$0xff] %v1120
  %s1122 = scalar_lea.vmem %s0, 1608
  %v1123 = vld [vmem:[%s1122] sm:$0xff]
  %s1124 = scalar_lea.vmem %s1, 1316
  %s1125 = scalar_lea.vmem %s1124, 4294967292
  %v1126 = vpack.c.bf16 %v1123, %v130
  %1127 = vst [vmem:[%s1125] sm:$0xff] %v1126
  %s1128 = scalar_lea.vmem %s0, 72
  %v1129 = vld [vmem:[%s1128] sm:$0xff]
  %s1130 = scalar_lea.vmem %s1, 2084
  %s1131 = scalar_lea.vmem %s1130, 4294967292
  %v1132 = vpack.c.bf16 %v1129, %v133
  %1133 = vst [vmem:[%s1131] sm:$0xff] %v1132
  %s1134 = scalar_lea.vmem %s0, 4184
  %v1135 = vld [vmem:[%s1134] sm:$0xff]
  %s1136 = scalar_lea.vmem %s1, 44
  %s1137 = scalar_lea.vmem %s1136, 4294967292
  %v1138 = vpack.c.bf16 %v1135, %v136
  %1139 = vst [vmem:[%s1137] sm:$0xff] %v1138
  %s1140 = scalar_lea.vmem %s0, 2648
  %v1141 = vld [vmem:[%s1140] sm:$0xff]
  %s1142 = scalar_lea.vmem %s1, 812
  %s1143 = scalar_lea.vmem %s1142, 4294967292
  %v1144 = vpack.c.bf16 %v1141, %v139
  %1145 = vst [vmem:[%s1143] sm:$0xff] %v1144
  %s1146 = scalar_lea.vmem %s0, 1112
  %v1147 = vld [vmem:[%s1146] sm:$0xff]
  %s1148 = scalar_lea.vmem %s1, 1580
  %s1149 = scalar_lea.vmem %s1148, 4294967292
  %v1150 = vpack.c.bf16 %v1147, %v142
  %1151 = vst [vmem:[%s1149] sm:$0xff] %v1150
  %s1152 = scalar_lea.vmem %s0, 3672
  %v1153 = vld [vmem:[%s1152] sm:$0xff]
  %s1154 = scalar_lea.vmem %s1, 300
  %s1155 = scalar_lea.vmem %s1154, 4294967292
  %v1156 = vpack.c.bf16 %v1153, %v145
  %1157 = vst [vmem:[%s1155] sm:$0xff] %v1156
  %s1158 = scalar_lea.vmem %s0, 2136
  %v1159 = vld [vmem:[%s1158] sm:$0xff]
  %s1160 = scalar_lea.vmem %s1, 1068
  %s1161 = scalar_lea.vmem %s1160, 4294967292
  %v1162 = vpack.c.bf16 %v1159, %v148
  %1163 = vst [vmem:[%s1161] sm:$0xff] %v1162
  %s1164 = scalar_lea.vmem %s0, 600
  %v1165 = vld [vmem:[%s1164] sm:$0xff]
  %s1166 = scalar_lea.vmem %s1, 1836
  %s1167 = scalar_lea.vmem %s1166, 4294967292
  %v1168 = vpack.c.bf16 %v1165, %v151
  %1169 = vst [vmem:[%s1167] sm:$0xff] %v1168
  %s1170 = scalar_lea.vmem %s0, 3160
  %v1171 = vld [vmem:[%s1170] sm:$0xff]
  %s1172 = scalar_lea.vmem %s1, 556
  %s1173 = scalar_lea.vmem %s1172, 4294967292
  %v1174 = vpack.c.bf16 %v1171, %v154
  %1175 = vst [vmem:[%s1173] sm:$0xff] %v1174
  %s1176 = scalar_lea.vmem %s0, 1624
  %v1177 = vld [vmem:[%s1176] sm:$0xff]
  %s1178 = scalar_lea.vmem %s1, 1324
  %s1179 = scalar_lea.vmem %s1178, 4294967292
  %v1180 = vpack.c.bf16 %v1177, %v157
  %1181 = vst [vmem:[%s1179] sm:$0xff] %v1180
  %s1182 = scalar_lea.vmem %s0, 88
  %v1183 = vld [vmem:[%s1182] sm:$0xff]
  %s1184 = scalar_lea.vmem %s1, 2092
  %s1185 = scalar_lea.vmem %s1184, 4294967292
  %v1186 = vpack.c.bf16 %v1183, %v160
  %1187 = vst [vmem:[%s1185] sm:$0xff] %v1186
  %s1188 = scalar_lea.vmem %s0, 4200
  %v1189 = vld [vmem:[%s1188] sm:$0xff]
  %s1190 = scalar_lea.vmem %s1, 52
  %s1191 = scalar_lea.vmem %s1190, 4294967292
  %v1192 = vpack.c.bf16 %v1189, %v163
  %1193 = vst [vmem:[%s1191] sm:$0xff] %v1192
  %s1194 = scalar_lea.vmem %s0, 2664
  %v1195 = vld [vmem:[%s1194] sm:$0xff]
  %s1196 = scalar_lea.vmem %s1, 820
  %s1197 = scalar_lea.vmem %s1196, 4294967292
  %v1198 = vpack.c.bf16 %v1195, %v166
  %1199 = vst [vmem:[%s1197] sm:$0xff] %v1198
  %s1200 = scalar_lea.vmem %s0, 1128
  %v1201 = vld [vmem:[%s1200] sm:$0xff]
  %s1202 = scalar_lea.vmem %s1, 1588
  %s1203 = scalar_lea.vmem %s1202, 4294967292
  %v1204 = vpack.c.bf16 %v1201, %v169
  %1205 = vst [vmem:[%s1203] sm:$0xff] %v1204
  %s1206 = scalar_lea.vmem %s0, 3688
  %v1207 = vld [vmem:[%s1206] sm:$0xff]
  %s1208 = scalar_lea.vmem %s1, 308
  %s1209 = scalar_lea.vmem %s1208, 4294967292
  %v1210 = vpack.c.bf16 %v1207, %v172
  %1211 = vst [vmem:[%s1209] sm:$0xff] %v1210
  %s1212 = scalar_lea.vmem %s0, 2152
  %v1213 = vld [vmem:[%s1212] sm:$0xff]
  %s1214 = scalar_lea.vmem %s1, 1076
  %s1215 = scalar_lea.vmem %s1214, 4294967292
  %v1216 = vpack.c.bf16 %v1213, %v175
  %1217 = vst [vmem:[%s1215] sm:$0xff] %v1216
  %s1218 = scalar_lea.vmem %s0, 616
  %v1219 = vld [vmem:[%s1218] sm:$0xff]
  %s1220 = scalar_lea.vmem %s1, 1844
  %s1221 = scalar_lea.vmem %s1220, 4294967292
  %v1222 = vpack.c.bf16 %v1219, %v178
  %1223 = vst [vmem:[%s1221] sm:$0xff] %v1222
  %s1224 = scalar_lea.vmem %s0, 3176
  %v1225 = vld [vmem:[%s1224] sm:$0xff]
  %s1226 = scalar_lea.vmem %s1, 564
  %s1227 = scalar_lea.vmem %s1226, 4294967292
  %v1228 = vpack.c.bf16 %v1225, %v181
  %1229 = vst [vmem:[%s1227] sm:$0xff] %v1228
  %s1230 = scalar_lea.vmem %s0, 1640
  %v1231 = vld [vmem:[%s1230] sm:$0xff]
  %s1232 = scalar_lea.vmem %s1, 1332
  %s1233 = scalar_lea.vmem %s1232, 4294967292
  %v1234 = vpack.c.bf16 %v1231, %v184
  %1235 = vst [vmem:[%s1233] sm:$0xff] %v1234
  %s1236 = scalar_lea.vmem %s0, 104
  %v1237 = vld [vmem:[%s1236] sm:$0xff]
  %s1238 = scalar_lea.vmem %s1, 2100
  %s1239 = scalar_lea.vmem %s1238, 4294967292
  %v1240 = vpack.c.bf16 %v1237, %v187
  %1241 = vst [vmem:[%s1239] sm:$0xff] %v1240
  %s1242 = scalar_lea.vmem %s0, 4216
  %v1243 = vld [vmem:[%s1242] sm:$0xff]
  %s1244 = scalar_lea.vmem %s1, 60
  %s1245 = scalar_lea.vmem %s1244, 4294967292
  %v1246 = vpack.c.bf16 %v1243, %v190
  %1247 = vst [vmem:[%s1245] sm:$0xff] %v1246
  %s1248 = scalar_lea.vmem %s0, 2680
  %v1249 = vld [vmem:[%s1248] sm:$0xff]
  %s1250 = scalar_lea.vmem %s1, 828
  %s1251 = scalar_lea.vmem %s1250, 4294967292
  %v1252 = vpack.c.bf16 %v1249, %v193
  %1253 = vst [vmem:[%s1251] sm:$0xff] %v1252
  %s1254 = scalar_lea.vmem %s0, 1144
  %v1255 = vld [vmem:[%s1254] sm:$0xff]
  %s1256 = scalar_lea.vmem %s1, 1596
  %s1257 = scalar_lea.vmem %s1256, 4294967292
  %v1258 = vpack.c.bf16 %v1255, %v196
  %1259 = vst [vmem:[%s1257] sm:$0xff] %v1258
  %s1260 = scalar_lea.vmem %s0, 3704
  %v1261 = vld [vmem:[%s1260] sm:$0xff]
  %s1262 = scalar_lea.vmem %s1, 316
  %s1263 = scalar_lea.vmem %s1262, 4294967292
  %v1264 = vpack.c.bf16 %v1261, %v199
  %1265 = vst [vmem:[%s1263] sm:$0xff] %v1264
  %s1266 = scalar_lea.vmem %s0, 2168
  %v1267 = vld [vmem:[%s1266] sm:$0xff]
  %s1268 = scalar_lea.vmem %s1, 1084
  %s1269 = scalar_lea.vmem %s1268, 4294967292
  %v1270 = vpack.c.bf16 %v1267, %v202
  %1271 = vst [vmem:[%s1269] sm:$0xff] %v1270
  %s1272 = scalar_lea.vmem %s0, 632
  %v1273 = vld [vmem:[%s1272] sm:$0xff]
  %s1274 = scalar_lea.vmem %s1, 1852
  %s1275 = scalar_lea.vmem %s1274, 4294967292
  %v1276 = vpack.c.bf16 %v1273, %v205
  %1277 = vst [vmem:[%s1275] sm:$0xff] %v1276
  %s1278 = scalar_lea.vmem %s0, 3192
  %v1279 = vld [vmem:[%s1278] sm:$0xff]
  %s1280 = scalar_lea.vmem %s1, 572
  %s1281 = scalar_lea.vmem %s1280, 4294967292
  %v1282 = vpack.c.bf16 %v1279, %v208
  %1283 = vst [vmem:[%s1281] sm:$0xff] %v1282
  %s1284 = scalar_lea.vmem %s0, 1656
  %v1285 = vld [vmem:[%s1284] sm:$0xff]
  %s1286 = scalar_lea.vmem %s1, 1340
  %s1287 = scalar_lea.vmem %s1286, 4294967292
  %v1288 = vpack.c.bf16 %v1285, %v211
  %1289 = vst [vmem:[%s1287] sm:$0xff] %v1288
  %s1290 = scalar_lea.vmem %s0, 120
  %v1291 = vld [vmem:[%s1290] sm:$0xff]
  %s1292 = scalar_lea.vmem %s1, 2108
  %s1293 = scalar_lea.vmem %s1292, 4294967292
  %v1294 = vpack.c.bf16 %v1291, %v214
  %1295 = vst [vmem:[%s1293] sm:$0xff] %v1294
  %s1296 = scalar_lea.vmem %s0, 4232
  %v1297 = vld [vmem:[%s1296] sm:$0xff]
  %s1298 = scalar_lea.vmem %s1, 68
  %s1299 = scalar_lea.vmem %s1298, 4294967292
  %v1300 = vpack.c.bf16 %v1297, %v217
  %1301 = vst [vmem:[%s1299] sm:$0xff] %v1300
  %s1302 = scalar_lea.vmem %s0, 2696
  %v1303 = vld [vmem:[%s1302] sm:$0xff]
  %s1304 = scalar_lea.vmem %s1, 836
  %s1305 = scalar_lea.vmem %s1304, 4294967292
  %v1306 = vpack.c.bf16 %v1303, %v220
  %1307 = vst [vmem:[%s1305] sm:$0xff] %v1306
  %s1308 = scalar_lea.vmem %s0, 1160
  %v1309 = vld [vmem:[%s1308] sm:$0xff]
  %s1310 = scalar_lea.vmem %s1, 1604
  %s1311 = scalar_lea.vmem %s1310, 4294967292
  %v1312 = vpack.c.bf16 %v1309, %v223
  %1313 = vst [vmem:[%s1311] sm:$0xff] %v1312
  %s1314 = scalar_lea.vmem %s0, 3720
  %v1315 = vld [vmem:[%s1314] sm:$0xff]
  %s1316 = scalar_lea.vmem %s1, 324
  %s1317 = scalar_lea.vmem %s1316, 4294967292
  %v1318 = vpack.c.bf16 %v1315, %v226
  %1319 = vst [vmem:[%s1317] sm:$0xff] %v1318
  %s1320 = scalar_lea.vmem %s0, 2184
  %v1321 = vld [vmem:[%s1320] sm:$0xff]
  %s1322 = scalar_lea.vmem %s1, 1092
  %s1323 = scalar_lea.vmem %s1322, 4294967292
  %v1324 = vpack.c.bf16 %v1321, %v229
  %1325 = vst [vmem:[%s1323] sm:$0xff] %v1324
  %s1326 = scalar_lea.vmem %s0, 648
  %v1327 = vld [vmem:[%s1326] sm:$0xff]
  %s1328 = scalar_lea.vmem %s1, 1860
  %s1329 = scalar_lea.vmem %s1328, 4294967292
  %v1330 = vpack.c.bf16 %v1327, %v232
  %1331 = vst [vmem:[%s1329] sm:$0xff] %v1330
  %s1332 = scalar_lea.vmem %s0, 3208
  %v1333 = vld [vmem:[%s1332] sm:$0xff]
  %s1334 = scalar_lea.vmem %s1, 580
  %s1335 = scalar_lea.vmem %s1334, 4294967292
  %v1336 = vpack.c.bf16 %v1333, %v235
  %1337 = vst [vmem:[%s1335] sm:$0xff] %v1336
  %s1338 = scalar_lea.vmem %s0, 1672
  %v1339 = vld [vmem:[%s1338] sm:$0xff]
  %s1340 = scalar_lea.vmem %s1, 1348
  %s1341 = scalar_lea.vmem %s1340, 4294967292
  %v1342 = vpack.c.bf16 %v1339, %v238
  %1343 = vst [vmem:[%s1341] sm:$0xff] %v1342
  %s1344 = scalar_lea.vmem %s0, 136
  %v1345 = vld [vmem:[%s1344] sm:$0xff]
  %s1346 = scalar_lea.vmem %s1, 2116
  %s1347 = scalar_lea.vmem %s1346, 4294967292
  %v1348 = vpack.c.bf16 %v1345, %v241
  %1349 = vst [vmem:[%s1347] sm:$0xff] %v1348
  %s1350 = scalar_lea.vmem %s0, 4248
  %v1351 = vld [vmem:[%s1350] sm:$0xff]
  %s1352 = scalar_lea.vmem %s1, 76
  %s1353 = scalar_lea.vmem %s1352, 4294967292
  %v1354 = vpack.c.bf16 %v1351, %v244
  %1355 = vst [vmem:[%s1353] sm:$0xff] %v1354
  %s1356 = scalar_lea.vmem %s0, 2712
  %v1357 = vld [vmem:[%s1356] sm:$0xff]
  %s1358 = scalar_lea.vmem %s1, 844
  %s1359 = scalar_lea.vmem %s1358, 4294967292
  %v1360 = vpack.c.bf16 %v1357, %v247
  %1361 = vst [vmem:[%s1359] sm:$0xff] %v1360
  %s1362 = scalar_lea.vmem %s0, 1176
  %v1363 = vld [vmem:[%s1362] sm:$0xff]
  %s1364 = scalar_lea.vmem %s1, 1612
  %s1365 = scalar_lea.vmem %s1364, 4294967292
  %v1366 = vpack.c.bf16 %v1363, %v250
  %1367 = vst [vmem:[%s1365] sm:$0xff] %v1366
  %s1368 = scalar_lea.vmem %s0, 3736
  %v1369 = vld [vmem:[%s1368] sm:$0xff]
  %s1370 = scalar_lea.vmem %s1, 332
  %s1371 = scalar_lea.vmem %s1370, 4294967292
  %v1372 = vpack.c.bf16 %v1369, %v253
  %1373 = vst [vmem:[%s1371] sm:$0xff] %v1372
  %s1374 = scalar_lea.vmem %s0, 2200
  %v1375 = vld [vmem:[%s1374] sm:$0xff]
  %s1376 = scalar_lea.vmem %s1, 1100
  %s1377 = scalar_lea.vmem %s1376, 4294967292
  %v1378 = vpack.c.bf16 %v1375, %v256
  %1379 = vst [vmem:[%s1377] sm:$0xff] %v1378
  %s1380 = scalar_lea.vmem %s0, 664
  %v1381 = vld [vmem:[%s1380] sm:$0xff]
  %s1382 = scalar_lea.vmem %s1, 1868
  %s1383 = scalar_lea.vmem %s1382, 4294967292
  %v1384 = vpack.c.bf16 %v1381, %v259
  %1385 = vst [vmem:[%s1383] sm:$0xff] %v1384
  %s1386 = scalar_lea.vmem %s0, 3224
  %v1387 = vld [vmem:[%s1386] sm:$0xff]
  %s1388 = scalar_lea.vmem %s1, 588
  %s1389 = scalar_lea.vmem %s1388, 4294967292
  %v1390 = vpack.c.bf16 %v1387, %v262
  %1391 = vst [vmem:[%s1389] sm:$0xff] %v1390
  %s1392 = scalar_lea.vmem %s0, 1688
  %v1393 = vld [vmem:[%s1392] sm:$0xff]
  %s1394 = scalar_lea.vmem %s1, 1356
  %s1395 = scalar_lea.vmem %s1394, 4294967292
  %v1396 = vpack.c.bf16 %v1393, %v265
  %1397 = vst [vmem:[%s1395] sm:$0xff] %v1396
  %s1398 = scalar_lea.vmem %s0, 152
  %v1399 = vld [vmem:[%s1398] sm:$0xff]
  %s1400 = scalar_lea.vmem %s1, 2124
  %s1401 = scalar_lea.vmem %s1400, 4294967292
  %v1402 = vpack.c.bf16 %v1399, %v268
  %1403 = vst [vmem:[%s1401] sm:$0xff] %v1402
  %s1404 = scalar_lea.vmem %s0, 4264
  %v1405 = vld [vmem:[%s1404] sm:$0xff]
  %s1406 = scalar_lea.vmem %s1, 84
  %s1407 = scalar_lea.vmem %s1406, 4294967292
  %v1408 = vpack.c.bf16 %v1405, %v271
  %1409 = vst [vmem:[%s1407] sm:$0xff] %v1408
  %s1410 = scalar_lea.vmem %s0, 2728
  %v1411 = vld [vmem:[%s1410] sm:$0xff]
  %s1412 = scalar_lea.vmem %s1, 852
  %s1413 = scalar_lea.vmem %s1412, 4294967292
  %v1414 = vpack.c.bf16 %v1411, %v274
  %1415 = vst [vmem:[%s1413] sm:$0xff] %v1414
  %s1416 = scalar_lea.vmem %s0, 1192
  %v1417 = vld [vmem:[%s1416] sm:$0xff]
  %s1418 = scalar_lea.vmem %s1, 1620
  %s1419 = scalar_lea.vmem %s1418, 4294967292
  %v1420 = vpack.c.bf16 %v1417, %v277
  %1421 = vst [vmem:[%s1419] sm:$0xff] %v1420
  %s1422 = scalar_lea.vmem %s0, 3752
  %v1423 = vld [vmem:[%s1422] sm:$0xff]
  %s1424 = scalar_lea.vmem %s1, 340
  %s1425 = scalar_lea.vmem %s1424, 4294967292
  %v1426 = vpack.c.bf16 %v1423, %v280
  %1427 = vst [vmem:[%s1425] sm:$0xff] %v1426
  %s1428 = scalar_lea.vmem %s0, 2216
  %v1429 = vld [vmem:[%s1428] sm:$0xff]
  %s1430 = scalar_lea.vmem %s1, 1108
  %s1431 = scalar_lea.vmem %s1430, 4294967292
  %v1432 = vpack.c.bf16 %v1429, %v283
  %1433 = vst [vmem:[%s1431] sm:$0xff] %v1432
  %s1434 = scalar_lea.vmem %s0, 680
  %v1435 = vld [vmem:[%s1434] sm:$0xff]
  %s1436 = scalar_lea.vmem %s1, 1876
  %s1437 = scalar_lea.vmem %s1436, 4294967292
  %v1438 = vpack.c.bf16 %v1435, %v286
  %1439 = vst [vmem:[%s1437] sm:$0xff] %v1438
  %s1440 = scalar_lea.vmem %s0, 3240
  %v1441 = vld [vmem:[%s1440] sm:$0xff]
  %s1442 = scalar_lea.vmem %s1, 596
  %s1443 = scalar_lea.vmem %s1442, 4294967292
  %v1444 = vpack.c.bf16 %v1441, %v289
  %1445 = vst [vmem:[%s1443] sm:$0xff] %v1444
  %s1446 = scalar_lea.vmem %s0, 1704
  %v1447 = vld [vmem:[%s1446] sm:$0xff]
  %s1448 = scalar_lea.vmem %s1, 1364
  %s1449 = scalar_lea.vmem %s1448, 4294967292
  %v1450 = vpack.c.bf16 %v1447, %v292
  %1451 = vst [vmem:[%s1449] sm:$0xff] %v1450
  %s1452 = scalar_lea.vmem %s0, 168
  %v1453 = vld [vmem:[%s1452] sm:$0xff]
  %s1454 = scalar_lea.vmem %s1, 2132
  %s1455 = scalar_lea.vmem %s1454, 4294967292
  %v1456 = vpack.c.bf16 %v1453, %v295
  %1457 = vst [vmem:[%s1455] sm:$0xff] %v1456
  %s1458 = scalar_lea.vmem %s0, 4280
  %v1459 = vld [vmem:[%s1458] sm:$0xff]
  %s1460 = scalar_lea.vmem %s1, 92
  %s1461 = scalar_lea.vmem %s1460, 4294967292
  %v1462 = vpack.c.bf16 %v1459, %v298
  %1463 = vst [vmem:[%s1461] sm:$0xff] %v1462
  %s1464 = scalar_lea.vmem %s0, 2744
  %v1465 = vld [vmem:[%s1464] sm:$0xff]
  %s1466 = scalar_lea.vmem %s1, 860
  %s1467 = scalar_lea.vmem %s1466, 4294967292
  %v1468 = vpack.c.bf16 %v1465, %v301
  %1469 = vst [vmem:[%s1467] sm:$0xff] %v1468
  %s1470 = scalar_lea.vmem %s0, 1208
  %v1471 = vld [vmem:[%s1470] sm:$0xff]
  %s1472 = scalar_lea.vmem %s1, 1628
  %s1473 = scalar_lea.vmem %s1472, 4294967292
  %v1474 = vpack.c.bf16 %v1471, %v304
  %1475 = vst [vmem:[%s1473] sm:$0xff] %v1474
  %s1476 = scalar_lea.vmem %s0, 3768
  %v1477 = vld [vmem:[%s1476] sm:$0xff]
  %s1478 = scalar_lea.vmem %s1, 348
  %s1479 = scalar_lea.vmem %s1478, 4294967292
  %v1480 = vpack.c.bf16 %v1477, %v307
  %1481 = vst [vmem:[%s1479] sm:$0xff] %v1480
  %s1482 = scalar_lea.vmem %s0, 2232
  %v1483 = vld [vmem:[%s1482] sm:$0xff]
  %s1484 = scalar_lea.vmem %s1, 1116
  %s1485 = scalar_lea.vmem %s1484, 4294967292
  %v1486 = vpack.c.bf16 %v1483, %v310
  %1487 = vst [vmem:[%s1485] sm:$0xff] %v1486
  %s1488 = scalar_lea.vmem %s0, 696
  %v1489 = vld [vmem:[%s1488] sm:$0xff]
  %s1490 = scalar_lea.vmem %s1, 1884
  %s1491 = scalar_lea.vmem %s1490, 4294967292
  %v1492 = vpack.c.bf16 %v1489, %v313
  %1493 = vst [vmem:[%s1491] sm:$0xff] %v1492
  %s1494 = scalar_lea.vmem %s0, 3256
  %v1495 = vld [vmem:[%s1494] sm:$0xff]
  %s1496 = scalar_lea.vmem %s1, 604
  %s1497 = scalar_lea.vmem %s1496, 4294967292
  %v1498 = vpack.c.bf16 %v1495, %v316
  %1499 = vst [vmem:[%s1497] sm:$0xff] %v1498
  %s1500 = scalar_lea.vmem %s0, 1720
  %v1501 = vld [vmem:[%s1500] sm:$0xff]
  %s1502 = scalar_lea.vmem %s1, 1372
  %s1503 = scalar_lea.vmem %s1502, 4294967292
  %v1504 = vpack.c.bf16 %v1501, %v319
  %1505 = vst [vmem:[%s1503] sm:$0xff] %v1504
  %s1506 = scalar_lea.vmem %s0, 184
  %v1507 = vld [vmem:[%s1506] sm:$0xff]
  %s1508 = scalar_lea.vmem %s1, 2140
  %s1509 = scalar_lea.vmem %s1508, 4294967292
  %v1510 = vpack.c.bf16 %v1507, %v322
  %1511 = vst [vmem:[%s1509] sm:$0xff] %v1510
  %s1512 = scalar_lea.vmem %s0, 4296
  %v1513 = vld [vmem:[%s1512] sm:$0xff]
  %s1514 = scalar_lea.vmem %s1, 100
  %s1515 = scalar_lea.vmem %s1514, 4294967292
  %v1516 = vpack.c.bf16 %v1513, %v325
  %1517 = vst [vmem:[%s1515] sm:$0xff] %v1516
  %s1518 = scalar_lea.vmem %s0, 2760
  %v1519 = vld [vmem:[%s1518] sm:$0xff]
  %s1520 = scalar_lea.vmem %s1, 868
  %s1521 = scalar_lea.vmem %s1520, 4294967292
  %v1522 = vpack.c.bf16 %v1519, %v328
  %1523 = vst [vmem:[%s1521] sm:$0xff] %v1522
  %s1524 = scalar_lea.vmem %s0, 1224
  %v1525 = vld [vmem:[%s1524] sm:$0xff]
  %s1526 = scalar_lea.vmem %s1, 1636
  %s1527 = scalar_lea.vmem %s1526, 4294967292
  %v1528 = vpack.c.bf16 %v1525, %v331
  %1529 = vst [vmem:[%s1527] sm:$0xff] %v1528
  %s1530 = scalar_lea.vmem %s0, 3784
  %v1531 = vld [vmem:[%s1530] sm:$0xff]
  %s1532 = scalar_lea.vmem %s1, 356
  %s1533 = scalar_lea.vmem %s1532, 4294967292
  %v1534 = vpack.c.bf16 %v1531, %v334
  %1535 = vst [vmem:[%s1533] sm:$0xff] %v1534
  %s1536 = scalar_lea.vmem %s0, 2248
  %v1537 = vld [vmem:[%s1536] sm:$0xff]
  %s1538 = scalar_lea.vmem %s1, 1124
  %s1539 = scalar_lea.vmem %s1538, 4294967292
  %v1540 = vpack.c.bf16 %v1537, %v337
  %1541 = vst [vmem:[%s1539] sm:$0xff] %v1540
  %s1542 = scalar_lea.vmem %s0, 712
  %v1543 = vld [vmem:[%s1542] sm:$0xff]
  %s1544 = scalar_lea.vmem %s1, 1892
  %s1545 = scalar_lea.vmem %s1544, 4294967292
  %v1546 = vpack.c.bf16 %v1543, %v340
  %1547 = vst [vmem:[%s1545] sm:$0xff] %v1546
  %s1548 = scalar_lea.vmem %s0, 3272
  %v1549 = vld [vmem:[%s1548] sm:$0xff]
  %s1550 = scalar_lea.vmem %s1, 612
  %s1551 = scalar_lea.vmem %s1550, 4294967292
  %v1552 = vpack.c.bf16 %v1549, %v343
  %1553 = vst [vmem:[%s1551] sm:$0xff] %v1552
  %s1554 = scalar_lea.vmem %s0, 1736
  %v1555 = vld [vmem:[%s1554] sm:$0xff]
  %s1556 = scalar_lea.vmem %s1, 1380
  %s1557 = scalar_lea.vmem %s1556, 4294967292
  %v1558 = vpack.c.bf16 %v1555, %v346
  %1559 = vst [vmem:[%s1557] sm:$0xff] %v1558
  %s1560 = scalar_lea.vmem %s0, 200
  %v1561 = vld [vmem:[%s1560] sm:$0xff]
  %s1562 = scalar_lea.vmem %s1, 2148
  %s1563 = scalar_lea.vmem %s1562, 4294967292
  %v1564 = vpack.c.bf16 %v1561, %v349
  %1565 = vst [vmem:[%s1563] sm:$0xff] %v1564
  %s1566 = scalar_lea.vmem %s0, 4312
  %v1567 = vld [vmem:[%s1566] sm:$0xff]
  %s1568 = scalar_lea.vmem %s1, 108
  %s1569 = scalar_lea.vmem %s1568, 4294967292
  %v1570 = vpack.c.bf16 %v1567, %v352
  %1571 = vst [vmem:[%s1569] sm:$0xff] %v1570
  %s1572 = scalar_lea.vmem %s0, 2776
  %v1573 = vld [vmem:[%s1572] sm:$0xff]
  %s1574 = scalar_lea.vmem %s1, 876
  %s1575 = scalar_lea.vmem %s1574, 4294967292
  %v1576 = vpack.c.bf16 %v1573, %v355
  %1577 = vst [vmem:[%s1575] sm:$0xff] %v1576
  %s1578 = scalar_lea.vmem %s0, 1240
  %v1579 = vld [vmem:[%s1578] sm:$0xff]
  %s1580 = scalar_lea.vmem %s1, 1644
  %s1581 = scalar_lea.vmem %s1580, 4294967292
  %v1582 = vpack.c.bf16 %v1579, %v358
  %1583 = vst [vmem:[%s1581] sm:$0xff] %v1582
  %s1584 = scalar_lea.vmem %s0, 3800
  %v1585 = vld [vmem:[%s1584] sm:$0xff]
  %s1586 = scalar_lea.vmem %s1, 364
  %s1587 = scalar_lea.vmem %s1586, 4294967292
  %v1588 = vpack.c.bf16 %v1585, %v361
  %1589 = vst [vmem:[%s1587] sm:$0xff] %v1588
  %s1590 = scalar_lea.vmem %s0, 2264
  %v1591 = vld [vmem:[%s1590] sm:$0xff]
  %s1592 = scalar_lea.vmem %s1, 1132
  %s1593 = scalar_lea.vmem %s1592, 4294967292
  %v1594 = vpack.c.bf16 %v1591, %v364
  %1595 = vst [vmem:[%s1593] sm:$0xff] %v1594
  %s1596 = scalar_lea.vmem %s0, 728
  %v1597 = vld [vmem:[%s1596] sm:$0xff]
  %s1598 = scalar_lea.vmem %s1, 1900
  %s1599 = scalar_lea.vmem %s1598, 4294967292
  %v1600 = vpack.c.bf16 %v1597, %v367
  %1601 = vst [vmem:[%s1599] sm:$0xff] %v1600
  %s1602 = scalar_lea.vmem %s0, 3288
  %v1603 = vld [vmem:[%s1602] sm:$0xff]
  %s1604 = scalar_lea.vmem %s1, 620
  %s1605 = scalar_lea.vmem %s1604, 4294967292
  %v1606 = vpack.c.bf16 %v1603, %v370
  %1607 = vst [vmem:[%s1605] sm:$0xff] %v1606
  %s1608 = scalar_lea.vmem %s0, 1752
  %v1609 = vld [vmem:[%s1608] sm:$0xff]
  %s1610 = scalar_lea.vmem %s1, 1388
  %s1611 = scalar_lea.vmem %s1610, 4294967292
  %v1612 = vpack.c.bf16 %v1609, %v373
  %1613 = vst [vmem:[%s1611] sm:$0xff] %v1612
  %s1614 = scalar_lea.vmem %s0, 216
  %v1615 = vld [vmem:[%s1614] sm:$0xff]
  %s1616 = scalar_lea.vmem %s1, 2156
  %s1617 = scalar_lea.vmem %s1616, 4294967292
  %v1618 = vpack.c.bf16 %v1615, %v376
  %1619 = vst [vmem:[%s1617] sm:$0xff] %v1618
  %s1620 = scalar_lea.vmem %s0, 4328
  %v1621 = vld [vmem:[%s1620] sm:$0xff]
  %s1622 = scalar_lea.vmem %s1, 116
  %s1623 = scalar_lea.vmem %s1622, 4294967292
  %v1624 = vpack.c.bf16 %v1621, %v379
  %1625 = vst [vmem:[%s1623] sm:$0xff] %v1624
  %s1626 = scalar_lea.vmem %s0, 2792
  %v1627 = vld [vmem:[%s1626] sm:$0xff]
  %s1628 = scalar_lea.vmem %s1, 884
  %s1629 = scalar_lea.vmem %s1628, 4294967292
  %v1630 = vpack.c.bf16 %v1627, %v382
  %1631 = vst [vmem:[%s1629] sm:$0xff] %v1630
  %s1632 = scalar_lea.vmem %s0, 1256
  %v1633 = vld [vmem:[%s1632] sm:$0xff]
  %s1634 = scalar_lea.vmem %s1, 1652
  %s1635 = scalar_lea.vmem %s1634, 4294967292
  %v1636 = vpack.c.bf16 %v1633, %v385
  %1637 = vst [vmem:[%s1635] sm:$0xff] %v1636
  %s1638 = scalar_lea.vmem %s0, 3816
  %v1639 = vld [vmem:[%s1638] sm:$0xff]
  %s1640 = scalar_lea.vmem %s1, 372
  %s1641 = scalar_lea.vmem %s1640, 4294967292
  %v1642 = vpack.c.bf16 %v1639, %v388
  %1643 = vst [vmem:[%s1641] sm:$0xff] %v1642
  %s1644 = scalar_lea.vmem %s0, 2280
  %v1645 = vld [vmem:[%s1644] sm:$0xff]
  %s1646 = scalar_lea.vmem %s1, 1140
  %s1647 = scalar_lea.vmem %s1646, 4294967292
  %v1648 = vpack.c.bf16 %v1645, %v391
  %1649 = vst [vmem:[%s1647] sm:$0xff] %v1648
  %s1650 = scalar_lea.vmem %s0, 744
  %v1651 = vld [vmem:[%s1650] sm:$0xff]
  %s1652 = scalar_lea.vmem %s1, 1908
  %s1653 = scalar_lea.vmem %s1652, 4294967292
  %v1654 = vpack.c.bf16 %v1651, %v394
  %1655 = vst [vmem:[%s1653] sm:$0xff] %v1654
  %s1656 = scalar_lea.vmem %s0, 3304
  %v1657 = vld [vmem:[%s1656] sm:$0xff]
  %s1658 = scalar_lea.vmem %s1, 628
  %s1659 = scalar_lea.vmem %s1658, 4294967292
  %v1660 = vpack.c.bf16 %v1657, %v397
  %1661 = vst [vmem:[%s1659] sm:$0xff] %v1660
  %s1662 = scalar_lea.vmem %s0, 1768
  %v1663 = vld [vmem:[%s1662] sm:$0xff]
  %s1664 = scalar_lea.vmem %s1, 1396
  %s1665 = scalar_lea.vmem %s1664, 4294967292
  %v1666 = vpack.c.bf16 %v1663, %v400
  %1667 = vst [vmem:[%s1665] sm:$0xff] %v1666
  %s1668 = scalar_lea.vmem %s0, 232
  %v1669 = vld [vmem:[%s1668] sm:$0xff]
  %s1670 = scalar_lea.vmem %s1, 2164
  %s1671 = scalar_lea.vmem %s1670, 4294967292
  %v1672 = vpack.c.bf16 %v1669, %v403
  %1673 = vst [vmem:[%s1671] sm:$0xff] %v1672
  %s1674 = scalar_lea.vmem %s0, 4344
  %v1675 = vld [vmem:[%s1674] sm:$0xff]
  %s1676 = scalar_lea.vmem %s1, 124
  %s1677 = scalar_lea.vmem %s1676, 4294967292
  %v1678 = vpack.c.bf16 %v1675, %v406
  %1679 = vst [vmem:[%s1677] sm:$0xff] %v1678
  %s1680 = scalar_lea.vmem %s0, 2808
  %v1681 = vld [vmem:[%s1680] sm:$0xff]
  %s1682 = scalar_lea.vmem %s1, 892
  %s1683 = scalar_lea.vmem %s1682, 4294967292
  %v1684 = vpack.c.bf16 %v1681, %v409
  %1685 = vst [vmem:[%s1683] sm:$0xff] %v1684
  %s1686 = scalar_lea.vmem %s0, 1272
  %v1687 = vld [vmem:[%s1686] sm:$0xff]
  %s1688 = scalar_lea.vmem %s1, 1660
  %s1689 = scalar_lea.vmem %s1688, 4294967292
  %v1690 = vpack.c.bf16 %v1687, %v412
  %1691 = vst [vmem:[%s1689] sm:$0xff] %v1690
  %s1692 = scalar_lea.vmem %s0, 3832
  %v1693 = vld [vmem:[%s1692] sm:$0xff]
  %s1694 = scalar_lea.vmem %s1, 380
  %s1695 = scalar_lea.vmem %s1694, 4294967292
  %v1696 = vpack.c.bf16 %v1693, %v415
  %1697 = vst [vmem:[%s1695] sm:$0xff] %v1696
  %s1698 = scalar_lea.vmem %s0, 2296
  %v1699 = vld [vmem:[%s1698] sm:$0xff]
  %s1700 = scalar_lea.vmem %s1, 1148
  %s1701 = scalar_lea.vmem %s1700, 4294967292
  %v1702 = vpack.c.bf16 %v1699, %v418
  %1703 = vst [vmem:[%s1701] sm:$0xff] %v1702
  %s1704 = scalar_lea.vmem %s0, 760
  %v1705 = vld [vmem:[%s1704] sm:$0xff]
  %s1706 = scalar_lea.vmem %s1, 1916
  %s1707 = scalar_lea.vmem %s1706, 4294967292
  %v1708 = vpack.c.bf16 %v1705, %v421
  %1709 = vst [vmem:[%s1707] sm:$0xff] %v1708
  %s1710 = scalar_lea.vmem %s0, 3320
  %v1711 = vld [vmem:[%s1710] sm:$0xff]
  %s1712 = scalar_lea.vmem %s1, 636
  %s1713 = scalar_lea.vmem %s1712, 4294967292
  %v1714 = vpack.c.bf16 %v1711, %v424
  %1715 = vst [vmem:[%s1713] sm:$0xff] %v1714
  %s1716 = scalar_lea.vmem %s0, 1784
  %v1717 = vld [vmem:[%s1716] sm:$0xff]
  %s1718 = scalar_lea.vmem %s1, 1404
  %s1719 = scalar_lea.vmem %s1718, 4294967292
  %v1720 = vpack.c.bf16 %v1717, %v427
  %1721 = vst [vmem:[%s1719] sm:$0xff] %v1720
  %s1722 = scalar_lea.vmem %s0, 248
  %v1723 = vld [vmem:[%s1722] sm:$0xff]
  %s1724 = scalar_lea.vmem %s1, 2172
  %s1725 = scalar_lea.vmem %s1724, 4294967292
  %v1726 = vpack.c.bf16 %v1723, %v430
  %1727 = vst [vmem:[%s1725] sm:$0xff] %v1726
  %s1728 = scalar_lea.vmem %s0, 4360
  %v1729 = vld [vmem:[%s1728] sm:$0xff]
  %s1730 = scalar_lea.vmem %s1, 132
  %s1731 = scalar_lea.vmem %s1730, 4294967292
  %v1732 = vpack.c.bf16 %v1729, %v433
  %1733 = vst [vmem:[%s1731] sm:$0xff] %v1732
  %s1734 = scalar_lea.vmem %s0, 2824
  %v1735 = vld [vmem:[%s1734] sm:$0xff]
  %s1736 = scalar_lea.vmem %s1, 900
  %s1737 = scalar_lea.vmem %s1736, 4294967292
  %v1738 = vpack.c.bf16 %v1735, %v436
  %1739 = vst [vmem:[%s1737] sm:$0xff] %v1738
  %s1740 = scalar_lea.vmem %s0, 1288
  %v1741 = vld [vmem:[%s1740] sm:$0xff]
  %s1742 = scalar_lea.vmem %s1, 1668
  %s1743 = scalar_lea.vmem %s1742, 4294967292
  %v1744 = vpack.c.bf16 %v1741, %v439
  %1745 = vst [vmem:[%s1743] sm:$0xff] %v1744
  %s1746 = scalar_lea.vmem %s0, 3848
  %v1747 = vld [vmem:[%s1746] sm:$0xff]
  %s1748 = scalar_lea.vmem %s1, 388
  %s1749 = scalar_lea.vmem %s1748, 4294967292
  %v1750 = vpack.c.bf16 %v1747, %v442
  %1751 = vst [vmem:[%s1749] sm:$0xff] %v1750
  %s1752 = scalar_lea.vmem %s0, 2312
  %v1753 = vld [vmem:[%s1752] sm:$0xff]
  %s1754 = scalar_lea.vmem %s1, 1156
  %s1755 = scalar_lea.vmem %s1754, 4294967292
  %v1756 = vpack.c.bf16 %v1753, %v445
  %1757 = vst [vmem:[%s1755] sm:$0xff] %v1756
  %s1758 = scalar_lea.vmem %s0, 776
  %v1759 = vld [vmem:[%s1758] sm:$0xff]
  %s1760 = scalar_lea.vmem %s1, 1924
  %s1761 = scalar_lea.vmem %s1760, 4294967292
  %v1762 = vpack.c.bf16 %v1759, %v448
  %1763 = vst [vmem:[%s1761] sm:$0xff] %v1762
  %s1764 = scalar_lea.vmem %s0, 3336
  %v1765 = vld [vmem:[%s1764] sm:$0xff]
  %s1766 = scalar_lea.vmem %s1, 644
  %s1767 = scalar_lea.vmem %s1766, 4294967292
  %v1768 = vpack.c.bf16 %v1765, %v451
  %1769 = vst [vmem:[%s1767] sm:$0xff] %v1768
  %s1770 = scalar_lea.vmem %s0, 1800
  %v1771 = vld [vmem:[%s1770] sm:$0xff]
  %s1772 = scalar_lea.vmem %s1, 1412
  %s1773 = scalar_lea.vmem %s1772, 4294967292
  %v1774 = vpack.c.bf16 %v1771, %v454
  %1775 = vst [vmem:[%s1773] sm:$0xff] %v1774
  %s1776 = scalar_lea.vmem %s0, 264
  %v1777 = vld [vmem:[%s1776] sm:$0xff]
  %s1778 = scalar_lea.vmem %s1, 2180
  %s1779 = scalar_lea.vmem %s1778, 4294967292
  %v1780 = vpack.c.bf16 %v1777, %v457
  %1781 = vst [vmem:[%s1779] sm:$0xff] %v1780
  %s1782 = scalar_lea.vmem %s0, 4376
  %v1783 = vld [vmem:[%s1782] sm:$0xff]
  %s1784 = scalar_lea.vmem %s1, 140
  %s1785 = scalar_lea.vmem %s1784, 4294967292
  %v1786 = vpack.c.bf16 %v1783, %v460
  %1787 = vst [vmem:[%s1785] sm:$0xff] %v1786
  %s1788 = scalar_lea.vmem %s0, 2840
  %v1789 = vld [vmem:[%s1788] sm:$0xff]
  %s1790 = scalar_lea.vmem %s1, 908
  %s1791 = scalar_lea.vmem %s1790, 4294967292
  %v1792 = vpack.c.bf16 %v1789, %v463
  %1793 = vst [vmem:[%s1791] sm:$0xff] %v1792
  %s1794 = scalar_lea.vmem %s0, 1304
  %v1795 = vld [vmem:[%s1794] sm:$0xff]
  %s1796 = scalar_lea.vmem %s1, 1676
  %s1797 = scalar_lea.vmem %s1796, 4294967292
  %v1798 = vpack.c.bf16 %v1795, %v466
  %1799 = vst [vmem:[%s1797] sm:$0xff] %v1798
  %s1800 = scalar_lea.vmem %s0, 3864
  %v1801 = vld [vmem:[%s1800] sm:$0xff]
  %s1802 = scalar_lea.vmem %s1, 396
  %s1803 = scalar_lea.vmem %s1802, 4294967292
  %v1804 = vpack.c.bf16 %v1801, %v469
  %1805 = vst [vmem:[%s1803] sm:$0xff] %v1804
  %s1806 = scalar_lea.vmem %s0, 2328
  %v1807 = vld [vmem:[%s1806] sm:$0xff]
  %s1808 = scalar_lea.vmem %s1, 1164
  %s1809 = scalar_lea.vmem %s1808, 4294967292
  %v1810 = vpack.c.bf16 %v1807, %v472
  %1811 = vst [vmem:[%s1809] sm:$0xff] %v1810
  %s1812 = scalar_lea.vmem %s0, 792
  %v1813 = vld [vmem:[%s1812] sm:$0xff]
  %s1814 = scalar_lea.vmem %s1, 1932
  %s1815 = scalar_lea.vmem %s1814, 4294967292
  %v1816 = vpack.c.bf16 %v1813, %v475
  %1817 = vst [vmem:[%s1815] sm:$0xff] %v1816
  %s1818 = scalar_lea.vmem %s0, 3352
  %v1819 = vld [vmem:[%s1818] sm:$0xff]
  %s1820 = scalar_lea.vmem %s1, 652
  %s1821 = scalar_lea.vmem %s1820, 4294967292
  %v1822 = vpack.c.bf16 %v1819, %v478
  %1823 = vst [vmem:[%s1821] sm:$0xff] %v1822
  %s1824 = scalar_lea.vmem %s0, 1816
  %v1825 = vld [vmem:[%s1824] sm:$0xff]
  %s1826 = scalar_lea.vmem %s1, 1420
  %s1827 = scalar_lea.vmem %s1826, 4294967292
  %v1828 = vpack.c.bf16 %v1825, %v481
  %1829 = vst [vmem:[%s1827] sm:$0xff] %v1828
  %s1830 = scalar_lea.vmem %s0, 280
  %v1831 = vld [vmem:[%s1830] sm:$0xff]
  %s1832 = scalar_lea.vmem %s1, 2188
  %s1833 = scalar_lea.vmem %s1832, 4294967292
  %v1834 = vpack.c.bf16 %v1831, %v484
  %1835 = vst [vmem:[%s1833] sm:$0xff] %v1834
  %s1836 = scalar_lea.vmem %s0, 4392
  %v1837 = vld [vmem:[%s1836] sm:$0xff]
  %s1838 = scalar_lea.vmem %s1, 148
  %s1839 = scalar_lea.vmem %s1838, 4294967292
  %v1840 = vpack.c.bf16 %v1837, %v487
  %1841 = vst [vmem:[%s1839] sm:$0xff] %v1840
  %s1842 = scalar_lea.vmem %s0, 2856
  %v1843 = vld [vmem:[%s1842] sm:$0xff]
  %s1844 = scalar_lea.vmem %s1, 916
  %s1845 = scalar_lea.vmem %s1844, 4294967292
  %v1846 = vpack.c.bf16 %v1843, %v490
  %1847 = vst [vmem:[%s1845] sm:$0xff] %v1846
  %s1848 = scalar_lea.vmem %s0, 1320
  %v1849 = vld [vmem:[%s1848] sm:$0xff]
  %s1850 = scalar_lea.vmem %s1, 1684
  %s1851 = scalar_lea.vmem %s1850, 4294967292
  %v1852 = vpack.c.bf16 %v1849, %v493
  %1853 = vst [vmem:[%s1851] sm:$0xff] %v1852
  %s1854 = scalar_lea.vmem %s0, 3880
  %v1855 = vld [vmem:[%s1854] sm:$0xff]
  %s1856 = scalar_lea.vmem %s1, 404
  %s1857 = scalar_lea.vmem %s1856, 4294967292
  %v1858 = vpack.c.bf16 %v1855, %v496
  %1859 = vst [vmem:[%s1857] sm:$0xff] %v1858
  %s1860 = scalar_lea.vmem %s0, 2344
  %v1861 = vld [vmem:[%s1860] sm:$0xff]
  %s1862 = scalar_lea.vmem %s1, 1172
  %s1863 = scalar_lea.vmem %s1862, 4294967292
  %v1864 = vpack.c.bf16 %v1861, %v499
  %1865 = vst [vmem:[%s1863] sm:$0xff] %v1864
  %s1866 = scalar_lea.vmem %s0, 808
  %v1867 = vld [vmem:[%s1866] sm:$0xff]
  %s1868 = scalar_lea.vmem %s1, 1940
  %s1869 = scalar_lea.vmem %s1868, 4294967292
  %v1870 = vpack.c.bf16 %v1867, %v502
  %1871 = vst [vmem:[%s1869] sm:$0xff] %v1870
  %s1872 = scalar_lea.vmem %s0, 3368
  %v1873 = vld [vmem:[%s1872] sm:$0xff]
  %s1874 = scalar_lea.vmem %s1, 660
  %s1875 = scalar_lea.vmem %s1874, 4294967292
  %v1876 = vpack.c.bf16 %v1873, %v505
  %1877 = vst [vmem:[%s1875] sm:$0xff] %v1876
  %s1878 = scalar_lea.vmem %s0, 1832
  %v1879 = vld [vmem:[%s1878] sm:$0xff]
  %s1880 = scalar_lea.vmem %s1, 1428
  %s1881 = scalar_lea.vmem %s1880, 4294967292
  %v1882 = vpack.c.bf16 %v1879, %v508
  %1883 = vst [vmem:[%s1881] sm:$0xff] %v1882
  %s1884 = scalar_lea.vmem %s0, 296
  %v1885 = vld [vmem:[%s1884] sm:$0xff]
  %s1886 = scalar_lea.vmem %s1, 2196
  %s1887 = scalar_lea.vmem %s1886, 4294967292
  %v1888 = vpack.c.bf16 %v1885, %v511
  %1889 = vst [vmem:[%s1887] sm:$0xff] %v1888
  %s1890 = scalar_lea.vmem %s0, 4408
  %v1891 = vld [vmem:[%s1890] sm:$0xff]
  %s1892 = scalar_lea.vmem %s1, 156
  %s1893 = scalar_lea.vmem %s1892, 4294967292
  %v1894 = vpack.c.bf16 %v1891, %v514
  %1895 = vst [vmem:[%s1893] sm:$0xff] %v1894
  %s1896 = scalar_lea.vmem %s0, 2872
  %v1897 = vld [vmem:[%s1896] sm:$0xff]
  %s1898 = scalar_lea.vmem %s1, 924
  %s1899 = scalar_lea.vmem %s1898, 4294967292
  %v1900 = vpack.c.bf16 %v1897, %v517
  %1901 = vst [vmem:[%s1899] sm:$0xff] %v1900
  %s1902 = scalar_lea.vmem %s0, 1336
  %v1903 = vld [vmem:[%s1902] sm:$0xff]
  %s1904 = scalar_lea.vmem %s1, 1692
  %s1905 = scalar_lea.vmem %s1904, 4294967292
  %v1906 = vpack.c.bf16 %v1903, %v520
  %1907 = vst [vmem:[%s1905] sm:$0xff] %v1906
  %s1908 = scalar_lea.vmem %s0, 3896
  %v1909 = vld [vmem:[%s1908] sm:$0xff]
  %s1910 = scalar_lea.vmem %s1, 412
  %s1911 = scalar_lea.vmem %s1910, 4294967292
  %v1912 = vpack.c.bf16 %v1909, %v523
  %1913 = vst [vmem:[%s1911] sm:$0xff] %v1912
  %s1914 = scalar_lea.vmem %s0, 2360
  %v1915 = vld [vmem:[%s1914] sm:$0xff]
  %s1916 = scalar_lea.vmem %s1, 1180
  %s1917 = scalar_lea.vmem %s1916, 4294967292
  %v1918 = vpack.c.bf16 %v1915, %v526
  %1919 = vst [vmem:[%s1917] sm:$0xff] %v1918
  %s1920 = scalar_lea.vmem %s0, 824
  %v1921 = vld [vmem:[%s1920] sm:$0xff]
  %s1922 = scalar_lea.vmem %s1, 1948
  %s1923 = scalar_lea.vmem %s1922, 4294967292
  %v1924 = vpack.c.bf16 %v1921, %v529
  %1925 = vst [vmem:[%s1923] sm:$0xff] %v1924
  %s1926 = scalar_lea.vmem %s0, 3384
  %v1927 = vld [vmem:[%s1926] sm:$0xff]
  %s1928 = scalar_lea.vmem %s1, 668
  %s1929 = scalar_lea.vmem %s1928, 4294967292
  %v1930 = vpack.c.bf16 %v1927, %v532
  %1931 = vst [vmem:[%s1929] sm:$0xff] %v1930
  %s1932 = scalar_lea.vmem %s0, 1848
  %v1933 = vld [vmem:[%s1932] sm:$0xff]
  %s1934 = scalar_lea.vmem %s1, 1436
  %s1935 = scalar_lea.vmem %s1934, 4294967292
  %v1936 = vpack.c.bf16 %v1933, %v535
  %1937 = vst [vmem:[%s1935] sm:$0xff] %v1936
  %s1938 = scalar_lea.vmem %s0, 312
  %v1939 = vld [vmem:[%s1938] sm:$0xff]
  %s1940 = scalar_lea.vmem %s1, 2204
  %s1941 = scalar_lea.vmem %s1940, 4294967292
  %v1942 = vpack.c.bf16 %v1939, %v538
  %1943 = vst [vmem:[%s1941] sm:$0xff] %v1942
  %s1944 = scalar_lea.vmem %s0, 4424
  %v1945 = vld [vmem:[%s1944] sm:$0xff]
  %s1946 = scalar_lea.vmem %s1, 164
  %s1947 = scalar_lea.vmem %s1946, 4294967292
  %v1948 = vpack.c.bf16 %v1945, %v541
  %1949 = vst [vmem:[%s1947] sm:$0xff] %v1948
  %s1950 = scalar_lea.vmem %s0, 2888
  %v1951 = vld [vmem:[%s1950] sm:$0xff]
  %s1952 = scalar_lea.vmem %s1, 932
  %s1953 = scalar_lea.vmem %s1952, 4294967292
  %v1954 = vpack.c.bf16 %v1951, %v544
  %1955 = vst [vmem:[%s1953] sm:$0xff] %v1954
  %s1956 = scalar_lea.vmem %s0, 1352
  %v1957 = vld [vmem:[%s1956] sm:$0xff]
  %s1958 = scalar_lea.vmem %s1, 1700
  %s1959 = scalar_lea.vmem %s1958, 4294967292
  %v1960 = vpack.c.bf16 %v1957, %v547
  %1961 = vst [vmem:[%s1959] sm:$0xff] %v1960
  %s1962 = scalar_lea.vmem %s0, 3912
  %v1963 = vld [vmem:[%s1962] sm:$0xff]
  %s1964 = scalar_lea.vmem %s1, 420
  %s1965 = scalar_lea.vmem %s1964, 4294967292
  %v1966 = vpack.c.bf16 %v1963, %v550
  %1967 = vst [vmem:[%s1965] sm:$0xff] %v1966
  %s1968 = scalar_lea.vmem %s0, 2376
  %v1969 = vld [vmem:[%s1968] sm:$0xff]
  %s1970 = scalar_lea.vmem %s1, 1188
  %s1971 = scalar_lea.vmem %s1970, 4294967292
  %v1972 = vpack.c.bf16 %v1969, %v553
  %1973 = vst [vmem:[%s1971] sm:$0xff] %v1972
  %s1974 = scalar_lea.vmem %s0, 840
  %v1975 = vld [vmem:[%s1974] sm:$0xff]
  %s1976 = scalar_lea.vmem %s1, 1956
  %s1977 = scalar_lea.vmem %s1976, 4294967292
  %v1978 = vpack.c.bf16 %v1975, %v556
  %1979 = vst [vmem:[%s1977] sm:$0xff] %v1978
  %s1980 = scalar_lea.vmem %s0, 3400
  %v1981 = vld [vmem:[%s1980] sm:$0xff]
  %s1982 = scalar_lea.vmem %s1, 676
  %s1983 = scalar_lea.vmem %s1982, 4294967292
  %v1984 = vpack.c.bf16 %v1981, %v559
  %1985 = vst [vmem:[%s1983] sm:$0xff] %v1984
  %s1986 = scalar_lea.vmem %s0, 1864
  %v1987 = vld [vmem:[%s1986] sm:$0xff]
  %s1988 = scalar_lea.vmem %s1, 1444
  %s1989 = scalar_lea.vmem %s1988, 4294967292
  %v1990 = vpack.c.bf16 %v1987, %v562
  %1991 = vst [vmem:[%s1989] sm:$0xff] %v1990
  %s1992 = scalar_lea.vmem %s0, 328
  %v1993 = vld [vmem:[%s1992] sm:$0xff]
  %s1994 = scalar_lea.vmem %s1, 2212
  %s1995 = scalar_lea.vmem %s1994, 4294967292
  %v1996 = vpack.c.bf16 %v1993, %v565
  %1997 = vst [vmem:[%s1995] sm:$0xff] %v1996
  %s1998 = scalar_lea.vmem %s0, 4440
  %v1999 = vld [vmem:[%s1998] sm:$0xff]
  %s2000 = scalar_lea.vmem %s1, 172
  %s2001 = scalar_lea.vmem %s2000, 4294967292
  %v2002 = vpack.c.bf16 %v1999, %v568
  %2003 = vst [vmem:[%s2001] sm:$0xff] %v2002
  %s2004 = scalar_lea.vmem %s0, 2904
  %v2005 = vld [vmem:[%s2004] sm:$0xff]
  %s2006 = scalar_lea.vmem %s1, 940
  %s2007 = scalar_lea.vmem %s2006, 4294967292
  %v2008 = vpack.c.bf16 %v2005, %v571
  %2009 = vst [vmem:[%s2007] sm:$0xff] %v2008
  %s2010 = scalar_lea.vmem %s0, 1368
  %v2011 = vld [vmem:[%s2010] sm:$0xff]
  %s2012 = scalar_lea.vmem %s1, 1708
  %s2013 = scalar_lea.vmem %s2012, 4294967292
  %v2014 = vpack.c.bf16 %v2011, %v574
  %2015 = vst [vmem:[%s2013] sm:$0xff] %v2014
  %s2016 = scalar_lea.vmem %s0, 3928
  %v2017 = vld [vmem:[%s2016] sm:$0xff]
  %s2018 = scalar_lea.vmem %s1, 428
  %s2019 = scalar_lea.vmem %s2018, 4294967292
  %v2020 = vpack.c.bf16 %v2017, %v577
  %2021 = vst [vmem:[%s2019] sm:$0xff] %v2020
  %s2022 = scalar_lea.vmem %s0, 2392
  %v2023 = vld [vmem:[%s2022] sm:$0xff]
  %s2024 = scalar_lea.vmem %s1, 1196
  %s2025 = scalar_lea.vmem %s2024, 4294967292
  %v2026 = vpack.c.bf16 %v2023, %v580
  %2027 = vst [vmem:[%s2025] sm:$0xff] %v2026
  %s2028 = scalar_lea.vmem %s0, 856
  %v2029 = vld [vmem:[%s2028] sm:$0xff]
  %s2030 = scalar_lea.vmem %s1, 1964
  %s2031 = scalar_lea.vmem %s2030, 4294967292
  %v2032 = vpack.c.bf16 %v2029, %v583
  %2033 = vst [vmem:[%s2031] sm:$0xff] %v2032
  %s2034 = scalar_lea.vmem %s0, 3416
  %v2035 = vld [vmem:[%s2034] sm:$0xff]
  %s2036 = scalar_lea.vmem %s1, 684
  %s2037 = scalar_lea.vmem %s2036, 4294967292
  %v2038 = vpack.c.bf16 %v2035, %v586
  %2039 = vst [vmem:[%s2037] sm:$0xff] %v2038
  %s2040 = scalar_lea.vmem %s0, 1880
  %v2041 = vld [vmem:[%s2040] sm:$0xff]
  %s2042 = scalar_lea.vmem %s1, 1452
  %s2043 = scalar_lea.vmem %s2042, 4294967292
  %v2044 = vpack.c.bf16 %v2041, %v589
  %2045 = vst [vmem:[%s2043] sm:$0xff] %v2044
  %s2046 = scalar_lea.vmem %s0, 344
  %v2047 = vld [vmem:[%s2046] sm:$0xff]
  %s2048 = scalar_lea.vmem %s1, 2220
  %s2049 = scalar_lea.vmem %s2048, 4294967292
  %v2050 = vpack.c.bf16 %v2047, %v592
  %2051 = vst [vmem:[%s2049] sm:$0xff] %v2050
  %s2052 = scalar_lea.vmem %s0, 4456
  %v2053 = vld [vmem:[%s2052] sm:$0xff]
  %s2054 = scalar_lea.vmem %s1, 180
  %s2055 = scalar_lea.vmem %s2054, 4294967292
  %v2056 = vpack.c.bf16 %v2053, %v595
  %2057 = vst [vmem:[%s2055] sm:$0xff] %v2056
  %s2058 = scalar_lea.vmem %s0, 2920
  %v2059 = vld [vmem:[%s2058] sm:$0xff]
  %s2060 = scalar_lea.vmem %s1, 948
  %s2061 = scalar_lea.vmem %s2060, 4294967292
  %v2062 = vpack.c.bf16 %v2059, %v598
  %2063 = vst [vmem:[%s2061] sm:$0xff] %v2062
  %s2064 = scalar_lea.vmem %s0, 1384
  %v2065 = vld [vmem:[%s2064] sm:$0xff]
  %s2066 = scalar_lea.vmem %s1, 1716
  %s2067 = scalar_lea.vmem %s2066, 4294967292
  %v2068 = vpack.c.bf16 %v2065, %v601
  %2069 = vst [vmem:[%s2067] sm:$0xff] %v2068
  %s2070 = scalar_lea.vmem %s0, 3944
  %v2071 = vld [vmem:[%s2070] sm:$0xff]
  %s2072 = scalar_lea.vmem %s1, 436
  %s2073 = scalar_lea.vmem %s2072, 4294967292
  %v2074 = vpack.c.bf16 %v2071, %v604
  %2075 = vst [vmem:[%s2073] sm:$0xff] %v2074
  %s2076 = scalar_lea.vmem %s0, 2408
  %v2077 = vld [vmem:[%s2076] sm:$0xff]
  %s2078 = scalar_lea.vmem %s1, 1204
  %s2079 = scalar_lea.vmem %s2078, 4294967292
  %v2080 = vpack.c.bf16 %v2077, %v607
  %2081 = vst [vmem:[%s2079] sm:$0xff] %v2080
  %s2082 = scalar_lea.vmem %s0, 872
  %v2083 = vld [vmem:[%s2082] sm:$0xff]
  %s2084 = scalar_lea.vmem %s1, 1972
  %s2085 = scalar_lea.vmem %s2084, 4294967292
  %v2086 = vpack.c.bf16 %v2083, %v610
  %2087 = vst [vmem:[%s2085] sm:$0xff] %v2086
  %s2088 = scalar_lea.vmem %s0, 3432
  %v2089 = vld [vmem:[%s2088] sm:$0xff]
  %s2090 = scalar_lea.vmem %s1, 692
  %s2091 = scalar_lea.vmem %s2090, 4294967292
  %v2092 = vpack.c.bf16 %v2089, %v613
  %2093 = vst [vmem:[%s2091] sm:$0xff] %v2092
  %s2094 = scalar_lea.vmem %s0, 1896
  %v2095 = vld [vmem:[%s2094] sm:$0xff]
  %s2096 = scalar_lea.vmem %s1, 1460
  %s2097 = scalar_lea.vmem %s2096, 4294967292
  %v2098 = vpack.c.bf16 %v2095, %v616
  %2099 = vst [vmem:[%s2097] sm:$0xff] %v2098
  %s2100 = scalar_lea.vmem %s0, 360
  %v2101 = vld [vmem:[%s2100] sm:$0xff]
  %s2102 = scalar_lea.vmem %s1, 2228
  %s2103 = scalar_lea.vmem %s2102, 4294967292
  %v2104 = vpack.c.bf16 %v2101, %v619
  %2105 = vst [vmem:[%s2103] sm:$0xff] %v2104
  %s2106 = scalar_lea.vmem %s0, 4472
  %v2107 = vld [vmem:[%s2106] sm:$0xff]
  %s2108 = scalar_lea.vmem %s1, 188
  %s2109 = scalar_lea.vmem %s2108, 4294967292
  %v2110 = vpack.c.bf16 %v2107, %v622
  %2111 = vst [vmem:[%s2109] sm:$0xff] %v2110
  %s2112 = scalar_lea.vmem %s0, 2936
  %v2113 = vld [vmem:[%s2112] sm:$0xff]
  %s2114 = scalar_lea.vmem %s1, 956
  %s2115 = scalar_lea.vmem %s2114, 4294967292
  %v2116 = vpack.c.bf16 %v2113, %v625
  %2117 = vst [vmem:[%s2115] sm:$0xff] %v2116
  %s2118 = scalar_lea.vmem %s0, 1400
  %v2119 = vld [vmem:[%s2118] sm:$0xff]
  %s2120 = scalar_lea.vmem %s1, 1724
  %s2121 = scalar_lea.vmem %s2120, 4294967292
  %v2122 = vpack.c.bf16 %v2119, %v628
  %2123 = vst [vmem:[%s2121] sm:$0xff] %v2122
  %s2124 = scalar_lea.vmem %s0, 3960
  %v2125 = vld [vmem:[%s2124] sm:$0xff]
  %s2126 = scalar_lea.vmem %s1, 444
  %s2127 = scalar_lea.vmem %s2126, 4294967292
  %v2128 = vpack.c.bf16 %v2125, %v631
  %2129 = vst [vmem:[%s2127] sm:$0xff] %v2128
  %s2130 = scalar_lea.vmem %s0, 2424
  %v2131 = vld [vmem:[%s2130] sm:$0xff]
  %s2132 = scalar_lea.vmem %s1, 1212
  %s2133 = scalar_lea.vmem %s2132, 4294967292
  %v2134 = vpack.c.bf16 %v2131, %v634
  %2135 = vst [vmem:[%s2133] sm:$0xff] %v2134
  %s2136 = scalar_lea.vmem %s0, 888
  %v2137 = vld [vmem:[%s2136] sm:$0xff]
  %s2138 = scalar_lea.vmem %s1, 1980
  %s2139 = scalar_lea.vmem %s2138, 4294967292
  %v2140 = vpack.c.bf16 %v2137, %v637
  %2141 = vst [vmem:[%s2139] sm:$0xff] %v2140
  %s2142 = scalar_lea.vmem %s0, 3448
  %v2143 = vld [vmem:[%s2142] sm:$0xff]
  %s2144 = scalar_lea.vmem %s1, 700
  %s2145 = scalar_lea.vmem %s2144, 4294967292
  %v2146 = vpack.c.bf16 %v2143, %v640
  %2147 = vst [vmem:[%s2145] sm:$0xff] %v2146
  %s2148 = scalar_lea.vmem %s0, 1912
  %v2149 = vld [vmem:[%s2148] sm:$0xff]
  %s2150 = scalar_lea.vmem %s1, 1468
  %s2151 = scalar_lea.vmem %s2150, 4294967292
  %v2152 = vpack.c.bf16 %v2149, %v643
  %2153 = vst [vmem:[%s2151] sm:$0xff] %v2152
  %s2154 = scalar_lea.vmem %s0, 376
  %v2155 = vld [vmem:[%s2154] sm:$0xff]
  %s2156 = scalar_lea.vmem %s1, 2236
  %s2157 = scalar_lea.vmem %s2156, 4294967292
  %v2158 = vpack.c.bf16 %v2155, %v646
  %2159 = vst [vmem:[%s2157] sm:$0xff] %v2158
  %s2160 = scalar_lea.vmem %s0, 4488
  %v2161 = vld [vmem:[%s2160] sm:$0xff]
  %s2162 = scalar_lea.vmem %s1, 196
  %s2163 = scalar_lea.vmem %s2162, 4294967292
  %v2164 = vpack.c.bf16 %v2161, %v649
  %2165 = vst [vmem:[%s2163] sm:$0xff] %v2164
  %s2166 = scalar_lea.vmem %s0, 2952
  %v2167 = vld [vmem:[%s2166] sm:$0xff]
  %s2168 = scalar_lea.vmem %s1, 964
  %s2169 = scalar_lea.vmem %s2168, 4294967292
  %v2170 = vpack.c.bf16 %v2167, %v652
  %2171 = vst [vmem:[%s2169] sm:$0xff] %v2170
  %s2172 = scalar_lea.vmem %s0, 1416
  %v2173 = vld [vmem:[%s2172] sm:$0xff]
  %s2174 = scalar_lea.vmem %s1, 1732
  %s2175 = scalar_lea.vmem %s2174, 4294967292
  %v2176 = vpack.c.bf16 %v2173, %v655
  %2177 = vst [vmem:[%s2175] sm:$0xff] %v2176
  %s2178 = scalar_lea.vmem %s0, 3976
  %v2179 = vld [vmem:[%s2178] sm:$0xff]
  %s2180 = scalar_lea.vmem %s1, 452
  %s2181 = scalar_lea.vmem %s2180, 4294967292
  %v2182 = vpack.c.bf16 %v2179, %v658
  %2183 = vst [vmem:[%s2181] sm:$0xff] %v2182
  %s2184 = scalar_lea.vmem %s0, 2440
  %v2185 = vld [vmem:[%s2184] sm:$0xff]
  %s2186 = scalar_lea.vmem %s1, 1220
  %s2187 = scalar_lea.vmem %s2186, 4294967292
  %v2188 = vpack.c.bf16 %v2185, %v661
  %2189 = vst [vmem:[%s2187] sm:$0xff] %v2188
  %s2190 = scalar_lea.vmem %s0, 904
  %v2191 = vld [vmem:[%s2190] sm:$0xff]
  %s2192 = scalar_lea.vmem %s1, 1988
  %s2193 = scalar_lea.vmem %s2192, 4294967292
  %v2194 = vpack.c.bf16 %v2191, %v664
  %2195 = vst [vmem:[%s2193] sm:$0xff] %v2194
  %s2196 = scalar_lea.vmem %s0, 3464
  %v2197 = vld [vmem:[%s2196] sm:$0xff]
  %s2198 = scalar_lea.vmem %s1, 708
  %s2199 = scalar_lea.vmem %s2198, 4294967292
  %v2200 = vpack.c.bf16 %v2197, %v667
  %2201 = vst [vmem:[%s2199] sm:$0xff] %v2200
  %s2202 = scalar_lea.vmem %s0, 1928
  %v2203 = vld [vmem:[%s2202] sm:$0xff]
  %s2204 = scalar_lea.vmem %s1, 1476
  %s2205 = scalar_lea.vmem %s2204, 4294967292
  %v2206 = vpack.c.bf16 %v2203, %v670
  %2207 = vst [vmem:[%s2205] sm:$0xff] %v2206
  %s2208 = scalar_lea.vmem %s0, 392
  %v2209 = vld [vmem:[%s2208] sm:$0xff]
  %s2210 = scalar_lea.vmem %s1, 2244
  %s2211 = scalar_lea.vmem %s2210, 4294967292
  %v2212 = vpack.c.bf16 %v2209, %v673
  %2213 = vst [vmem:[%s2211] sm:$0xff] %v2212
  %s2214 = scalar_lea.vmem %s0, 4504
  %v2215 = vld [vmem:[%s2214] sm:$0xff]
  %s2216 = scalar_lea.vmem %s1, 204
  %s2217 = scalar_lea.vmem %s2216, 4294967292
  %v2218 = vpack.c.bf16 %v2215, %v676
  %2219 = vst [vmem:[%s2217] sm:$0xff] %v2218
  %s2220 = scalar_lea.vmem %s0, 2968
  %v2221 = vld [vmem:[%s2220] sm:$0xff]
  %s2222 = scalar_lea.vmem %s1, 972
  %s2223 = scalar_lea.vmem %s2222, 4294967292
  %v2224 = vpack.c.bf16 %v2221, %v679
  %2225 = vst [vmem:[%s2223] sm:$0xff] %v2224
  %s2226 = scalar_lea.vmem %s0, 1432
  %v2227 = vld [vmem:[%s2226] sm:$0xff]
  %s2228 = scalar_lea.vmem %s1, 1740
  %s2229 = scalar_lea.vmem %s2228, 4294967292
  %v2230 = vpack.c.bf16 %v2227, %v682
  %2231 = vst [vmem:[%s2229] sm:$0xff] %v2230
  %s2232 = scalar_lea.vmem %s0, 3992
  %v2233 = vld [vmem:[%s2232] sm:$0xff]
  %s2234 = scalar_lea.vmem %s1, 460
  %s2235 = scalar_lea.vmem %s2234, 4294967292
  %v2236 = vpack.c.bf16 %v2233, %v685
  %2237 = vst [vmem:[%s2235] sm:$0xff] %v2236
  %s2238 = scalar_lea.vmem %s0, 2456
  %v2239 = vld [vmem:[%s2238] sm:$0xff]
  %s2240 = scalar_lea.vmem %s1, 1228
  %s2241 = scalar_lea.vmem %s2240, 4294967292
  %v2242 = vpack.c.bf16 %v2239, %v688
  %2243 = vst [vmem:[%s2241] sm:$0xff] %v2242
  %s2244 = scalar_lea.vmem %s0, 920
  %v2245 = vld [vmem:[%s2244] sm:$0xff]
  %s2246 = scalar_lea.vmem %s1, 1996
  %s2247 = scalar_lea.vmem %s2246, 4294967292
  %v2248 = vpack.c.bf16 %v2245, %v691
  %2249 = vst [vmem:[%s2247] sm:$0xff] %v2248
  %s2250 = scalar_lea.vmem %s0, 3480
  %v2251 = vld [vmem:[%s2250] sm:$0xff]
  %s2252 = scalar_lea.vmem %s1, 716
  %s2253 = scalar_lea.vmem %s2252, 4294967292
  %v2254 = vpack.c.bf16 %v2251, %v694
  %2255 = vst [vmem:[%s2253] sm:$0xff] %v2254
  %s2256 = scalar_lea.vmem %s0, 1944
  %v2257 = vld [vmem:[%s2256] sm:$0xff]
  %s2258 = scalar_lea.vmem %s1, 1484
  %s2259 = scalar_lea.vmem %s2258, 4294967292
  %v2260 = vpack.c.bf16 %v2257, %v697
  %2261 = vst [vmem:[%s2259] sm:$0xff] %v2260
  %s2262 = scalar_lea.vmem %s0, 408
  %v2263 = vld [vmem:[%s2262] sm:$0xff]
  %s2264 = scalar_lea.vmem %s1, 2252
  %s2265 = scalar_lea.vmem %s2264, 4294967292
  %v2266 = vpack.c.bf16 %v2263, %v700
  %2267 = vst [vmem:[%s2265] sm:$0xff] %v2266
  %s2268 = scalar_lea.vmem %s0, 4520
  %v2269 = vld [vmem:[%s2268] sm:$0xff]
  %s2270 = scalar_lea.vmem %s1, 212
  %s2271 = scalar_lea.vmem %s2270, 4294967292
  %v2272 = vpack.c.bf16 %v2269, %v703
  %2273 = vst [vmem:[%s2271] sm:$0xff] %v2272
  %s2274 = scalar_lea.vmem %s0, 2984
  %v2275 = vld [vmem:[%s2274] sm:$0xff]
  %s2276 = scalar_lea.vmem %s1, 980
  %s2277 = scalar_lea.vmem %s2276, 4294967292
  %v2278 = vpack.c.bf16 %v2275, %v706
  %2279 = vst [vmem:[%s2277] sm:$0xff] %v2278
  %s2280 = scalar_lea.vmem %s0, 1448
  %v2281 = vld [vmem:[%s2280] sm:$0xff]
  %s2282 = scalar_lea.vmem %s1, 1748
  %s2283 = scalar_lea.vmem %s2282, 4294967292
  %v2284 = vpack.c.bf16 %v2281, %v709
  %2285 = vst [vmem:[%s2283] sm:$0xff] %v2284
  %s2286 = scalar_lea.vmem %s0, 4008
  %v2287 = vld [vmem:[%s2286] sm:$0xff]
  %s2288 = scalar_lea.vmem %s1, 468
  %s2289 = scalar_lea.vmem %s2288, 4294967292
  %v2290 = vpack.c.bf16 %v2287, %v712
  %2291 = vst [vmem:[%s2289] sm:$0xff] %v2290
  %s2292 = scalar_lea.vmem %s0, 2472
  %v2293 = vld [vmem:[%s2292] sm:$0xff]
  %s2294 = scalar_lea.vmem %s1, 1236
  %s2295 = scalar_lea.vmem %s2294, 4294967292
  %v2296 = vpack.c.bf16 %v2293, %v715
  %2297 = vst [vmem:[%s2295] sm:$0xff] %v2296
  %s2298 = scalar_lea.vmem %s0, 936
  %v2299 = vld [vmem:[%s2298] sm:$0xff]
  %s2300 = scalar_lea.vmem %s1, 2004
  %s2301 = scalar_lea.vmem %s2300, 4294967292
  %v2302 = vpack.c.bf16 %v2299, %v718
  %2303 = vst [vmem:[%s2301] sm:$0xff] %v2302
  %s2304 = scalar_lea.vmem %s0, 3496
  %v2305 = vld [vmem:[%s2304] sm:$0xff]
  %s2306 = scalar_lea.vmem %s1, 724
  %s2307 = scalar_lea.vmem %s2306, 4294967292
  %v2308 = vpack.c.bf16 %v2305, %v721
  %2309 = vst [vmem:[%s2307] sm:$0xff] %v2308
  %s2310 = scalar_lea.vmem %s0, 1960
  %v2311 = vld [vmem:[%s2310] sm:$0xff]
  %s2312 = scalar_lea.vmem %s1, 1492
  %s2313 = scalar_lea.vmem %s2312, 4294967292
  %v2314 = vpack.c.bf16 %v2311, %v724
  %2315 = vst [vmem:[%s2313] sm:$0xff] %v2314
  %s2316 = scalar_lea.vmem %s0, 424
  %v2317 = vld [vmem:[%s2316] sm:$0xff]
  %s2318 = scalar_lea.vmem %s1, 2260
  %s2319 = scalar_lea.vmem %s2318, 4294967292
  %v2320 = vpack.c.bf16 %v2317, %v727
  %2321 = vst [vmem:[%s2319] sm:$0xff] %v2320
  %s2322 = scalar_lea.vmem %s0, 4536
  %v2323 = vld [vmem:[%s2322] sm:$0xff]
  %s2324 = scalar_lea.vmem %s1, 220
  %s2325 = scalar_lea.vmem %s2324, 4294967292
  %v2326 = vpack.c.bf16 %v2323, %v730
  %2327 = vst [vmem:[%s2325] sm:$0xff] %v2326
  %s2328 = scalar_lea.vmem %s0, 3000
  %v2329 = vld [vmem:[%s2328] sm:$0xff]
  %s2330 = scalar_lea.vmem %s1, 988
  %s2331 = scalar_lea.vmem %s2330, 4294967292
  %v2332 = vpack.c.bf16 %v2329, %v733
  %2333 = vst [vmem:[%s2331] sm:$0xff] %v2332
  %s2334 = scalar_lea.vmem %s0, 1464
  %v2335 = vld [vmem:[%s2334] sm:$0xff]
  %s2336 = scalar_lea.vmem %s1, 1756
  %s2337 = scalar_lea.vmem %s2336, 4294967292
  %v2338 = vpack.c.bf16 %v2335, %v736
  %2339 = vst [vmem:[%s2337] sm:$0xff] %v2338
  %s2340 = scalar_lea.vmem %s0, 4024
  %v2341 = vld [vmem:[%s2340] sm:$0xff]
  %s2342 = scalar_lea.vmem %s1, 476
  %s2343 = scalar_lea.vmem %s2342, 4294967292
  %v2344 = vpack.c.bf16 %v2341, %v739
  %2345 = vst [vmem:[%s2343] sm:$0xff] %v2344
  %s2346 = scalar_lea.vmem %s0, 2488
  %v2347 = vld [vmem:[%s2346] sm:$0xff]
  %s2348 = scalar_lea.vmem %s1, 1244
  %s2349 = scalar_lea.vmem %s2348, 4294967292
  %v2350 = vpack.c.bf16 %v2347, %v742
  %2351 = vst [vmem:[%s2349] sm:$0xff] %v2350
  %s2352 = scalar_lea.vmem %s0, 952
  %v2353 = vld [vmem:[%s2352] sm:$0xff]
  %s2354 = scalar_lea.vmem %s1, 2012
  %s2355 = scalar_lea.vmem %s2354, 4294967292
  %v2356 = vpack.c.bf16 %v2353, %v745
  %2357 = vst [vmem:[%s2355] sm:$0xff] %v2356
  %s2358 = scalar_lea.vmem %s0, 3512
  %v2359 = vld [vmem:[%s2358] sm:$0xff]
  %s2360 = scalar_lea.vmem %s1, 732
  %s2361 = scalar_lea.vmem %s2360, 4294967292
  %v2362 = vpack.c.bf16 %v2359, %v748
  %2363 = vst [vmem:[%s2361] sm:$0xff] %v2362
  %s2364 = scalar_lea.vmem %s0, 1976
  %v2365 = vld [vmem:[%s2364] sm:$0xff]
  %s2366 = scalar_lea.vmem %s1, 1500
  %s2367 = scalar_lea.vmem %s2366, 4294967292
  %v2368 = vpack.c.bf16 %v2365, %v751
  %2369 = vst [vmem:[%s2367] sm:$0xff] %v2368
  %s2370 = scalar_lea.vmem %s0, 440
  %v2371 = vld [vmem:[%s2370] sm:$0xff]
  %s2372 = scalar_lea.vmem %s1, 2268
  %s2373 = scalar_lea.vmem %s2372, 4294967292
  %v2374 = vpack.c.bf16 %v2371, %v754
  %2375 = vst [vmem:[%s2373] sm:$0xff] %v2374
  %s2376 = scalar_lea.vmem %s0, 4552
  %v2377 = vld [vmem:[%s2376] sm:$0xff]
  %s2378 = scalar_lea.vmem %s1, 228
  %s2379 = scalar_lea.vmem %s2378, 4294967292
  %v2380 = vpack.c.bf16 %v2377, %v757
  %2381 = vst [vmem:[%s2379] sm:$0xff] %v2380
  %s2382 = scalar_lea.vmem %s0, 3016
  %v2383 = vld [vmem:[%s2382] sm:$0xff]
  %s2384 = scalar_lea.vmem %s1, 996
  %s2385 = scalar_lea.vmem %s2384, 4294967292
  %v2386 = vpack.c.bf16 %v2383, %v760
  %2387 = vst [vmem:[%s2385] sm:$0xff] %v2386
  %s2388 = scalar_lea.vmem %s0, 1480
  %v2389 = vld [vmem:[%s2388] sm:$0xff]
  %s2390 = scalar_lea.vmem %s1, 1764
  %s2391 = scalar_lea.vmem %s2390, 4294967292
  %v2392 = vpack.c.bf16 %v2389, %v763
  %2393 = vst [vmem:[%s2391] sm:$0xff] %v2392
  %s2394 = scalar_lea.vmem %s0, 4040
  %v2395 = vld [vmem:[%s2394] sm:$0xff]
  %s2396 = scalar_lea.vmem %s1, 484
  %s2397 = scalar_lea.vmem %s2396, 4294967292
  %v2398 = vpack.c.bf16 %v2395, %v766
  %2399 = vst [vmem:[%s2397] sm:$0xff] %v2398
  %s2400 = scalar_lea.vmem %s0, 2504
  %v2401 = vld [vmem:[%s2400] sm:$0xff]
  %s2402 = scalar_lea.vmem %s1, 1252
  %s2403 = scalar_lea.vmem %s2402, 4294967292
  %v2404 = vpack.c.bf16 %v2401, %v769
  %2405 = vst [vmem:[%s2403] sm:$0xff] %v2404
  %s2406 = scalar_lea.vmem %s0, 968
  %v2407 = vld [vmem:[%s2406] sm:$0xff]
  %s2408 = scalar_lea.vmem %s1, 2020
  %s2409 = scalar_lea.vmem %s2408, 4294967292
  %v2410 = vpack.c.bf16 %v2407, %v772
  %2411 = vst [vmem:[%s2409] sm:$0xff] %v2410
  %s2412 = scalar_lea.vmem %s0, 3528
  %v2413 = vld [vmem:[%s2412] sm:$0xff]
  %s2414 = scalar_lea.vmem %s1, 740
  %s2415 = scalar_lea.vmem %s2414, 4294967292
  %v2416 = vpack.c.bf16 %v2413, %v775
  %2417 = vst [vmem:[%s2415] sm:$0xff] %v2416
  %s2418 = scalar_lea.vmem %s0, 1992
  %v2419 = vld [vmem:[%s2418] sm:$0xff]
  %s2420 = scalar_lea.vmem %s1, 1508
  %s2421 = scalar_lea.vmem %s2420, 4294967292
  %v2422 = vpack.c.bf16 %v2419, %v778
  %2423 = vst [vmem:[%s2421] sm:$0xff] %v2422
  %s2424 = scalar_lea.vmem %s0, 456
  %v2425 = vld [vmem:[%s2424] sm:$0xff]
  %s2426 = scalar_lea.vmem %s1, 2276
  %s2427 = scalar_lea.vmem %s2426, 4294967292
  %v2428 = vpack.c.bf16 %v2425, %v781
  %2429 = vst [vmem:[%s2427] sm:$0xff] %v2428
  %s2430 = scalar_lea.vmem %s0, 4568
  %v2431 = vld [vmem:[%s2430] sm:$0xff]
  %s2432 = scalar_lea.vmem %s1, 236
  %s2433 = scalar_lea.vmem %s2432, 4294967292
  %v2434 = vpack.c.bf16 %v2431, %v784
  %2435 = vst [vmem:[%s2433] sm:$0xff] %v2434
  %s2436 = scalar_lea.vmem %s0, 3032
  %v2437 = vld [vmem:[%s2436] sm:$0xff]
  %s2438 = scalar_lea.vmem %s1, 1004
  %s2439 = scalar_lea.vmem %s2438, 4294967292
  %v2440 = vpack.c.bf16 %v2437, %v787
  %2441 = vst [vmem:[%s2439] sm:$0xff] %v2440
  %s2442 = scalar_lea.vmem %s0, 1496
  %v2443 = vld [vmem:[%s2442] sm:$0xff]
  %s2444 = scalar_lea.vmem %s1, 1772
  %s2445 = scalar_lea.vmem %s2444, 4294967292
  %v2446 = vpack.c.bf16 %v2443, %v790
  %2447 = vst [vmem:[%s2445] sm:$0xff] %v2446
  %s2448 = scalar_lea.vmem %s0, 4056
  %v2449 = vld [vmem:[%s2448] sm:$0xff]
  %s2450 = scalar_lea.vmem %s1, 492
  %s2451 = scalar_lea.vmem %s2450, 4294967292
  %v2452 = vpack.c.bf16 %v2449, %v793
  %2453 = vst [vmem:[%s2451] sm:$0xff] %v2452
  %s2454 = scalar_lea.vmem %s0, 2520
  %v2455 = vld [vmem:[%s2454] sm:$0xff]
  %s2456 = scalar_lea.vmem %s1, 1260
  %s2457 = scalar_lea.vmem %s2456, 4294967292
  %v2458 = vpack.c.bf16 %v2455, %v796
  %2459 = vst [vmem:[%s2457] sm:$0xff] %v2458
  %s2460 = scalar_lea.vmem %s0, 984
  %v2461 = vld [vmem:[%s2460] sm:$0xff]
  %s2462 = scalar_lea.vmem %s1, 2028
  %s2463 = scalar_lea.vmem %s2462, 4294967292
  %v2464 = vpack.c.bf16 %v2461, %v799
  %2465 = vst [vmem:[%s2463] sm:$0xff] %v2464
  %s2466 = scalar_lea.vmem %s0, 3544
  %v2467 = vld [vmem:[%s2466] sm:$0xff]
  %s2468 = scalar_lea.vmem %s1, 748
  %s2469 = scalar_lea.vmem %s2468, 4294967292
  %v2470 = vpack.c.bf16 %v2467, %v802
  %2471 = vst [vmem:[%s2469] sm:$0xff] %v2470
  %s2472 = scalar_lea.vmem %s0, 2008
  %v2473 = vld [vmem:[%s2472] sm:$0xff]
  %s2474 = scalar_lea.vmem %s1, 1516
  %s2475 = scalar_lea.vmem %s2474, 4294967292
  %v2476 = vpack.c.bf16 %v2473, %v805
  %2477 = vst [vmem:[%s2475] sm:$0xff] %v2476
  %s2478 = scalar_lea.vmem %s0, 472
  %v2479 = vld [vmem:[%s2478] sm:$0xff]
  %s2480 = scalar_lea.vmem %s1, 2284
  %s2481 = scalar_lea.vmem %s2480, 4294967292
  %v2482 = vpack.c.bf16 %v2479, %v808
  %2483 = vst [vmem:[%s2481] sm:$0xff] %v2482
  %s2484 = scalar_lea.vmem %s0, 4584
  %v2485 = vld [vmem:[%s2484] sm:$0xff]
  %s2486 = scalar_lea.vmem %s1, 244
  %s2487 = scalar_lea.vmem %s2486, 4294967292
  %v2488 = vpack.c.bf16 %v2485, %v811
  %2489 = vst [vmem:[%s2487] sm:$0xff] %v2488
  %s2490 = scalar_lea.vmem %s0, 3048
  %v2491 = vld [vmem:[%s2490] sm:$0xff]
  %s2492 = scalar_lea.vmem %s1, 1012
  %s2493 = scalar_lea.vmem %s2492, 4294967292
  %v2494 = vpack.c.bf16 %v2491, %v814
  %2495 = vst [vmem:[%s2493] sm:$0xff] %v2494
  %s2496 = scalar_lea.vmem %s0, 1512
  %v2497 = vld [vmem:[%s2496] sm:$0xff]
  %s2498 = scalar_lea.vmem %s1, 1780
  %s2499 = scalar_lea.vmem %s2498, 4294967292
  %v2500 = vpack.c.bf16 %v2497, %v817
  %2501 = vst [vmem:[%s2499] sm:$0xff] %v2500
  %s2502 = scalar_lea.vmem %s0, 4072
  %v2503 = vld [vmem:[%s2502] sm:$0xff]
  %s2504 = scalar_lea.vmem %s1, 500
  %s2505 = scalar_lea.vmem %s2504, 4294967292
  %v2506 = vpack.c.bf16 %v2503, %v820
  %2507 = vst [vmem:[%s2505] sm:$0xff] %v2506
  %s2508 = scalar_lea.vmem %s0, 2536
  %v2509 = vld [vmem:[%s2508] sm:$0xff]
  %s2510 = scalar_lea.vmem %s1, 1268
  %s2511 = scalar_lea.vmem %s2510, 4294967292
  %v2512 = vpack.c.bf16 %v2509, %v823
  %2513 = vst [vmem:[%s2511] sm:$0xff] %v2512
  %s2514 = scalar_lea.vmem %s0, 1000
  %v2515 = vld [vmem:[%s2514] sm:$0xff]
  %s2516 = scalar_lea.vmem %s1, 2036
  %s2517 = scalar_lea.vmem %s2516, 4294967292
  %v2518 = vpack.c.bf16 %v2515, %v826
  %2519 = vst [vmem:[%s2517] sm:$0xff] %v2518
  %s2520 = scalar_lea.vmem %s0, 3560
  %v2521 = vld [vmem:[%s2520] sm:$0xff]
  %s2522 = scalar_lea.vmem %s1, 756
  %s2523 = scalar_lea.vmem %s2522, 4294967292
  %v2524 = vpack.c.bf16 %v2521, %v829
  %2525 = vst [vmem:[%s2523] sm:$0xff] %v2524
  %s2526 = scalar_lea.vmem %s0, 2024
  %v2527 = vld [vmem:[%s2526] sm:$0xff]
  %s2528 = scalar_lea.vmem %s1, 1524
  %s2529 = scalar_lea.vmem %s2528, 4294967292
  %v2530 = vpack.c.bf16 %v2527, %v832
  %2531 = vst [vmem:[%s2529] sm:$0xff] %v2530
  %s2532 = scalar_lea.vmem %s0, 488
  %v2533 = vld [vmem:[%s2532] sm:$0xff]
  %s2534 = scalar_lea.vmem %s1, 2292
  %s2535 = scalar_lea.vmem %s2534, 4294967292
  %v2536 = vpack.c.bf16 %v2533, %v835
  %2537 = vst [vmem:[%s2535] sm:$0xff] %v2536
  %s2538 = scalar_lea.vmem %s0, 4600
  %v2539 = vld [vmem:[%s2538] sm:$0xff]
  %s2540 = scalar_lea.vmem %s1, 252
  %s2541 = scalar_lea.vmem %s2540, 4294967292
  %v2542 = vpack.c.bf16 %v2539, %v838
  %2543 = vst [vmem:[%s2541] sm:$0xff] %v2542
  %s2544 = scalar_lea.vmem %s0, 3064
  %v2545 = vld [vmem:[%s2544] sm:$0xff]
  %s2546 = scalar_lea.vmem %s1, 1020
  %s2547 = scalar_lea.vmem %s2546, 4294967292
  %v2548 = vpack.c.bf16 %v2545, %v841
  %2549 = vst [vmem:[%s2547] sm:$0xff] %v2548
  %s2550 = scalar_lea.vmem %s0, 1528
  %v2551 = vld [vmem:[%s2550] sm:$0xff]
  %s2552 = scalar_lea.vmem %s1, 1788
  %s2553 = scalar_lea.vmem %s2552, 4294967292
  %v2554 = vpack.c.bf16 %v2551, %v844
  %2555 = vst [vmem:[%s2553] sm:$0xff] %v2554
  %s2556 = scalar_lea.vmem %s0, 4088
  %v2557 = vld [vmem:[%s2556] sm:$0xff]
  %s2558 = scalar_lea.vmem %s1, 508
  %s2559 = scalar_lea.vmem %s2558, 4294967292
  %v2560 = vpack.c.bf16 %v2557, %v847
  %2561 = vst [vmem:[%s2559] sm:$0xff] %v2560
  %s2562 = scalar_lea.vmem %s0, 2552
  %v2563 = vld [vmem:[%s2562] sm:$0xff]
  %s2564 = scalar_lea.vmem %s1, 1276
  %s2565 = scalar_lea.vmem %s2564, 4294967292
  %v2566 = vpack.c.bf16 %v2563, %v850
  %2567 = vst [vmem:[%s2565] sm:$0xff] %v2566
  %s2568 = scalar_lea.vmem %s0, 1016
  %v2569 = vld [vmem:[%s2568] sm:$0xff]
  %s2570 = scalar_lea.vmem %s1, 2044
  %s2571 = scalar_lea.vmem %s2570, 4294967292
  %v2572 = vpack.c.bf16 %v2569, %v853
  %2573 = vst [vmem:[%s2571] sm:$0xff] %v2572
  %s2574 = scalar_lea.vmem %s0, 3576
  %v2575 = vld [vmem:[%s2574] sm:$0xff]
  %s2576 = scalar_lea.vmem %s1, 764
  %s2577 = scalar_lea.vmem %s2576, 4294967292
  %v2578 = vpack.c.bf16 %v2575, %v856
  %2579 = vst [vmem:[%s2577] sm:$0xff] %v2578
  %s2580 = scalar_lea.vmem %s0, 2040
  %v2581 = vld [vmem:[%s2580] sm:$0xff]
  %s2582 = scalar_lea.vmem %s1, 1532
  %s2583 = scalar_lea.vmem %s2582, 4294967292
  %v2584 = vpack.c.bf16 %v2581, %v859
  %2585 = vst [vmem:[%s2583] sm:$0xff] %v2584
  %s2586 = scalar_lea.vmem %s0, 504
  %v2587 = vld [vmem:[%s2586] sm:$0xff]
  %s2588 = scalar_lea.vmem %s1, 2300
  %s2589 = scalar_lea.vmem %s2588, 4294967292
  %v2590 = vpack.c.bf16 %v2587, %v862
  %2591 = vst [vmem:[%s2589] sm:$0xff] %v2590

// kernel: reverse.12
$region0: #{reverse.12}
  #allocation0 [shape = 's32[1]{0}', space=sflag, size = 0x4, scoped, tag = 'scoped memory for reverse.12']
  %s0 = inlined_call_operand.vmem [shape: f32[3,3,512,512], index: 0, kind: input, shape index: {}]
  %s1 = inlined_call_operand.vmem [shape: bf16[3,3,512,512], index: 1, kind: output, shape index: {}]
  loop: start=0, step=1, limit=28
  $region2: #{reverse.12} parent=0 // loop_pre_header
    _
  $region3: #{reverse.12} parent=0 // loop_header
    %s3 = sphi 0, %s7
    %p4 = scmp.ge.s32.totalorder %s3, 28
    %s18 = sphi 0, %s76
    %s19 = sphi 0, %s72
    %s20 = sphi 0, %s68
    %s21 = sphi 0, %s64
    %s22 = sphi 0, %s18
    %s23 = sphi 0, %s19
    %s24 = sphi 0, %s20
    %s25 = sphi 0, %s21
    %s26 = sphi 0, %s22
    %s27 = sphi 0, %s23
    %s28 = sphi 0, %s24
    %s29 = sphi 0, %s25
    %s30 = sphi 0, %s26
    %s31 = sphi 0, %s27
    %s32 = sphi 0, %s28
    %s33 = sphi 0, %s29
    %s34 = sphi 0, %s30
    %s35 = sphi 0, %s31
    %s36 = sphi 0, %s32
    %s37 = sphi 0, %s33
    %s38 = sphi 0, %s34
    %s39 = sphi 0, %s35
    %s40 = sphi 0, %s36
    %s41 = sphi 0, %s37
    %s42 = sphi 0, %s38
    %s43 = sphi 0, %s39
    %s44 = sphi 0, %s40
    %s45 = sphi 0, %s41
    %s46 = sphi 0, %s42
    %s47 = sphi 0, %s43
    %s48 = sphi 0, %s44
    %s49 = sphi 0, %s45
    %s50 = sphi 0, %s46
    %s51 = sphi 0, %s47
    %s52 = sphi 0, %s48
    %s53 = sphi 0, %s49
    %s54 = sphi 0, %s50
    %s55 = sphi 0, %s51
    %s56 = sphi 0, %s52
    %s57 = sphi 0, %s53
    %s58 = sphi 0, %s54
    %s59 = sphi 0, %s55
    %s60 = sphi 0, %s56
    %s61 = sphi 0, %s57
  $region4: #{reverse.12} parent=0 // loop_header_branch
    %6 = sbr.rel (%p4) target = $region8
  $region5: #{reverse.12} parent=0 // loop_body
    %s8 = ssub.s32 %s3, 1
    %s9 = ssub.s32 %s3, 2
    %s10 = ssub.s32 %s3, 3
    %s11 = ssub.s32 %s3, 4
    %s12 = ssub.s32 %s3, 5
    %s13 = ssub.s32 %s3, 6
    %s14 = ssub.s32 %s3, 7
    %s15 = ssub.s32 %s3, 8
    %s16 = ssub.s32 %s3, 9
    %s17 = ssub.s32 %s3, 10
    %s62 = sadd.s32 1, %s21
    %p63 = scmp.ge.s32.totalorder %s62, 1
    %s64 = scalar_select %p63, 0, %s62
    %s65 = sadd.s32 1, %s20
    %s66 = scalar_select %p63, %s65, %s20
    %p67 = scmp.ge.s32.totalorder %s66, 2
    %s68 = scalar_select %p67, 0, %s66
    %s69 = sadd.s32 1, %s19
    %s70 = scalar_select %p67, %s69, %s19
    %p71 = scmp.ge.s32.totalorder %s70, 3
    %s72 = scalar_select %p71, 0, %s70
    %s73 = sadd.s32 1, %s18
    %s74 = scalar_select %p71, %s73, %s18
    %p75 = scmp.ge.s32.totalorder %s74, 3
    %s76 = scalar_select %p75, 0, %s74
    %p77 = scmp.le.s32.totalorder 5, %s3
    %p78 = scmp.lt.s32.totalorder %s3, 23
    %p79 = pnand %p77, %p78
    %p80 = pneg %p79
    // Predicated region
    $region9: #{reverse.12} parent=5 // pred_check
      _
    $region10: #{reverse.12} parent=5 // pred_check_branch
      %82 = sbr.rel (%p79) target = $region12
    $region11: #{reverse.12} parent=5 // pred_region
      %s83 = ssub.s32 %s3, 5
    $region12: #{reverse.12} parent=5 // pred_fallthru
      _
    %p84 = scmp.lt.s32.totalorder %s3, 18
    // Predicated region
    $region13: #{reverse.12} parent=5 // pred_check
      %p85 = pneg %p84
    $region14: #{reverse.12} parent=5 // pred_check_branch
      %87 = sbr.rel (%p85) target = $region16
    $region15: #{reverse.12} parent=5 // pred_region
      %s88 = ssub.s32 2, %s18
      %s89 = ssub.s32 2, %s19
      %s90 = smul.u32 32, %s20
      %s91 = smul.u32 4, %s21
      %p92 = scmp.lt.s32.totalorder %s88, 2
      %s93 = scalar_select %p92, %s88, 2
      %p94 = scmp.lt.s32.totalorder %s89, 2
      %s95 = scalar_select %p94, %s89, 2
      %p96 = scmp.lt.s32.totalorder %s90, 63
      %s97 = scalar_select %p96, %s90, 63
      %p98 = scmp.lt.s32.totalorder %s91, 3
      %s99 = scalar_select %p98, %s91, 3
      %s100 = smul.addr %s97, 4
      %s101 = sadd.s32 %s99, %s100
      %s102 = smul.addr %s95, 256
      %s103 = sadd.s32 %s101, %s102
      %s104 = smul.addr %s93, 768
      %s105 = sadd.s32 %s103, %s104
      %s106 = smul.addr %s105, 8
      %s107 = scalar_lea.vmem %s0, %s106
      %s108 = ssub.s32 2, %s18
      %s109 = ssub.s32 2, %s19
      %s110 = smul.u32 32, %s20
      %s111 = smul.u32 4, %s21
    $region16: #{reverse.12} parent=5 // pred_fallthru
      _
    %p112 = scmp.le.s32.totalorder 5, %s3
    %p113 = scmp.lt.s32.totalorder %s3, 23
    %p114 = pnand %p112, %p113
    %p115 = pneg %p114
    // Predicated region
    $region17: #{reverse.12} parent=5 // pred_check
      _
    $region18: #{reverse.12} parent=5 // pred_check_branch
      %117 = sbr.rel (%p114) target = $region20
    $region19: #{reverse.12} parent=5 // pred_region
      %s118 = ssub.s32 %s3, 5
      %s119 = ssub.s32 2, %s38
      %s120 = ssub.s32 2, %s39
      %s121 = smul.u32 32, %s40
      %s122 = smul.u32 4, %s41
      %p123 = scmp.lt.s32.totalorder %s119, 2
      %s124 = scalar_select %p123, %s119, 2
      %p125 = scmp.lt.s32.totalorder %s120, 2
      %s126 = scalar_select %p125, %s120, 2
      %p127 = scmp.lt.s32.totalorder %s121, 63
      %s128 = scalar_select %p127, %s121, 63
      %p129 = scmp.lt.s32.totalorder %s122, 3
      %s130 = scalar_select %p129, %s122, 3
      %s131 = smul.addr %s128, 4
      %s132 = sadd.s32 %s130, %s131
      %s133 = smul.addr %s126, 256
      %s134 = sadd.s32 %s132, %s133
      %s135 = smul.addr %s124, 768
      %s136 = sadd.s32 %s134, %s135
      %s137 = smul.addr %s136, 8
      %s138 = scalar_lea.vmem %s0, %s137
      %s139 = smul.u32 32, %s40
      %s140 = smul.u32 4, %s41
      %p141 = scmp.lt.s32.totalorder %s38, 2
      %s142 = scalar_select %p141, %s38, 2
      %p143 = scmp.lt.s32.totalorder %s39, 2
      %s144 = scalar_select %p143, %s39, 2
      %p145 = scmp.lt.s32.totalorder %s139, 63
      %s146 = scalar_select %p145, %s139, 63
      %p147 = scmp.lt.s32.totalorder %s140, 3
      %s148 = scalar_select %p147, %s140, 3
      %s149 = smul.addr %s146, 4
      %s150 = sadd.s32 %s148, %s149
      %s151 = smul.addr %s144, 256
      %s152 = sadd.s32 %s150, %s151
      %s153 = smul.addr %s142, 768
      %s154 = sadd.s32 %s152, %s153
      %s155 = smul.addr %s154, 4
      %s156 = scalar_lea.vmem %s1, %s155
      %s157 = smul.u32 32, %s40
      %s158 = smul.u32 4, %s41
      %s159 = ssub.s32 2, %s38
      %s160 = ssub.s32 2, %s39
      %s161 = smul.u32 32, %s40
      %s162 = smul.u32 4, %s41
      %p163 = scmp.lt.s32.totalorder %s159, 2
      %s164 = scalar_select %p163, %s159, 2
      %p165 = scmp.lt.s32.totalorder %s160, 2
      %s166 = scalar_select %p165, %s160, 2
      %p167 = scmp.lt.s32.totalorder %s161, 63
      %s168 = scalar_select %p167, %s161, 63
      %p169 = scmp.lt.s32.totalorder %s162, 3
      %s170 = scalar_select %p169, %s162, 3
      %s171 = smul.addr %s168, 4
      %s172 = sadd.s32 %s170, %s171
      %s173 = smul.addr %s166, 256
      %s174 = sadd.s32 %s172, %s173
      %s175 = smul.addr %s164, 768
      %s176 = sadd.s32 %s174, %s175
      %s177 = smul.addr %s176, 8
      %s178 = scalar_lea.vmem %s0, %s177
      %s179 = ssub.s32 2, %s38
      %s180 = ssub.s32 2, %s39
      %s181 = smul.u32 32, %s40
      %s182 = smul.u32 4, %s41
      %s183 = smul.u32 32, %s40
      %s184 = smul.u32 4, %s41
      %p185 = scmp.lt.s32.totalorder %s38, 2
      %s186 = scalar_select %p185, %s38, 2
      %p187 = scmp.lt.s32.totalorder %s39, 2
      %s188 = scalar_select %p187, %s39, 2
      %p189 = scmp.lt.s32.totalorder %s183, 63
      %s190 = scalar_select %p189, %s183, 63
      %p191 = scmp.lt.s32.totalorder %s184, 3
      %s192 = scalar_select %p191, %s184, 3
      %s193 = smul.addr %s190, 4
      %s194 = sadd.s32 %s192, %s193
      %s195 = smul.addr %s188, 256
      %s196 = sadd.s32 %s194, %s195
      %s197 = smul.addr %s186, 768
      %s198 = sadd.s32 %s196, %s197
      %s199 = smul.addr %s198, 4
      %s200 = scalar_lea.vmem %s1, %s199
      %s201 = smul.u32 32, %s40
      %s202 = smul.u32 4, %s41
      %v203 = vld [vmem:[%s178] sm:$0xff]
      %s204 = scalar_lea.vmem %s178, 32
      %v205 = vld [vmem:[%s204] sm:$0xff]
      %s206 = scalar_lea.vmem %s200, 16
      %s207 = scalar_lea.vmem %s178, 64
      %v208 = vld [vmem:[%s207] sm:$0xff]
      %s209 = scalar_lea.vmem %s200, 32
      %s210 = scalar_lea.vmem %s178, 96
      %v211 = vld [vmem:[%s210] sm:$0xff]
      %s212 = scalar_lea.vmem %s200, 48
      %s213 = scalar_lea.vmem %s178, 128
      %v214 = vld [vmem:[%s213] sm:$0xff]
      %s215 = scalar_lea.vmem %s200, 64
      %s216 = scalar_lea.vmem %s178, 160
      %v217 = vld [vmem:[%s216] sm:$0xff]
      %s218 = scalar_lea.vmem %s200, 80
      %s219 = scalar_lea.vmem %s178, 192
      %v220 = vld [vmem:[%s219] sm:$0xff]
      %s221 = scalar_lea.vmem %s200, 96
      %s222 = scalar_lea.vmem %s178, 224
      %v223 = vld [vmem:[%s222] sm:$0xff]
      %s224 = scalar_lea.vmem %s200, 112
      %s225 = scalar_lea.vmem %s178, 256
      %v226 = vld [vmem:[%s225] sm:$0xff]
      %s227 = scalar_lea.vmem %s200, 128
      %s228 = scalar_lea.vmem %s178, 288
      %v229 = vld [vmem:[%s228] sm:$0xff]
      %s230 = scalar_lea.vmem %s200, 144
      %s231 = scalar_lea.vmem %s178, 320
      %v232 = vld [vmem:[%s231] sm:$0xff]
      %s233 = scalar_lea.vmem %s200, 160
      %s234 = scalar_lea.vmem %s178, 352
      %v235 = vld [vmem:[%s234] sm:$0xff]
      %s236 = scalar_lea.vmem %s200, 176
      %s237 = scalar_lea.vmem %s178, 384
      %v238 = vld [vmem:[%s237] sm:$0xff]
      %s239 = scalar_lea.vmem %s200, 192
      %s240 = scalar_lea.vmem %s178, 416
      %v241 = vld [vmem:[%s240] sm:$0xff]
      %s242 = scalar_lea.vmem %s200, 208
      %s243 = scalar_lea.vmem %s178, 448
      %v244 = vld [vmem:[%s243] sm:$0xff]
      %s245 = scalar_lea.vmem %s200, 224
      %s246 = scalar_lea.vmem %s178, 480
      %v247 = vld [vmem:[%s246] sm:$0xff]
      %s248 = scalar_lea.vmem %s200, 240
      %s249 = scalar_lea.vmem %s178, 512
      %v250 = vld [vmem:[%s249] sm:$0xff]
      %s251 = scalar_lea.vmem %s200, 256
      %s252 = scalar_lea.vmem %s178, 544
      %v253 = vld [vmem:[%s252] sm:$0xff]
      %s254 = scalar_lea.vmem %s200, 272
      %s255 = scalar_lea.vmem %s178, 576
      %v256 = vld [vmem:[%s255] sm:$0xff]
      %s257 = scalar_lea.vmem %s200, 288
      %s258 = scalar_lea.vmem %s178, 608
      %v259 = vld [vmem:[%s258] sm:$0xff]
      %s260 = scalar_lea.vmem %s200, 304
      %s261 = scalar_lea.vmem %s178, 640
      %v262 = vld [vmem:[%s261] sm:$0xff]
      %s263 = scalar_lea.vmem %s200, 320
      %s264 = scalar_lea.vmem %s178, 672
      %v265 = vld [vmem:[%s264] sm:$0xff]
      %s266 = scalar_lea.vmem %s200, 336
      %s267 = scalar_lea.vmem %s178, 704
      %v268 = vld [vmem:[%s267] sm:$0xff]
      %s269 = scalar_lea.vmem %s200, 352
      %s270 = scalar_lea.vmem %s178, 736
      %v271 = vld [vmem:[%s270] sm:$0xff]
      %s272 = scalar_lea.vmem %s200, 368
      %s273 = scalar_lea.vmem %s178, 768
      %v274 = vld [vmem:[%s273] sm:$0xff]
      %s275 = scalar_lea.vmem %s200, 384
      %s276 = scalar_lea.vmem %s178, 800
      %v277 = vld [vmem:[%s276] sm:$0xff]
      %s278 = scalar_lea.vmem %s200, 400
      %s279 = scalar_lea.vmem %s178, 832
      %v280 = vld [vmem:[%s279] sm:$0xff]
      %s281 = scalar_lea.vmem %s200, 416
      %s282 = scalar_lea.vmem %s178, 864
      %v283 = vld [vmem:[%s282] sm:$0xff]
      %s284 = scalar_lea.vmem %s200, 432
      %s285 = scalar_lea.vmem %s178, 896
      %v286 = vld [vmem:[%s285] sm:$0xff]
      %s287 = scalar_lea.vmem %s200, 448
      %s288 = scalar_lea.vmem %s178, 928
      %v289 = vld [vmem:[%s288] sm:$0xff]
      %s290 = scalar_lea.vmem %s200, 464
      %s291 = scalar_lea.vmem %s178, 960
      %v292 = vld [vmem:[%s291] sm:$0xff]
      %s293 = scalar_lea.vmem %s200, 480
      %s294 = scalar_lea.vmem %s178, 992
      %v295 = vld [vmem:[%s294] sm:$0xff]
      %s296 = scalar_lea.vmem %s200, 496
      %s297 = scalar_lea.vmem %s178, 8
      %v298 = vld [vmem:[%s297] sm:$0xff]
      %s299 = scalar_lea.vmem %s200, 4
      %s300 = scalar_lea.vmem %s299, 4294967292
      %v301 = vpack.c.bf16 %v298, %v203
      %302 = vst [vmem:[%s300] sm:$0xff] %v301
      %s303 = scalar_lea.vmem %s178, 40
      %v304 = vld [vmem:[%s303] sm:$0xff]
      %s305 = scalar_lea.vmem %s200, 20
      %s306 = scalar_lea.vmem %s305, 4294967292
      %v307 = vpack.c.bf16 %v304, %v205
      %308 = vst [vmem:[%s306] sm:$0xff] %v307
      %s309 = scalar_lea.vmem %s178, 72
      %v310 = vld [vmem:[%s309] sm:$0xff]
      %s311 = scalar_lea.vmem %s200, 36
      %s312 = scalar_lea.vmem %s311, 4294967292
      %v313 = vpack.c.bf16 %v310, %v208
      %314 = vst [vmem:[%s312] sm:$0xff] %v313
      %s315 = scalar_lea.vmem %s178, 104
      %v316 = vld [vmem:[%s315] sm:$0xff]
      %s317 = scalar_lea.vmem %s200, 52
      %s318 = scalar_lea.vmem %s317, 4294967292
      %v319 = vpack.c.bf16 %v316, %v211
      %320 = vst [vmem:[%s318] sm:$0xff] %v319
      %s321 = scalar_lea.vmem %s178, 136
      %v322 = vld [vmem:[%s321] sm:$0xff]
      %s323 = scalar_lea.vmem %s200, 68
      %s324 = scalar_lea.vmem %s323, 4294967292
      %v325 = vpack.c.bf16 %v322, %v214
      %326 = vst [vmem:[%s324] sm:$0xff] %v325
      %s327 = scalar_lea.vmem %s178, 168
      %v328 = vld [vmem:[%s327] sm:$0xff]
      %s329 = scalar_lea.vmem %s200, 84
      %s330 = scalar_lea.vmem %s329, 4294967292
      %v331 = vpack.c.bf16 %v328, %v217
      %332 = vst [vmem:[%s330] sm:$0xff] %v331
      %s333 = scalar_lea.vmem %s178, 200
      %v334 = vld [vmem:[%s333] sm:$0xff]
      %s335 = scalar_lea.vmem %s200, 100
      %s336 = scalar_lea.vmem %s335, 4294967292
      %v337 = vpack.c.bf16 %v334, %v220
      %338 = vst [vmem:[%s336] sm:$0xff] %v337
      %s339 = scalar_lea.vmem %s178, 232
      %v340 = vld [vmem:[%s339] sm:$0xff]
      %s341 = scalar_lea.vmem %s200, 116
      %s342 = scalar_lea.vmem %s341, 4294967292
      %v343 = vpack.c.bf16 %v340, %v223
      %344 = vst [vmem:[%s342] sm:$0xff] %v343
      %s345 = scalar_lea.vmem %s178, 264
      %v346 = vld [vmem:[%s345] sm:$0xff]
      %s347 = scalar_lea.vmem %s200, 132
      %s348 = scalar_lea.vmem %s347, 4294967292
      %v349 = vpack.c.bf16 %v346, %v226
      %350 = vst [vmem:[%s348] sm:$0xff] %v349
      %s351 = scalar_lea.vmem %s178, 296
      %v352 = vld [vmem:[%s351] sm:$0xff]
      %s353 = scalar_lea.vmem %s200, 148
      %s354 = scalar_lea.vmem %s353, 4294967292
      %v355 = vpack.c.bf16 %v352, %v229
      %356 = vst [vmem:[%s354] sm:$0xff] %v355
      %s357 = scalar_lea.vmem %s178, 328
      %v358 = vld [vmem:[%s357] sm:$0xff]
      %s359 = scalar_lea.vmem %s200, 164
      %s360 = scalar_lea.vmem %s359, 4294967292
      %v361 = vpack.c.bf16 %v358, %v232
      %362 = vst [vmem:[%s360] sm:$0xff] %v361
      %s363 = scalar_lea.vmem %s178, 360
      %v364 = vld [vmem:[%s363] sm:$0xff]
      %s365 = scalar_lea.vmem %s200, 180
      %s366 = scalar_lea.vmem %s365, 4294967292
      %v367 = vpack.c.bf16 %v364, %v235
      %368 = vst [vmem:[%s366] sm:$0xff] %v367
      %s369 = scalar_lea.vmem %s178, 392
      %v370 = vld [vmem:[%s369] sm:$0xff]
      %s371 = scalar_lea.vmem %s200, 196
      %s372 = scalar_lea.vmem %s371, 4294967292
      %v373 = vpack.c.bf16 %v370, %v238
      %374 = vst [vmem:[%s372] sm:$0xff] %v373
      %s375 = scalar_lea.vmem %s178, 424
      %v376 = vld [vmem:[%s375] sm:$0xff]
      %s377 = scalar_lea.vmem %s200, 212
      %s378 = scalar_lea.vmem %s377, 4294967292
      %v379 = vpack.c.bf16 %v376, %v241
      %380 = vst [vmem:[%s378] sm:$0xff] %v379
      %s381 = scalar_lea.vmem %s178, 456
      %v382 = vld [vmem:[%s381] sm:$0xff]
      %s383 = scalar_lea.vmem %s200, 228
      %s384 = scalar_lea.vmem %s383, 4294967292
      %v385 = vpack.c.bf16 %v382, %v244
      %386 = vst [vmem:[%s384] sm:$0xff] %v385
      %s387 = scalar_lea.vmem %s178, 488
      %v388 = vld [vmem:[%s387] sm:$0xff]
      %s389 = scalar_lea.vmem %s200, 244
      %s390 = scalar_lea.vmem %s389, 4294967292
      %v391 = vpack.c.bf16 %v388, %v247
      %392 = vst [vmem:[%s390] sm:$0xff] %v391
      %s393 = scalar_lea.vmem %s178, 520
      %v394 = vld [vmem:[%s393] sm:$0xff]
      %s395 = scalar_lea.vmem %s200, 260
      %s396 = scalar_lea.vmem %s395, 4294967292
      %v397 = vpack.c.bf16 %v394, %v250
      %398 = vst [vmem:[%s396] sm:$0xff] %v397
      %s399 = scalar_lea.vmem %s178, 552
      %v400 = vld [vmem:[%s399] sm:$0xff]
      %s401 = scalar_lea.vmem %s200, 276
      %s402 = scalar_lea.vmem %s401, 4294967292
      %v403 = vpack.c.bf16 %v400, %v253
      %404 = vst [vmem:[%s402] sm:$0xff] %v403
      %s405 = scalar_lea.vmem %s178, 584
      %v406 = vld [vmem:[%s405] sm:$0xff]
      %s407 = scalar_lea.vmem %s200, 292
      %s408 = scalar_lea.vmem %s407, 4294967292
      %v409 = vpack.c.bf16 %v406, %v256
      %410 = vst [vmem:[%s408] sm:$0xff] %v409
      %s411 = scalar_lea.vmem %s178, 616
      %v412 = vld [vmem:[%s411] sm:$0xff]
      %s413 = scalar_lea.vmem %s200, 308
      %s414 = scalar_lea.vmem %s413, 4294967292
      %v415 = vpack.c.bf16 %v412, %v259
      %416 = vst [vmem:[%s414] sm:$0xff] %v415
      %s417 = scalar_lea.vmem %s178, 648
      %v418 = vld [vmem:[%s417] sm:$0xff]
      %s419 = scalar_lea.vmem %s200, 324
      %s420 = scalar_lea.vmem %s419, 4294967292
      %v421 = vpack.c.bf16 %v418, %v262
      %422 = vst [vmem:[%s420] sm:$0xff] %v421
      %s423 = scalar_lea.vmem %s178, 680
      %v424 = vld [vmem:[%s423] sm:$0xff]
      %s425 = scalar_lea.vmem %s200, 340
      %s426 = scalar_lea.vmem %s425, 4294967292
      %v427 = vpack.c.bf16 %v424, %v265
      %428 = vst [vmem:[%s426] sm:$0xff] %v427
      %s429 = scalar_lea.vmem %s178, 712
      %v430 = vld [vmem:[%s429] sm:$0xff]
      %s431 = scalar_lea.vmem %s200, 356
      %s432 = scalar_lea.vmem %s431, 4294967292
      %v433 = vpack.c.bf16 %v430, %v268
      %434 = vst [vmem:[%s432] sm:$0xff] %v433
      %s435 = scalar_lea.vmem %s178, 744
      %v436 = vld [vmem:[%s435] sm:$0xff]
      %s437 = scalar_lea.vmem %s200, 372
      %s438 = scalar_lea.vmem %s437, 4294967292
      %v439 = vpack.c.bf16 %v436, %v271
      %440 = vst [vmem:[%s438] sm:$0xff] %v439
      %s441 = scalar_lea.vmem %s178, 776
      %v442 = vld [vmem:[%s441] sm:$0xff]
      %s443 = scalar_lea.vmem %s200, 388
      %s444 = scalar_lea.vmem %s443, 4294967292
      %v445 = vpack.c.bf16 %v442, %v274
      %446 = vst [vmem:[%s444] sm:$0xff] %v445
      %s447 = scalar_lea.vmem %s178, 808
      %v448 = vld [vmem:[%s447] sm:$0xff]
      %s449 = scalar_lea.vmem %s200, 404
      %s450 = scalar_lea.vmem %s449, 4294967292
      %v451 = vpack.c.bf16 %v448, %v277
      %452 = vst [vmem:[%s450] sm:$0xff] %v451
      %s453 = scalar_lea.vmem %s178, 840
      %v454 = vld [vmem:[%s453] sm:$0xff]
      %s455 = scalar_lea.vmem %s200, 420
      %s456 = scalar_lea.vmem %s455, 4294967292
      %v457 = vpack.c.bf16 %v454, %v280
      %458 = vst [vmem:[%s456] sm:$0xff] %v457
      %s459 = scalar_lea.vmem %s178, 872
      %v460 = vld [vmem:[%s459] sm:$0xff]
      %s461 = scalar_lea.vmem %s200, 436
      %s462 = scalar_lea.vmem %s461, 4294967292
      %v463 = vpack.c.bf16 %v460, %v283
      %464 = vst [vmem:[%s462] sm:$0xff] %v463
      %s465 = scalar_lea.vmem %s178, 904
      %v466 = vld [vmem:[%s465] sm:$0xff]
      %s467 = scalar_lea.vmem %s200, 452
      %s468 = scalar_lea.vmem %s467, 4294967292
      %v469 = vpack.c.bf16 %v466, %v286
      %470 = vst [vmem:[%s468] sm:$0xff] %v469
      %s471 = scalar_lea.vmem %s178, 936
      %v472 = vld [vmem:[%s471] sm:$0xff]
      %s473 = scalar_lea.vmem %s200, 468
      %s474 = scalar_lea.vmem %s473, 4294967292
      %v475 = vpack.c.bf16 %v472, %v289
      %476 = vst [vmem:[%s474] sm:$0xff] %v475
      %s477 = scalar_lea.vmem %s178, 968
      %v478 = vld [vmem:[%s477] sm:$0xff]
      %s479 = scalar_lea.vmem %s200, 484
      %s480 = scalar_lea.vmem %s479, 4294967292
      %v481 = vpack.c.bf16 %v478, %v292
      %482 = vst [vmem:[%s480] sm:$0xff] %v481
      %s483 = scalar_lea.vmem %s178, 1000
      %v484 = vld [vmem:[%s483] sm:$0xff]
      %s485 = scalar_lea.vmem %s200, 500
      %s486 = scalar_lea.vmem %s485, 4294967292
      %v487 = vpack.c.bf16 %v484, %v295
      %488 = vst [vmem:[%s486] sm:$0xff] %v487
      %s489 = scalar_lea.vmem %s178, 16
      %v490 = vld [vmem:[%s489] sm:$0xff]
      %s491 = scalar_lea.vmem %s200, 8
      %s492 = scalar_lea.vmem %s178, 48
      %v493 = vld [vmem:[%s492] sm:$0xff]
      %s494 = scalar_lea.vmem %s200, 24
      %s495 = scalar_lea.vmem %s178, 80
      %v496 = vld [vmem:[%s495] sm:$0xff]
      %s497 = scalar_lea.vmem %s200, 40
      %s498 = scalar_lea.vmem %s178, 112
      %v499 = vld [vmem:[%s498] sm:$0xff]
      %s500 = scalar_lea.vmem %s200, 56
      %s501 = scalar_lea.vmem %s178, 144
      %v502 = vld [vmem:[%s501] sm:$0xff]
      %s503 = scalar_lea.vmem %s200, 72
      %s504 = scalar_lea.vmem %s178, 176
      %v505 = vld [vmem:[%s504] sm:$0xff]
      %s506 = scalar_lea.vmem %s200, 88
      %s507 = scalar_lea.vmem %s178, 208
      %v508 = vld [vmem:[%s507] sm:$0xff]
      %s509 = scalar_lea.vmem %s200, 104
      %s510 = scalar_lea.vmem %s178, 240
      %v511 = vld [vmem:[%s510] sm:$0xff]
      %s512 = scalar_lea.vmem %s200, 120
      %s513 = scalar_lea.vmem %s178, 272
      %v514 = vld [vmem:[%s513] sm:$0xff]
      %s515 = scalar_lea.vmem %s200, 136
      %s516 = scalar_lea.vmem %s178, 304
      %v517 = vld [vmem:[%s516] sm:$0xff]
      %s518 = scalar_lea.vmem %s200, 152
      %s519 = scalar_lea.vmem %s178, 336
      %v520 = vld [vmem:[%s519] sm:$0xff]
      %s521 = scalar_lea.vmem %s200, 168
      %s522 = scalar_lea.vmem %s178, 368
      %v523 = vld [vmem:[%s522] sm:$0xff]
      %s524 = scalar_lea.vmem %s200, 184
      %s525 = scalar_lea.vmem %s178, 400
      %v526 = vld [vmem:[%s525] sm:$0xff]
      %s527 = scalar_lea.vmem %s200, 200
      %s528 = scalar_lea.vmem %s178, 432
      %v529 = vld [vmem:[%s528] sm:$0xff]
      %s530 = scalar_lea.vmem %s200, 216
      %s531 = scalar_lea.vmem %s178, 464
      %v532 = vld [vmem:[%s531] sm:$0xff]
      %s533 = scalar_lea.vmem %s200, 232
      %s534 = scalar_lea.vmem %s178, 496
      %v535 = vld [vmem:[%s534] sm:$0xff]
      %s536 = scalar_lea.vmem %s200, 248
      %s537 = scalar_lea.vmem %s178, 528
      %v538 = vld [vmem:[%s537] sm:$0xff]
      %s539 = scalar_lea.vmem %s200, 264
      %s540 = scalar_lea.vmem %s178, 560
      %v541 = vld [vmem:[%s540] sm:$0xff]
      %s542 = scalar_lea.vmem %s200, 280
      %s543 = scalar_lea.vmem %s178, 592
      %v544 = vld [vmem:[%s543] sm:$0xff]
      %s545 = scalar_lea.vmem %s200, 296
      %s546 = scalar_lea.vmem %s178, 624
      %v547 = vld [vmem:[%s546] sm:$0xff]
      %s548 = scalar_lea.vmem %s200, 312
      %s549 = scalar_lea.vmem %s178, 656
      %v550 = vld [vmem:[%s549] sm:$0xff]
      %s551 = scalar_lea.vmem %s200, 328
      %s552 = scalar_lea.vmem %s178, 688
      %v553 = vld [vmem:[%s552] sm:$0xff]
      %s554 = scalar_lea.vmem %s200, 344
      %s555 = scalar_lea.vmem %s178, 720
      %v556 = vld [vmem:[%s555] sm:$0xff]
      %s557 = scalar_lea.vmem %s200, 360
      %s558 = scalar_lea.vmem %s178, 752
      %v559 = vld [vmem:[%s558] sm:$0xff]
      %s560 = scalar_lea.vmem %s200, 376
      %s561 = scalar_lea.vmem %s178, 784
      %v562 = vld [vmem:[%s561] sm:$0xff]
      %s563 = scalar_lea.vmem %s200, 392
      %s564 = scalar_lea.vmem %s178, 816
      %v565 = vld [vmem:[%s564] sm:$0xff]
      %s566 = scalar_lea.vmem %s200, 408
      %s567 = scalar_lea.vmem %s178, 848
      %v568 = vld [vmem:[%s567] sm:$0xff]
      %s569 = scalar_lea.vmem %s200, 424
      %s570 = scalar_lea.vmem %s178, 880
      %v571 = vld [vmem:[%s570] sm:$0xff]
      %s572 = scalar_lea.vmem %s200, 440
      %s573 = scalar_lea.vmem %s178, 912
      %v574 = vld [vmem:[%s573] sm:$0xff]
      %s575 = scalar_lea.vmem %s200, 456
      %s576 = scalar_lea.vmem %s178, 944
      %v577 = vld [vmem:[%s576] sm:$0xff]
      %s578 = scalar_lea.vmem %s200, 472
      %s579 = scalar_lea.vmem %s178, 976
      %v580 = vld [vmem:[%s579] sm:$0xff]
      %s581 = scalar_lea.vmem %s200, 488
      %s582 = scalar_lea.vmem %s178, 1008
      %v583 = vld [vmem:[%s582] sm:$0xff]
      %s584 = scalar_lea.vmem %s200, 504
      %s585 = scalar_lea.vmem %s178, 24
      %v586 = vld [vmem:[%s585] sm:$0xff]
      %s587 = scalar_lea.vmem %s200, 12
      %s588 = scalar_lea.vmem %s587, 4294967292
      %v589 = vpack.c.bf16 %v586, %v490
      %590 = vst [vmem:[%s588] sm:$0xff] %v589
      %s591 = scalar_lea.vmem %s178, 56
      %v592 = vld [vmem:[%s591] sm:$0xff]
      %s593 = scalar_lea.vmem %s200, 28
      %s594 = scalar_lea.vmem %s593, 4294967292
      %v595 = vpack.c.bf16 %v592, %v493
      %596 = vst [vmem:[%s594] sm:$0xff] %v595
      %s597 = scalar_lea.vmem %s178, 88
      %v598 = vld [vmem:[%s597] sm:$0xff]
      %s599 = scalar_lea.vmem %s200, 44
      %s600 = scalar_lea.vmem %s599, 4294967292
      %v601 = vpack.c.bf16 %v598, %v496
      %602 = vst [vmem:[%s600] sm:$0xff] %v601
      %s603 = scalar_lea.vmem %s178, 120
      %v604 = vld [vmem:[%s603] sm:$0xff]
      %s605 = scalar_lea.vmem %s200, 60
      %s606 = scalar_lea.vmem %s605, 4294967292
      %v607 = vpack.c.bf16 %v604, %v499
      %608 = vst [vmem:[%s606] sm:$0xff] %v607
      %s609 = scalar_lea.vmem %s178, 152
      %v610 = vld [vmem:[%s609] sm:$0xff]
      %s611 = scalar_lea.vmem %s200, 76
      %s612 = scalar_lea.vmem %s611, 4294967292
      %v613 = vpack.c.bf16 %v610, %v502
      %614 = vst [vmem:[%s612] sm:$0xff] %v613
      %s615 = scalar_lea.vmem %s178, 184
      %v616 = vld [vmem:[%s615] sm:$0xff]
      %s617 = scalar_lea.vmem %s200, 92
      %s618 = scalar_lea.vmem %s617, 4294967292
      %v619 = vpack.c.bf16 %v616, %v505
      %620 = vst [vmem:[%s618] sm:$0xff] %v619
      %s621 = scalar_lea.vmem %s178, 216
      %v622 = vld [vmem:[%s621] sm:$0xff]
      %s623 = scalar_lea.vmem %s200, 108
      %s624 = scalar_lea.vmem %s623, 4294967292
      %v625 = vpack.c.bf16 %v622, %v508
      %626 = vst [vmem:[%s624] sm:$0xff] %v625
      %s627 = scalar_lea.vmem %s178, 248
      %v628 = vld [vmem:[%s627] sm:$0xff]
      %s629 = scalar_lea.vmem %s200, 124
      %s630 = scalar_lea.vmem %s629, 4294967292
      %v631 = vpack.c.bf16 %v628, %v511
      %632 = vst [vmem:[%s630] sm:$0xff] %v631
      %s633 = scalar_lea.vmem %s178, 280
      %v634 = vld [vmem:[%s633] sm:$0xff]
      %s635 = scalar_lea.vmem %s200, 140
      %s636 = scalar_lea.vmem %s635, 4294967292
      %v637 = vpack.c.bf16 %v634, %v514
      %638 = vst [vmem:[%s636] sm:$0xff] %v637
      %s639 = scalar_lea.vmem %s178, 312
      %v640 = vld [vmem:[%s639] sm:$0xff]
      %s641 = scalar_lea.vmem %s200, 156
      %s642 = scalar_lea.vmem %s641, 4294967292
      %v643 = vpack.c.bf16 %v640, %v517
      %644 = vst [vmem:[%s642] sm:$0xff] %v643
      %s645 = scalar_lea.vmem %s178, 344
      %v646 = vld [vmem:[%s645] sm:$0xff]
      %s647 = scalar_lea.vmem %s200, 172
      %s648 = scalar_lea.vmem %s647, 4294967292
      %v649 = vpack.c.bf16 %v646, %v520
      %650 = vst [vmem:[%s648] sm:$0xff] %v649
      %s651 = scalar_lea.vmem %s178, 376
      %v652 = vld [vmem:[%s651] sm:$0xff]
      %s653 = scalar_lea.vmem %s200, 188
      %s654 = scalar_lea.vmem %s653, 4294967292
      %v655 = vpack.c.bf16 %v652, %v523
      %656 = vst [vmem:[%s654] sm:$0xff] %v655
      %s657 = scalar_lea.vmem %s178, 408
      %v658 = vld [vmem:[%s657] sm:$0xff]
      %s659 = scalar_lea.vmem %s200, 204
      %s660 = scalar_lea.vmem %s659, 4294967292
      %v661 = vpack.c.bf16 %v658, %v526
      %662 = vst [vmem:[%s660] sm:$0xff] %v661
      %s663 = scalar_lea.vmem %s178, 440
      %v664 = vld [vmem:[%s663] sm:$0xff]
      %s665 = scalar_lea.vmem %s200, 220
      %s666 = scalar_lea.vmem %s665, 4294967292
      %v667 = vpack.c.bf16 %v664, %v529
      %668 = vst [vmem:[%s666] sm:$0xff] %v667
      %s669 = scalar_lea.vmem %s178, 472
      %v670 = vld [vmem:[%s669] sm:$0xff]
      %s671 = scalar_lea.vmem %s200, 236
      %s672 = scalar_lea.vmem %s671, 4294967292
      %v673 = vpack.c.bf16 %v670, %v532
      %674 = vst [vmem:[%s672] sm:$0xff] %v673
      %s675 = scalar_lea.vmem %s178, 504
      %v676 = vld [vmem:[%s675] sm:$0xff]
      %s677 = scalar_lea.vmem %s200, 252
      %s678 = scalar_lea.vmem %s677, 4294967292
      %v679 = vpack.c.bf16 %v676, %v535
      %680 = vst [vmem:[%s678] sm:$0xff] %v679
      %s681 = scalar_lea.vmem %s178, 536
      %v682 = vld [vmem:[%s681] sm:$0xff]
      %s683 = scalar_lea.vmem %s200, 268
      %s684 = scalar_lea.vmem %s683, 4294967292
      %v685 = vpack.c.bf16 %v682, %v538
      %686 = vst [vmem:[%s684] sm:$0xff] %v685
      %s687 = scalar_lea.vmem %s178, 568
      %v688 = vld [vmem:[%s687] sm:$0xff]
      %s689 = scalar_lea.vmem %s200, 284
      %s690 = scalar_lea.vmem %s689, 4294967292
      %v691 = vpack.c.bf16 %v688, %v541
      %692 = vst [vmem:[%s690] sm:$0xff] %v691
      %s693 = scalar_lea.vmem %s178, 600
      %v694 = vld [vmem:[%s693] sm:$0xff]
      %s695 = scalar_lea.vmem %s200, 300
      %s696 = scalar_lea.vmem %s695, 4294967292
      %v697 = vpack.c.bf16 %v694, %v544
      %698 = vst [vmem:[%s696] sm:$0xff] %v697
      %s699 = scalar_lea.vmem %s178, 632
      %v700 = vld [vmem:[%s699] sm:$0xff]
      %s701 = scalar_lea.vmem %s200, 316
      %s702 = scalar_lea.vmem %s701, 4294967292
      %v703 = vpack.c.bf16 %v700, %v547
      %704 = vst [vmem:[%s702] sm:$0xff] %v703
      %s705 = scalar_lea.vmem %s178, 664
      %v706 = vld [vmem:[%s705] sm:$0xff]
      %s707 = scalar_lea.vmem %s200, 332
      %s708 = scalar_lea.vmem %s707, 4294967292
      %v709 = vpack.c.bf16 %v706, %v550
      %710 = vst [vmem:[%s708] sm:$0xff] %v709
      %s711 = scalar_lea.vmem %s178, 696
      %v712 = vld [vmem:[%s711] sm:$0xff]
      %s713 = scalar_lea.vmem %s200, 348
      %s714 = scalar_lea.vmem %s713, 4294967292
      %v715 = vpack.c.bf16 %v712, %v553
      %716 = vst [vmem:[%s714] sm:$0xff] %v715
      %s717 = scalar_lea.vmem %s178, 728
      %v718 = vld [vmem:[%s717] sm:$0xff]
      %s719 = scalar_lea.vmem %s200, 364
      %s720 = scalar_lea.vmem %s719, 4294967292
      %v721 = vpack.c.bf16 %v718, %v556
      %722 = vst [vmem:[%s720] sm:$0xff] %v721
      %s723 = scalar_lea.vmem %s178, 760
      %v724 = vld [vmem:[%s723] sm:$0xff]
      %s725 = scalar_lea.vmem %s200, 380
      %s726 = scalar_lea.vmem %s725, 4294967292
      %v727 = vpack.c.bf16 %v724, %v559
      %728 = vst [vmem:[%s726] sm:$0xff] %v727
      %s729 = scalar_lea.vmem %s178, 792
      %v730 = vld [vmem:[%s729] sm:$0xff]
      %s731 = scalar_lea.vmem %s200, 396
      %s732 = scalar_lea.vmem %s731, 4294967292
      %v733 = vpack.c.bf16 %v730, %v562
      %734 = vst [vmem:[%s732] sm:$0xff] %v733
      %s735 = scalar_lea.vmem %s178, 824
      %v736 = vld [vmem:[%s735] sm:$0xff]
      %s737 = scalar_lea.vmem %s200, 412
      %s738 = scalar_lea.vmem %s737, 4294967292
      %v739 = vpack.c.bf16 %v736, %v565
      %740 = vst [vmem:[%s738] sm:$0xff] %v739
      %s741 = scalar_lea.vmem %s178, 856
      %v742 = vld [vmem:[%s741] sm:$0xff]
      %s743 = scalar_lea.vmem %s200, 428
      %s744 = scalar_lea.vmem %s743, 4294967292
      %v745 = vpack.c.bf16 %v742, %v568
      %746 = vst [vmem:[%s744] sm:$0xff] %v745
      %s747 = scalar_lea.vmem %s178, 888
      %v748 = vld [vmem:[%s747] sm:$0xff]
      %s749 = scalar_lea.vmem %s200, 444
      %s750 = scalar_lea.vmem %s749, 4294967292
      %v751 = vpack.c.bf16 %v748, %v571
      %752 = vst [vmem:[%s750] sm:$0xff] %v751
      %s753 = scalar_lea.vmem %s178, 920
      %v754 = vld [vmem:[%s753] sm:$0xff]
      %s755 = scalar_lea.vmem %s200, 460
      %s756 = scalar_lea.vmem %s755, 4294967292
      %v757 = vpack.c.bf16 %v754, %v574
      %758 = vst [vmem:[%s756] sm:$0xff] %v757
      %s759 = scalar_lea.vmem %s178, 952
      %v760 = vld [vmem:[%s759] sm:$0xff]
      %s761 = scalar_lea.vmem %s200, 476
      %s762 = scalar_lea.vmem %s761, 4294967292
      %v763 = vpack.c.bf16 %v760, %v577
      %764 = vst [vmem:[%s762] sm:$0xff] %v763
      %s765 = scalar_lea.vmem %s178, 984
      %v766 = vld [vmem:[%s765] sm:$0xff]
      %s767 = scalar_lea.vmem %s200, 492
      %s768 = scalar_lea.vmem %s767, 4294967292
      %v769 = vpack.c.bf16 %v766, %v580
      %770 = vst [vmem:[%s768] sm:$0xff] %v769
      %s771 = scalar_lea.vmem %s178, 1016
      %v772 = vld [vmem:[%s771] sm:$0xff]
      %s773 = scalar_lea.vmem %s200, 508
      %s774 = scalar_lea.vmem %s773, 4294967292
      %v775 = vpack.c.bf16 %v772, %v583
      %776 = vst [vmem:[%s774] sm:$0xff] %v775
      %s777 = smul.u32 32, %s40
      %s778 = smul.u32 4, %s41
      %p779 = scmp.lt.s32.totalorder %s38, 2
      %s780 = scalar_select %p779, %s38, 2
      %p781 = scmp.lt.s32.totalorder %s39, 2
      %s782 = scalar_select %p781, %s39, 2
      %p783 = scmp.lt.s32.totalorder %s777, 63
      %s784 = scalar_select %p783, %s777, 63
      %p785 = scmp.lt.s32.totalorder %s778, 3
      %s786 = scalar_select %p785, %s778, 3
      %s787 = smul.addr %s784, 4
      %s788 = sadd.s32 %s786, %s787
      %s789 = smul.addr %s782, 256
      %s790 = sadd.s32 %s788, %s789
      %s791 = smul.addr %s780, 768
      %s792 = sadd.s32 %s790, %s791
      %s793 = smul.addr %s792, 4
      %s794 = scalar_lea.vmem %s1, %s793
      %s795 = smul.u32 32, %s40
      %s796 = smul.u32 4, %s41
    $region20: #{reverse.12} parent=5 // pred_fallthru
      _
    %p797 = scmp.le.s32.totalorder 10, %s3
    // Predicated region
    $region21: #{reverse.12} parent=5 // pred_check
      %p798 = pneg %p797
    $region22: #{reverse.12} parent=5 // pred_check_branch
      %800 = sbr.rel (%p798) target = $region24
    $region23: #{reverse.12} parent=5 // pred_region
      %s801 = ssub.s32 %s3, 10
      %s802 = smul.u32 32, %s60
      %s803 = smul.u32 4, %s61
      %p804 = scmp.lt.s32.totalorder %s58, 2
      %s805 = scalar_select %p804, %s58, 2
      %p806 = scmp.lt.s32.totalorder %s59, 2
      %s807 = scalar_select %p806, %s59, 2
      %p808 = scmp.lt.s32.totalorder %s802, 63
      %s809 = scalar_select %p808, %s802, 63
      %p810 = scmp.lt.s32.totalorder %s803, 3
      %s811 = scalar_select %p810, %s803, 3
      %s812 = smul.addr %s809, 4
      %s813 = sadd.s32 %s811, %s812
      %s814 = smul.addr %s807, 256
      %s815 = sadd.s32 %s813, %s814
      %s816 = smul.addr %s805, 768
      %s817 = sadd.s32 %s815, %s816
      %s818 = smul.addr %s817, 4
      %s819 = scalar_lea.vmem %s1, %s818
    $region24: #{reverse.12} parent=5 // pred_fallthru
      _
  $region6: #{reverse.12} parent=0 // loop_footer
    %s7 = sadd.s32 1, %s3
  $region7: #{reverse.12} parent=0 // loop_footer_branch
    %2 = sbr.rel target = $region3
  $region8: #{reverse.12} parent=0 // loop_exit
    _

// kernel: reverse.11
$region0: #{reverse.11}
  #allocation0 [shape = 's32[1]{0}', space=sflag, size = 0x4, scoped, tag = 'scoped memory for reverse.11']
  %s0 = inlined_call_operand.vmem [shape: f32[3,3,256,512], index: 0, kind: input, shape index: {}]
  %s1 = inlined_call_operand.vmem [shape: bf16[3,3,256,512], index: 1, kind: output, shape index: {}]
  loop: start=0, step=1, limit=11
  $region2: #{reverse.11} parent=0 // loop_pre_header
    _
  $region3: #{reverse.11} parent=0 // loop_header
    %s3 = sphi 0, %s7
    %p4 = scmp.ge.s32.totalorder %s3, 11
    %s10 = sphi 0, %s36
    %s11 = sphi 0, %s32
    %s12 = sphi 0, %s28
    %s13 = sphi 0, %s24
    %s14 = sphi 0, %s10
    %s15 = sphi 0, %s11
    %s16 = sphi 0, %s12
    %s17 = sphi 0, %s13
    %s18 = sphi 0, %s14
    %s19 = sphi 0, %s15
    %s20 = sphi 0, %s16
    %s21 = sphi 0, %s17
  $region4: #{reverse.11} parent=0 // loop_header_branch
    %6 = sbr.rel (%p4) target = $region8
  $region5: #{reverse.11} parent=0 // loop_body
    %s8 = ssub.s32 %s3, 1
    %s9 = ssub.s32 %s3, 2
    %s22 = sadd.s32 1, %s13
    %p23 = scmp.ge.s32.totalorder %s22, 1
    %s24 = scalar_select %p23, 0, %s22
    %s25 = sadd.s32 1, %s12
    %s26 = scalar_select %p23, %s25, %s12
    %p27 = scmp.ge.s32.totalorder %s26, 1
    %s28 = scalar_select %p27, 0, %s26
    %s29 = sadd.s32 1, %s11
    %s30 = scalar_select %p27, %s29, %s11
    %p31 = scmp.ge.s32.totalorder %s30, 3
    %s32 = scalar_select %p31, 0, %s30
    %s33 = sadd.s32 1, %s10
    %s34 = scalar_select %p31, %s33, %s10
    %p35 = scmp.ge.s32.totalorder %s34, 3
    %s36 = scalar_select %p35, 0, %s34
    %p37 = scmp.le.s32.totalorder 1, %s3
    %p38 = scmp.lt.s32.totalorder %s3, 10
    %p39 = pnand %p37, %p38
    %p40 = pneg %p39
    // Predicated region
    $region9: #{reverse.11} parent=5 // pred_check
      _
    $region10: #{reverse.11} parent=5 // pred_check_branch
      %42 = sbr.rel (%p39) target = $region12
    $region11: #{reverse.11} parent=5 // pred_region
      %s43 = ssub.s32 %s3, 1
    $region12: #{reverse.11} parent=5 // pred_fallthru
      _
    %p44 = scmp.lt.s32.totalorder %s3, 9
    // Predicated region
    $region13: #{reverse.11} parent=5 // pred_check
      %p45 = pneg %p44
    $region14: #{reverse.11} parent=5 // pred_check_branch
      %47 = sbr.rel (%p45) target = $region16
    $region15: #{reverse.11} parent=5 // pred_region
      %s48 = ssub.s32 2, %s10
      %s49 = ssub.s32 2, %s11
      %s50 = smul.u32 32, %s12
      %s51 = smul.u32 4, %s13
      %p52 = scmp.lt.s32.totalorder %s48, 2
      %s53 = scalar_select %p52, %s48, 2
      %p54 = scmp.lt.s32.totalorder %s49, 2
      %s55 = scalar_select %p54, %s49, 2
      %p56 = scmp.lt.s32.totalorder %s50, 31
      %s57 = scalar_select %p56, %s50, 31
      %p58 = scmp.lt.s32.totalorder %s51, 3
      %s59 = scalar_select %p58, %s51, 3
      %s60 = smul.addr %s57, 4
      %s61 = sadd.s32 %s59, %s60
      %s62 = smul.addr %s55, 128
      %s63 = sadd.s32 %s61, %s62
      %s64 = smul.addr %s53, 384
      %s65 = sadd.s32 %s63, %s64
      %s66 = smul.addr %s65, 8
      %s67 = scalar_lea.vmem %s0, %s66
      %s68 = ssub.s32 2, %s10
      %s69 = ssub.s32 2, %s11
      %s70 = smul.u32 32, %s12
      %s71 = smul.u32 4, %s13
    $region16: #{reverse.11} parent=5 // pred_fallthru
      _
    %p72 = scmp.le.s32.totalorder 1, %s3
    %p73 = scmp.lt.s32.totalorder %s3, 10
    %p74 = pnand %p72, %p73
    %p75 = pneg %p74
    // Predicated region
    $region17: #{reverse.11} parent=5 // pred_check
      _
    $region18: #{reverse.11} parent=5 // pred_check_branch
      %77 = sbr.rel (%p74) target = $region20
    $region19: #{reverse.11} parent=5 // pred_region
      %s78 = ssub.s32 %s3, 1
      %s79 = ssub.s32 2, %s14
      %s80 = ssub.s32 2, %s15
      %s81 = smul.u32 32, %s16
      %s82 = smul.u32 4, %s17
      %p83 = scmp.lt.s32.totalorder %s79, 2
      %s84 = scalar_select %p83, %s79, 2
      %p85 = scmp.lt.s32.totalorder %s80, 2
      %s86 = scalar_select %p85, %s80, 2
      %p87 = scmp.lt.s32.totalorder %s81, 31
      %s88 = scalar_select %p87, %s81, 31
      %p89 = scmp.lt.s32.totalorder %s82, 3
      %s90 = scalar_select %p89, %s82, 3
      %s91 = smul.addr %s88, 4
      %s92 = sadd.s32 %s90, %s91
      %s93 = smul.addr %s86, 128
      %s94 = sadd.s32 %s92, %s93
      %s95 = smul.addr %s84, 384
      %s96 = sadd.s32 %s94, %s95
      %s97 = smul.addr %s96, 8
      %s98 = scalar_lea.vmem %s0, %s97
      %s99 = smul.u32 32, %s16
      %s100 = smul.u32 4, %s17
      %p101 = scmp.lt.s32.totalorder %s14, 2
      %s102 = scalar_select %p101, %s14, 2
      %p103 = scmp.lt.s32.totalorder %s15, 2
      %s104 = scalar_select %p103, %s15, 2
      %p105 = scmp.lt.s32.totalorder %s99, 31
      %s106 = scalar_select %p105, %s99, 31
      %p107 = scmp.lt.s32.totalorder %s100, 3
      %s108 = scalar_select %p107, %s100, 3
      %s109 = smul.addr %s106, 4
      %s110 = sadd.s32 %s108, %s109
      %s111 = smul.addr %s104, 128
      %s112 = sadd.s32 %s110, %s111
      %s113 = smul.addr %s102, 384
      %s114 = sadd.s32 %s112, %s113
      %s115 = smul.addr %s114, 4
      %s116 = scalar_lea.vmem %s1, %s115
      %s117 = smul.u32 32, %s16
      %s118 = smul.u32 4, %s17
      %s119 = ssub.s32 2, %s14
      %s120 = ssub.s32 2, %s15
      %s121 = smul.u32 32, %s16
      %s122 = smul.u32 4, %s17
      %p123 = scmp.lt.s32.totalorder %s119, 2
      %s124 = scalar_select %p123, %s119, 2
      %p125 = scmp.lt.s32.totalorder %s120, 2
      %s126 = scalar_select %p125, %s120, 2
      %p127 = scmp.lt.s32.totalorder %s121, 31
      %s128 = scalar_select %p127, %s121, 31
      %p129 = scmp.lt.s32.totalorder %s122, 3
      %s130 = scalar_select %p129, %s122, 3
      %s131 = smul.addr %s128, 4
      %s132 = sadd.s32 %s130, %s131
      %s133 = smul.addr %s126, 128
      %s134 = sadd.s32 %s132, %s133
      %s135 = smul.addr %s124, 384
      %s136 = sadd.s32 %s134, %s135
      %s137 = smul.addr %s136, 8
      %s138 = scalar_lea.vmem %s0, %s137
      %s139 = ssub.s32 2, %s14
      %s140 = ssub.s32 2, %s15
      %s141 = smul.u32 32, %s16
      %s142 = smul.u32 4, %s17
      %s143 = smul.u32 32, %s16
      %s144 = smul.u32 4, %s17
      %p145 = scmp.lt.s32.totalorder %s14, 2
      %s146 = scalar_select %p145, %s14, 2
      %p147 = scmp.lt.s32.totalorder %s15, 2
      %s148 = scalar_select %p147, %s15, 2
      %p149 = scmp.lt.s32.totalorder %s143, 31
      %s150 = scalar_select %p149, %s143, 31
      %p151 = scmp.lt.s32.totalorder %s144, 3
      %s152 = scalar_select %p151, %s144, 3
      %s153 = smul.addr %s150, 4
      %s154 = sadd.s32 %s152, %s153
      %s155 = smul.addr %s148, 128
      %s156 = sadd.s32 %s154, %s155
      %s157 = smul.addr %s146, 384
      %s158 = sadd.s32 %s156, %s157
      %s159 = smul.addr %s158, 4
      %s160 = scalar_lea.vmem %s1, %s159
      %s161 = smul.u32 32, %s16
      %s162 = smul.u32 4, %s17
      %v163 = vld [vmem:[%s138] sm:$0xff]
      %s164 = scalar_lea.vmem %s138, 32
      %v165 = vld [vmem:[%s164] sm:$0xff]
      %s166 = scalar_lea.vmem %s160, 16
      %s167 = scalar_lea.vmem %s138, 64
      %v168 = vld [vmem:[%s167] sm:$0xff]
      %s169 = scalar_lea.vmem %s160, 32
      %s170 = scalar_lea.vmem %s138, 96
      %v171 = vld [vmem:[%s170] sm:$0xff]
      %s172 = scalar_lea.vmem %s160, 48
      %s173 = scalar_lea.vmem %s138, 128
      %v174 = vld [vmem:[%s173] sm:$0xff]
      %s175 = scalar_lea.vmem %s160, 64
      %s176 = scalar_lea.vmem %s138, 160
      %v177 = vld [vmem:[%s176] sm:$0xff]
      %s178 = scalar_lea.vmem %s160, 80
      %s179 = scalar_lea.vmem %s138, 192
      %v180 = vld [vmem:[%s179] sm:$0xff]
      %s181 = scalar_lea.vmem %s160, 96
      %s182 = scalar_lea.vmem %s138, 224
      %v183 = vld [vmem:[%s182] sm:$0xff]
      %s184 = scalar_lea.vmem %s160, 112
      %s185 = scalar_lea.vmem %s138, 256
      %v186 = vld [vmem:[%s185] sm:$0xff]
      %s187 = scalar_lea.vmem %s160, 128
      %s188 = scalar_lea.vmem %s138, 288
      %v189 = vld [vmem:[%s188] sm:$0xff]
      %s190 = scalar_lea.vmem %s160, 144
      %s191 = scalar_lea.vmem %s138, 320
      %v192 = vld [vmem:[%s191] sm:$0xff]
      %s193 = scalar_lea.vmem %s160, 160
      %s194 = scalar_lea.vmem %s138, 352
      %v195 = vld [vmem:[%s194] sm:$0xff]
      %s196 = scalar_lea.vmem %s160, 176
      %s197 = scalar_lea.vmem %s138, 384
      %v198 = vld [vmem:[%s197] sm:$0xff]
      %s199 = scalar_lea.vmem %s160, 192
      %s200 = scalar_lea.vmem %s138, 416
      %v201 = vld [vmem:[%s200] sm:$0xff]
      %s202 = scalar_lea.vmem %s160, 208
      %s203 = scalar_lea.vmem %s138, 448
      %v204 = vld [vmem:[%s203] sm:$0xff]
      %s205 = scalar_lea.vmem %s160, 224
      %s206 = scalar_lea.vmem %s138, 480
      %v207 = vld [vmem:[%s206] sm:$0xff]
      %s208 = scalar_lea.vmem %s160, 240
      %s209 = scalar_lea.vmem %s138, 512
      %v210 = vld [vmem:[%s209] sm:$0xff]
      %s211 = scalar_lea.vmem %s160, 256
      %s212 = scalar_lea.vmem %s138, 544
      %v213 = vld [vmem:[%s212] sm:$0xff]
      %s214 = scalar_lea.vmem %s160, 272
      %s215 = scalar_lea.vmem %s138, 576
      %v216 = vld [vmem:[%s215] sm:$0xff]
      %s217 = scalar_lea.vmem %s160, 288
      %s218 = scalar_lea.vmem %s138, 608
      %v219 = vld [vmem:[%s218] sm:$0xff]
      %s220 = scalar_lea.vmem %s160, 304
      %s221 = scalar_lea.vmem %s138, 640
      %v222 = vld [vmem:[%s221] sm:$0xff]
      %s223 = scalar_lea.vmem %s160, 320
      %s224 = scalar_lea.vmem %s138, 672
      %v225 = vld [vmem:[%s224] sm:$0xff]
      %s226 = scalar_lea.vmem %s160, 336
      %s227 = scalar_lea.vmem %s138, 704
      %v228 = vld [vmem:[%s227] sm:$0xff]
      %s229 = scalar_lea.vmem %s160, 352
      %s230 = scalar_lea.vmem %s138, 736
      %v231 = vld [vmem:[%s230] sm:$0xff]
      %s232 = scalar_lea.vmem %s160, 368
      %s233 = scalar_lea.vmem %s138, 768
      %v234 = vld [vmem:[%s233] sm:$0xff]
      %s235 = scalar_lea.vmem %s160, 384
      %s236 = scalar_lea.vmem %s138, 800
      %v237 = vld [vmem:[%s236] sm:$0xff]
      %s238 = scalar_lea.vmem %s160, 400
      %s239 = scalar_lea.vmem %s138, 832
      %v240 = vld [vmem:[%s239] sm:$0xff]
      %s241 = scalar_lea.vmem %s160, 416
      %s242 = scalar_lea.vmem %s138, 864
      %v243 = vld [vmem:[%s242] sm:$0xff]
      %s244 = scalar_lea.vmem %s160, 432
      %s245 = scalar_lea.vmem %s138, 896
      %v246 = vld [vmem:[%s245] sm:$0xff]
      %s247 = scalar_lea.vmem %s160, 448
      %s248 = scalar_lea.vmem %s138, 928
      %v249 = vld [vmem:[%s248] sm:$0xff]
      %s250 = scalar_lea.vmem %s160, 464
      %s251 = scalar_lea.vmem %s138, 960
      %v252 = vld [vmem:[%s251] sm:$0xff]
      %s253 = scalar_lea.vmem %s160, 480
      %s254 = scalar_lea.vmem %s138, 992
      %v255 = vld [vmem:[%s254] sm:$0xff]
      %s256 = scalar_lea.vmem %s160, 496
      %s257 = scalar_lea.vmem %s138, 8
      %v258 = vld [vmem:[%s257] sm:$0xff]
      %s259 = scalar_lea.vmem %s160, 4
      %s260 = scalar_lea.vmem %s259, 4294967292
      %v261 = vpack.c.bf16 %v258, %v163
      %262 = vst [vmem:[%s260] sm:$0xff] %v261
      %s263 = scalar_lea.vmem %s138, 40
      %v264 = vld [vmem:[%s263] sm:$0xff]
      %s265 = scalar_lea.vmem %s160, 20
      %s266 = scalar_lea.vmem %s265, 4294967292
      %v267 = vpack.c.bf16 %v264, %v165
      %268 = vst [vmem:[%s266] sm:$0xff] %v267
      %s269 = scalar_lea.vmem %s138, 72
      %v270 = vld [vmem:[%s269] sm:$0xff]
      %s271 = scalar_lea.vmem %s160, 36
      %s272 = scalar_lea.vmem %s271, 4294967292
      %v273 = vpack.c.bf16 %v270, %v168
      %274 = vst [vmem:[%s272] sm:$0xff] %v273
      %s275 = scalar_lea.vmem %s138, 104
      %v276 = vld [vmem:[%s275] sm:$0xff]
      %s277 = scalar_lea.vmem %s160, 52
      %s278 = scalar_lea.vmem %s277, 4294967292
      %v279 = vpack.c.bf16 %v276, %v171
      %280 = vst [vmem:[%s278] sm:$0xff] %v279
      %s281 = scalar_lea.vmem %s138, 136
      %v282 = vld [vmem:[%s281] sm:$0xff]
      %s283 = scalar_lea.vmem %s160, 68
      %s284 = scalar_lea.vmem %s283, 4294967292
      %v285 = vpack.c.bf16 %v282, %v174
      %286 = vst [vmem:[%s284] sm:$0xff] %v285
      %s287 = scalar_lea.vmem %s138, 168
      %v288 = vld [vmem:[%s287] sm:$0xff]
      %s289 = scalar_lea.vmem %s160, 84
      %s290 = scalar_lea.vmem %s289, 4294967292
      %v291 = vpack.c.bf16 %v288, %v177
      %292 = vst [vmem:[%s290] sm:$0xff] %v291
      %s293 = scalar_lea.vmem %s138, 200
      %v294 = vld [vmem:[%s293] sm:$0xff]
      %s295 = scalar_lea.vmem %s160, 100
      %s296 = scalar_lea.vmem %s295, 4294967292
      %v297 = vpack.c.bf16 %v294, %v180
      %298 = vst [vmem:[%s296] sm:$0xff] %v297
      %s299 = scalar_lea.vmem %s138, 232
      %v300 = vld [vmem:[%s299] sm:$0xff]
      %s301 = scalar_lea.vmem %s160, 116
      %s302 = scalar_lea.vmem %s301, 4294967292
      %v303 = vpack.c.bf16 %v300, %v183
      %304 = vst [vmem:[%s302] sm:$0xff] %v303
      %s305 = scalar_lea.vmem %s138, 264
      %v306 = vld [vmem:[%s305] sm:$0xff]
      %s307 = scalar_lea.vmem %s160, 132
      %s308 = scalar_lea.vmem %s307, 4294967292
      %v309 = vpack.c.bf16 %v306, %v186
      %310 = vst [vmem:[%s308] sm:$0xff] %v309
      %s311 = scalar_lea.vmem %s138, 296
      %v312 = vld [vmem:[%s311] sm:$0xff]
      %s313 = scalar_lea.vmem %s160, 148
      %s314 = scalar_lea.vmem %s313, 4294967292
      %v315 = vpack.c.bf16 %v312, %v189
      %316 = vst [vmem:[%s314] sm:$0xff] %v315
      %s317 = scalar_lea.vmem %s138, 328
      %v318 = vld [vmem:[%s317] sm:$0xff]
      %s319 = scalar_lea.vmem %s160, 164
      %s320 = scalar_lea.vmem %s319, 4294967292
      %v321 = vpack.c.bf16 %v318, %v192
      %322 = vst [vmem:[%s320] sm:$0xff] %v321
      %s323 = scalar_lea.vmem %s138, 360
      %v324 = vld [vmem:[%s323] sm:$0xff]
      %s325 = scalar_lea.vmem %s160, 180
      %s326 = scalar_lea.vmem %s325, 4294967292
      %v327 = vpack.c.bf16 %v324, %v195
      %328 = vst [vmem:[%s326] sm:$0xff] %v327
      %s329 = scalar_lea.vmem %s138, 392
      %v330 = vld [vmem:[%s329] sm:$0xff]
      %s331 = scalar_lea.vmem %s160, 196
      %s332 = scalar_lea.vmem %s331, 4294967292
      %v333 = vpack.c.bf16 %v330, %v198
      %334 = vst [vmem:[%s332] sm:$0xff] %v333
      %s335 = scalar_lea.vmem %s138, 424
      %v336 = vld [vmem:[%s335] sm:$0xff]
      %s337 = scalar_lea.vmem %s160, 212
      %s338 = scalar_lea.vmem %s337, 4294967292
      %v339 = vpack.c.bf16 %v336, %v201
      %340 = vst [vmem:[%s338] sm:$0xff] %v339
      %s341 = scalar_lea.vmem %s138, 456
      %v342 = vld [vmem:[%s341] sm:$0xff]
      %s343 = scalar_lea.vmem %s160, 228
      %s344 = scalar_lea.vmem %s343, 4294967292
      %v345 = vpack.c.bf16 %v342, %v204
      %346 = vst [vmem:[%s344] sm:$0xff] %v345
      %s347 = scalar_lea.vmem %s138, 488
      %v348 = vld [vmem:[%s347] sm:$0xff]
      %s349 = scalar_lea.vmem %s160, 244
      %s350 = scalar_lea.vmem %s349, 4294967292
      %v351 = vpack.c.bf16 %v348, %v207
      %352 = vst [vmem:[%s350] sm:$0xff] %v351
      %s353 = scalar_lea.vmem %s138, 520
      %v354 = vld [vmem:[%s353] sm:$0xff]
      %s355 = scalar_lea.vmem %s160, 260
      %s356 = scalar_lea.vmem %s355, 4294967292
      %v357 = vpack.c.bf16 %v354, %v210
      %358 = vst [vmem:[%s356] sm:$0xff] %v357
      %s359 = scalar_lea.vmem %s138, 552
      %v360 = vld [vmem:[%s359] sm:$0xff]
      %s361 = scalar_lea.vmem %s160, 276
      %s362 = scalar_lea.vmem %s361, 4294967292
      %v363 = vpack.c.bf16 %v360, %v213
      %364 = vst [vmem:[%s362] sm:$0xff] %v363
      %s365 = scalar_lea.vmem %s138, 584
      %v366 = vld [vmem:[%s365] sm:$0xff]
      %s367 = scalar_lea.vmem %s160, 292
      %s368 = scalar_lea.vmem %s367, 4294967292
      %v369 = vpack.c.bf16 %v366, %v216
      %370 = vst [vmem:[%s368] sm:$0xff] %v369
      %s371 = scalar_lea.vmem %s138, 616
      %v372 = vld [vmem:[%s371] sm:$0xff]
      %s373 = scalar_lea.vmem %s160, 308
      %s374 = scalar_lea.vmem %s373, 4294967292
      %v375 = vpack.c.bf16 %v372, %v219
      %376 = vst [vmem:[%s374] sm:$0xff] %v375
      %s377 = scalar_lea.vmem %s138, 648
      %v378 = vld [vmem:[%s377] sm:$0xff]
      %s379 = scalar_lea.vmem %s160, 324
      %s380 = scalar_lea.vmem %s379, 4294967292
      %v381 = vpack.c.bf16 %v378, %v222
      %382 = vst [vmem:[%s380] sm:$0xff] %v381
      %s383 = scalar_lea.vmem %s138, 680
      %v384 = vld [vmem:[%s383] sm:$0xff]
      %s385 = scalar_lea.vmem %s160, 340
      %s386 = scalar_lea.vmem %s385, 4294967292
      %v387 = vpack.c.bf16 %v384, %v225
      %388 = vst [vmem:[%s386] sm:$0xff] %v387
      %s389 = scalar_lea.vmem %s138, 712
      %v390 = vld [vmem:[%s389] sm:$0xff]
      %s391 = scalar_lea.vmem %s160, 356
      %s392 = scalar_lea.vmem %s391, 4294967292
      %v393 = vpack.c.bf16 %v390, %v228
      %394 = vst [vmem:[%s392] sm:$0xff] %v393
      %s395 = scalar_lea.vmem %s138, 744
      %v396 = vld [vmem:[%s395] sm:$0xff]
      %s397 = scalar_lea.vmem %s160, 372
      %s398 = scalar_lea.vmem %s397, 4294967292
      %v399 = vpack.c.bf16 %v396, %v231
      %400 = vst [vmem:[%s398] sm:$0xff] %v399
      %s401 = scalar_lea.vmem %s138, 776
      %v402 = vld [vmem:[%s401] sm:$0xff]
      %s403 = scalar_lea.vmem %s160, 388
      %s404 = scalar_lea.vmem %s403, 4294967292
      %v405 = vpack.c.bf16 %v402, %v234
      %406 = vst [vmem:[%s404] sm:$0xff] %v405
      %s407 = scalar_lea.vmem %s138, 808
      %v408 = vld [vmem:[%s407] sm:$0xff]
      %s409 = scalar_lea.vmem %s160, 404
      %s410 = scalar_lea.vmem %s409, 4294967292
      %v411 = vpack.c.bf16 %v408, %v237
      %412 = vst [vmem:[%s410] sm:$0xff] %v411
      %s413 = scalar_lea.vmem %s138, 840
      %v414 = vld [vmem:[%s413] sm:$0xff]
      %s415 = scalar_lea.vmem %s160, 420
      %s416 = scalar_lea.vmem %s415, 4294967292
      %v417 = vpack.c.bf16 %v414, %v240
      %418 = vst [vmem:[%s416] sm:$0xff] %v417
      %s419 = scalar_lea.vmem %s138, 872
      %v420 = vld [vmem:[%s419] sm:$0xff]
      %s421 = scalar_lea.vmem %s160, 436
      %s422 = scalar_lea.vmem %s421, 4294967292
      %v423 = vpack.c.bf16 %v420, %v243
      %424 = vst [vmem:[%s422] sm:$0xff] %v423
      %s425 = scalar_lea.vmem %s138, 904
      %v426 = vld [vmem:[%s425] sm:$0xff]
      %s427 = scalar_lea.vmem %s160, 452
      %s428 = scalar_lea.vmem %s427, 4294967292
      %v429 = vpack.c.bf16 %v426, %v246
      %430 = vst [vmem:[%s428] sm:$0xff] %v429
      %s431 = scalar_lea.vmem %s138, 936
      %v432 = vld [vmem:[%s431] sm:$0xff]
      %s433 = scalar_lea.vmem %s160, 468
      %s434 = scalar_lea.vmem %s433, 4294967292
      %v435 = vpack.c.bf16 %v432, %v249
      %436 = vst [vmem:[%s434] sm:$0xff] %v435
      %s437 = scalar_lea.vmem %s138, 968
      %v438 = vld [vmem:[%s437] sm:$0xff]
      %s439 = scalar_lea.vmem %s160, 484
      %s440 = scalar_lea.vmem %s439, 4294967292
      %v441 = vpack.c.bf16 %v438, %v252
      %442 = vst [vmem:[%s440] sm:$0xff] %v441
      %s443 = scalar_lea.vmem %s138, 1000
      %v444 = vld [vmem:[%s443] sm:$0xff]
      %s445 = scalar_lea.vmem %s160, 500
      %s446 = scalar_lea.vmem %s445, 4294967292
      %v447 = vpack.c.bf16 %v444, %v255
      %448 = vst [vmem:[%s446] sm:$0xff] %v447
      %s449 = scalar_lea.vmem %s138, 16
      %v450 = vld [vmem:[%s449] sm:$0xff]
      %s451 = scalar_lea.vmem %s160, 8
      %s452 = scalar_lea.vmem %s138, 48
      %v453 = vld [vmem:[%s452] sm:$0xff]
      %s454 = scalar_lea.vmem %s160, 24
      %s455 = scalar_lea.vmem %s138, 80
      %v456 = vld [vmem:[%s455] sm:$0xff]
      %s457 = scalar_lea.vmem %s160, 40
      %s458 = scalar_lea.vmem %s138, 112
      %v459 = vld [vmem:[%s458] sm:$0xff]
      %s460 = scalar_lea.vmem %s160, 56
      %s461 = scalar_lea.vmem %s138, 144
      %v462 = vld [vmem:[%s461] sm:$0xff]
      %s463 = scalar_lea.vmem %s160, 72
      %s464 = scalar_lea.vmem %s138, 176
      %v465 = vld [vmem:[%s464] sm:$0xff]
      %s466 = scalar_lea.vmem %s160, 88
      %s467 = scalar_lea.vmem %s138, 208
      %v468 = vld [vmem:[%s467] sm:$0xff]
      %s469 = scalar_lea.vmem %s160, 104
      %s470 = scalar_lea.vmem %s138, 240
      %v471 = vld [vmem:[%s470] sm:$0xff]
      %s472 = scalar_lea.vmem %s160, 120
      %s473 = scalar_lea.vmem %s138, 272
      %v474 = vld [vmem:[%s473] sm:$0xff]
      %s475 = scalar_lea.vmem %s160, 136
      %s476 = scalar_lea.vmem %s138, 304
      %v477 = vld [vmem:[%s476] sm:$0xff]
      %s478 = scalar_lea.vmem %s160, 152
      %s479 = scalar_lea.vmem %s138, 336
      %v480 = vld [vmem:[%s479] sm:$0xff]
      %s481 = scalar_lea.vmem %s160, 168
      %s482 = scalar_lea.vmem %s138, 368
      %v483 = vld [vmem:[%s482] sm:$0xff]
      %s484 = scalar_lea.vmem %s160, 184
      %s485 = scalar_lea.vmem %s138, 400
      %v486 = vld [vmem:[%s485] sm:$0xff]
      %s487 = scalar_lea.vmem %s160, 200
      %s488 = scalar_lea.vmem %s138, 432
      %v489 = vld [vmem:[%s488] sm:$0xff]
      %s490 = scalar_lea.vmem %s160, 216
      %s491 = scalar_lea.vmem %s138, 464
      %v492 = vld [vmem:[%s491] sm:$0xff]
      %s493 = scalar_lea.vmem %s160, 232
      %s494 = scalar_lea.vmem %s138, 496
      %v495 = vld [vmem:[%s494] sm:$0xff]
      %s496 = scalar_lea.vmem %s160, 248
      %s497 = scalar_lea.vmem %s138, 528
      %v498 = vld [vmem:[%s497] sm:$0xff]
      %s499 = scalar_lea.vmem %s160, 264
      %s500 = scalar_lea.vmem %s138, 560
      %v501 = vld [vmem:[%s500] sm:$0xff]
      %s502 = scalar_lea.vmem %s160, 280
      %s503 = scalar_lea.vmem %s138, 592
      %v504 = vld [vmem:[%s503] sm:$0xff]
      %s505 = scalar_lea.vmem %s160, 296
      %s506 = scalar_lea.vmem %s138, 624
      %v507 = vld [vmem:[%s506] sm:$0xff]
      %s508 = scalar_lea.vmem %s160, 312
      %s509 = scalar_lea.vmem %s138, 656
      %v510 = vld [vmem:[%s509] sm:$0xff]
      %s511 = scalar_lea.vmem %s160, 328
      %s512 = scalar_lea.vmem %s138, 688
      %v513 = vld [vmem:[%s512] sm:$0xff]
      %s514 = scalar_lea.vmem %s160, 344
      %s515 = scalar_lea.vmem %s138, 720
      %v516 = vld [vmem:[%s515] sm:$0xff]
      %s517 = scalar_lea.vmem %s160, 360
      %s518 = scalar_lea.vmem %s138, 752
      %v519 = vld [vmem:[%s518] sm:$0xff]
      %s520 = scalar_lea.vmem %s160, 376
      %s521 = scalar_lea.vmem %s138, 784
      %v522 = vld [vmem:[%s521] sm:$0xff]
      %s523 = scalar_lea.vmem %s160, 392
      %s524 = scalar_lea.vmem %s138, 816
      %v525 = vld [vmem:[%s524] sm:$0xff]
      %s526 = scalar_lea.vmem %s160, 408
      %s527 = scalar_lea.vmem %s138, 848
      %v528 = vld [vmem:[%s527] sm:$0xff]
      %s529 = scalar_lea.vmem %s160, 424
      %s530 = scalar_lea.vmem %s138, 880
      %v531 = vld [vmem:[%s530] sm:$0xff]
      %s532 = scalar_lea.vmem %s160, 440
      %s533 = scalar_lea.vmem %s138, 912
      %v534 = vld [vmem:[%s533] sm:$0xff]
      %s535 = scalar_lea.vmem %s160, 456
      %s536 = scalar_lea.vmem %s138, 944
      %v537 = vld [vmem:[%s536] sm:$0xff]
      %s538 = scalar_lea.vmem %s160, 472
      %s539 = scalar_lea.vmem %s138, 976
      %v540 = vld [vmem:[%s539] sm:$0xff]
      %s541 = scalar_lea.vmem %s160, 488
      %s542 = scalar_lea.vmem %s138, 1008
      %v543 = vld [vmem:[%s542] sm:$0xff]
      %s544 = scalar_lea.vmem %s160, 504
      %s545 = scalar_lea.vmem %s138, 24
      %v546 = vld [vmem:[%s545] sm:$0xff]
      %s547 = scalar_lea.vmem %s160, 12
      %s548 = scalar_lea.vmem %s547, 4294967292
      %v549 = vpack.c.bf16 %v546, %v450
      %550 = vst [vmem:[%s548] sm:$0xff] %v549
      %s551 = scalar_lea.vmem %s138, 56
      %v552 = vld [vmem:[%s551] sm:$0xff]
      %s553 = scalar_lea.vmem %s160, 28
      %s554 = scalar_lea.vmem %s553, 4294967292
      %v555 = vpack.c.bf16 %v552, %v453
      %556 = vst [vmem:[%s554] sm:$0xff] %v555
      %s557 = scalar_lea.vmem %s138, 88
      %v558 = vld [vmem:[%s557] sm:$0xff]
      %s559 = scalar_lea.vmem %s160, 44
      %s560 = scalar_lea.vmem %s559, 4294967292
      %v561 = vpack.c.bf16 %v558, %v456
      %562 = vst [vmem:[%s560] sm:$0xff] %v561
      %s563 = scalar_lea.vmem %s138, 120
      %v564 = vld [vmem:[%s563] sm:$0xff]
      %s565 = scalar_lea.vmem %s160, 60
      %s566 = scalar_lea.vmem %s565, 4294967292
      %v567 = vpack.c.bf16 %v564, %v459
      %568 = vst [vmem:[%s566] sm:$0xff] %v567
      %s569 = scalar_lea.vmem %s138, 152
      %v570 = vld [vmem:[%s569] sm:$0xff]
      %s571 = scalar_lea.vmem %s160, 76
      %s572 = scalar_lea.vmem %s571, 4294967292
      %v573 = vpack.c.bf16 %v570, %v462
      %574 = vst [vmem:[%s572] sm:$0xff] %v573
      %s575 = scalar_lea.vmem %s138, 184
      %v576 = vld [vmem:[%s575] sm:$0xff]
      %s577 = scalar_lea.vmem %s160, 92
      %s578 = scalar_lea.vmem %s577, 4294967292
      %v579 = vpack.c.bf16 %v576, %v465
      %580 = vst [vmem:[%s578] sm:$0xff] %v579
      %s581 = scalar_lea.vmem %s138, 216
      %v582 = vld [vmem:[%s581] sm:$0xff]
      %s583 = scalar_lea.vmem %s160, 108
      %s584 = scalar_lea.vmem %s583, 4294967292
      %v585 = vpack.c.bf16 %v582, %v468
      %586 = vst [vmem:[%s584] sm:$0xff] %v585
      %s587 = scalar_lea.vmem %s138, 248
      %v588 = vld [vmem:[%s587] sm:$0xff]
      %s589 = scalar_lea.vmem %s160, 124
      %s590 = scalar_lea.vmem %s589, 4294967292
      %v591 = vpack.c.bf16 %v588, %v471
      %592 = vst [vmem:[%s590] sm:$0xff] %v591
      %s593 = scalar_lea.vmem %s138, 280
      %v594 = vld [vmem:[%s593] sm:$0xff]
      %s595 = scalar_lea.vmem %s160, 140
      %s596 = scalar_lea.vmem %s595, 4294967292
      %v597 = vpack.c.bf16 %v594, %v474
      %598 = vst [vmem:[%s596] sm:$0xff] %v597
      %s599 = scalar_lea.vmem %s138, 312
      %v600 = vld [vmem:[%s599] sm:$0xff]
      %s601 = scalar_lea.vmem %s160, 156
      %s602 = scalar_lea.vmem %s601, 4294967292
      %v603 = vpack.c.bf16 %v600, %v477
      %604 = vst [vmem:[%s602] sm:$0xff] %v603
      %s605 = scalar_lea.vmem %s138, 344
      %v606 = vld [vmem:[%s605] sm:$0xff]
      %s607 = scalar_lea.vmem %s160, 172
      %s608 = scalar_lea.vmem %s607, 4294967292
      %v609 = vpack.c.bf16 %v606, %v480
      %610 = vst [vmem:[%s608] sm:$0xff] %v609
      %s611 = scalar_lea.vmem %s138, 376
      %v612 = vld [vmem:[%s611] sm:$0xff]
      %s613 = scalar_lea.vmem %s160, 188
      %s614 = scalar_lea.vmem %s613, 4294967292
      %v615 = vpack.c.bf16 %v612, %v483
      %616 = vst [vmem:[%s614] sm:$0xff] %v615
      %s617 = scalar_lea.vmem %s138, 408
      %v618 = vld [vmem:[%s617] sm:$0xff]
      %s619 = scalar_lea.vmem %s160, 204
      %s620 = scalar_lea.vmem %s619, 4294967292
      %v621 = vpack.c.bf16 %v618, %v486
      %622 = vst [vmem:[%s620] sm:$0xff] %v621
      %s623 = scalar_lea.vmem %s138, 440
      %v624 = vld [vmem:[%s623] sm:$0xff]
      %s625 = scalar_lea.vmem %s160, 220
      %s626 = scalar_lea.vmem %s625, 4294967292
      %v627 = vpack.c.bf16 %v624, %v489
      %628 = vst [vmem:[%s626] sm:$0xff] %v627
      %s629 = scalar_lea.vmem %s138, 472
      %v630 = vld [vmem:[%s629] sm:$0xff]
      %s631 = scalar_lea.vmem %s160, 236
      %s632 = scalar_lea.vmem %s631, 4294967292
      %v633 = vpack.c.bf16 %v630, %v492
      %634 = vst [vmem:[%s632] sm:$0xff] %v633
      %s635 = scalar_lea.vmem %s138, 504
      %v636 = vld [vmem:[%s635] sm:$0xff]
      %s637 = scalar_lea.vmem %s160, 252
      %s638 = scalar_lea.vmem %s637, 4294967292
      %v639 = vpack.c.bf16 %v636, %v495
      %640 = vst [vmem:[%s638] sm:$0xff] %v639
      %s641 = scalar_lea.vmem %s138, 536
      %v642 = vld [vmem:[%s641] sm:$0xff]
      %s643 = scalar_lea.vmem %s160, 268
      %s644 = scalar_lea.vmem %s643, 4294967292
      %v645 = vpack.c.bf16 %v642, %v498
      %646 = vst [vmem:[%s644] sm:$0xff] %v645
      %s647 = scalar_lea.vmem %s138, 568
      %v648 = vld [vmem:[%s647] sm:$0xff]
      %s649 = scalar_lea.vmem %s160, 284
      %s650 = scalar_lea.vmem %s649, 4294967292
      %v651 = vpack.c.bf16 %v648, %v501
      %652 = vst [vmem:[%s650] sm:$0xff] %v651
      %s653 = scalar_lea.vmem %s138, 600
      %v654 = vld [vmem:[%s653] sm:$0xff]
      %s655 = scalar_lea.vmem %s160, 300
      %s656 = scalar_lea.vmem %s655, 4294967292
      %v657 = vpack.c.bf16 %v654, %v504
      %658 = vst [vmem:[%s656] sm:$0xff] %v657
      %s659 = scalar_lea.vmem %s138, 632
      %v660 = vld [vmem:[%s659] sm:$0xff]
      %s661 = scalar_lea.vmem %s160, 316
      %s662 = scalar_lea.vmem %s661, 4294967292
      %v663 = vpack.c.bf16 %v660, %v507
      %664 = vst [vmem:[%s662] sm:$0xff] %v663
      %s665 = scalar_lea.vmem %s138, 664
      %v666 = vld [vmem:[%s665] sm:$0xff]
      %s667 = scalar_lea.vmem %s160, 332
      %s668 = scalar_lea.vmem %s667, 4294967292
      %v669 = vpack.c.bf16 %v666, %v510
      %670 = vst [vmem:[%s668] sm:$0xff] %v669
      %s671 = scalar_lea.vmem %s138, 696
      %v672 = vld [vmem:[%s671] sm:$0xff]
      %s673 = scalar_lea.vmem %s160, 348
      %s674 = scalar_lea.vmem %s673, 4294967292
      %v675 = vpack.c.bf16 %v672, %v513
      %676 = vst [vmem:[%s674] sm:$0xff] %v675
      %s677 = scalar_lea.vmem %s138, 728
      %v678 = vld [vmem:[%s677] sm:$0xff]
      %s679 = scalar_lea.vmem %s160, 364
      %s680 = scalar_lea.vmem %s679, 4294967292
      %v681 = vpack.c.bf16 %v678, %v516
      %682 = vst [vmem:[%s680] sm:$0xff] %v681
      %s683 = scalar_lea.vmem %s138, 760
      %v684 = vld [vmem:[%s683] sm:$0xff]
      %s685 = scalar_lea.vmem %s160, 380
      %s686 = scalar_lea.vmem %s685, 4294967292
      %v687 = vpack.c.bf16 %v684, %v519
      %688 = vst [vmem:[%s686] sm:$0xff] %v687
      %s689 = scalar_lea.vmem %s138, 792
      %v690 = vld [vmem:[%s689] sm:$0xff]
      %s691 = scalar_lea.vmem %s160, 396
      %s692 = scalar_lea.vmem %s691, 4294967292
      %v693 = vpack.c.bf16 %v690, %v522
      %694 = vst [vmem:[%s692] sm:$0xff] %v693
      %s695 = scalar_lea.vmem %s138, 824
      %v696 = vld [vmem:[%s695] sm:$0xff]
      %s697 = scalar_lea.vmem %s160, 412
      %s698 = scalar_lea.vmem %s697, 4294967292
      %v699 = vpack.c.bf16 %v696, %v525
      %700 = vst [vmem:[%s698] sm:$0xff] %v699
      %s701 = scalar_lea.vmem %s138, 856
      %v702 = vld [vmem:[%s701] sm:$0xff]
      %s703 = scalar_lea.vmem %s160, 428
      %s704 = scalar_lea.vmem %s703, 4294967292
      %v705 = vpack.c.bf16 %v702, %v528
      %706 = vst [vmem:[%s704] sm:$0xff] %v705
      %s707 = scalar_lea.vmem %s138, 888
      %v708 = vld [vmem:[%s707] sm:$0xff]
      %s709 = scalar_lea.vmem %s160, 444
      %s710 = scalar_lea.vmem %s709, 4294967292
      %v711 = vpack.c.bf16 %v708, %v531
      %712 = vst [vmem:[%s710] sm:$0xff] %v711
      %s713 = scalar_lea.vmem %s138, 920
      %v714 = vld [vmem:[%s713] sm:$0xff]
      %s715 = scalar_lea.vmem %s160, 460
      %s716 = scalar_lea.vmem %s715, 4294967292
      %v717 = vpack.c.bf16 %v714, %v534
      %718 = vst [vmem:[%s716] sm:$0xff] %v717
      %s719 = scalar_lea.vmem %s138, 952
      %v720 = vld [vmem:[%s719] sm:$0xff]
      %s721 = scalar_lea.vmem %s160, 476
      %s722 = scalar_lea.vmem %s721, 4294967292
      %v723 = vpack.c.bf16 %v720, %v537
      %724 = vst [vmem:[%s722] sm:$0xff] %v723
      %s725 = scalar_lea.vmem %s138, 984
      %v726 = vld [vmem:[%s725] sm:$0xff]
      %s727 = scalar_lea.vmem %s160, 492
      %s728 = scalar_lea.vmem %s727, 4294967292
      %v729 = vpack.c.bf16 %v726, %v540
      %730 = vst [vmem:[%s728] sm:$0xff] %v729
      %s731 = scalar_lea.vmem %s138, 1016
      %v732 = vld [vmem:[%s731] sm:$0xff]
      %s733 = scalar_lea.vmem %s160, 508
      %s734 = scalar_lea.vmem %s733, 4294967292
      %v735 = vpack.c.bf16 %v732, %v543
      %736 = vst [vmem:[%s734] sm:$0xff] %v735
      %s737 = smul.u32 32, %s16
      %s738 = smul.u32 4, %s17
      %p739 = scmp.lt.s32.totalorder %s14, 2
      %s740 = scalar_select %p739, %s14, 2
      %p741 = scmp.lt.s32.totalorder %s15, 2
      %s742 = scalar_select %p741, %s15, 2
      %p743 = scmp.lt.s32.totalorder %s737, 31
      %s744 = scalar_select %p743, %s737, 31
      %p745 = scmp.lt.s32.totalorder %s738, 3
      %s746 = scalar_select %p745, %s738, 3
      %s747 = smul.addr %s744, 4
      %s748 = sadd.s32 %s746, %s747
      %s749 = smul.addr %s742, 128
      %s750 = sadd.s32 %s748, %s749
      %s751 = smul.addr %s740, 384
      %s752 = sadd.s32 %s750, %s751
      %s753 = smul.addr %s752, 4
      %s754 = scalar_lea.vmem %s1, %s753
      %s755 = smul.u32 32, %s16
      %s756 = smul.u32 4, %s17
    $region20: #{reverse.11} parent=5 // pred_fallthru
      _
    %p757 = scmp.le.s32.totalorder 2, %s3
    // Predicated region
    $region21: #{reverse.11} parent=5 // pred_check
      %p758 = pneg %p757
    $region22: #{reverse.11} parent=5 // pred_check_branch
      %760 = sbr.rel (%p758) target = $region24
    $region23: #{reverse.11} parent=5 // pred_region
      %s761 = ssub.s32 %s3, 2
      %s762 = smul.u32 32, %s20
      %s763 = smul.u32 4, %s21
      %p764 = scmp.lt.s32.totalorder %s18, 2
      %s765 = scalar_select %p764, %s18, 2
      %p766 = scmp.lt.s32.totalorder %s19, 2
      %s767 = scalar_select %p766, %s19, 2
      %p768 = scmp.lt.s32.totalorder %s762, 31
      %s769 = scalar_select %p768, %s762, 31
      %p770 = scmp.lt.s32.totalorder %s763, 3
      %s771 = scalar_select %p770, %s763, 3
      %s772 = smul.addr %s769, 4
      %s773 = sadd.s32 %s771, %s772
      %s774 = smul.addr %s767, 128
      %s775 = sadd.s32 %s773, %s774
      %s776 = smul.addr %s765, 384
      %s777 = sadd.s32 %s775, %s776
      %s778 = smul.addr %s777, 4
      %s779 = scalar_lea.vmem %s1, %s778
    $region24: #{reverse.11} parent=5 // pred_fallthru
      _
  $region6: #{reverse.11} parent=0 // loop_footer
    %s7 = sadd.s32 1, %s3
  $region7: #{reverse.11} parent=0 // loop_footer_branch
    %2 = sbr.rel target = $region3
  $region8: #{reverse.11} parent=0 // loop_exit
    _

// kernel: fpnmil_forward.1
$region0: #{fpnmil_forward.1}
  #allocation0 [shape = 'u32[]', space=smem, size = 0x4, offset = 0x4, fixed_abs, tag = 'smem constant byte address 0x4 - core index']
  #allocation1 [shape = 'u32[72,128]{1,0:T(1,128)}', space=vmem, size = 0x9000, scoped, tag = 'internal scratch']
  %s0 = inlined_call_operand.vmem [shape: bf16[2,4,64,64], index: 0, kind: input, shape index: {}]
  %s1 = inlined_call_operand.vmem [shape: bf16[2,4,16,128], index: 1, kind: input, shape index: {}]
  %s2 = inlined_call_operand.vmem [shape: bf16[2,4,4,256], index: 2, kind: input, shape index: {}]
  %s3 = inlined_call_operand.vmem [shape: f32[2,4,1,512], index: 3, kind: input, shape index: {}]
  %s4 = inlined_call_operand.vmem [shape: bf16[64,512], index: 4, kind: input, shape index: {}]
  %s5 = inlined_call_operand.vmem [shape: f32[1,512], index: 5, kind: input, shape index: {}]
  %s6 = inlined_call_operand.vmem [shape: bf16[128,512], index: 6, kind: input, shape index: {}]
  %s7 = inlined_call_operand.vmem [shape: f32[1,512], index: 7, kind: input, shape index: {}]
  %s8 = inlined_call_operand.vmem [shape: bf16[256,512], index: 8, kind: input, shape index: {}]
  %s9 = inlined_call_operand.vmem [shape: f32[1,512], index: 9, kind: input, shape index: {}]
  %s10 = inlined_call_operand.vmem [shape: f32[2,1,512], index: 10, kind: output, shape index: {}]
  %s11 = sld [smem:[#allocation0]]
  $region88: #{fpnmil_forward.1} parent=0
    _
  %s13 = ssub.s32 1, %s11
  %s14 = scalar_select 0, %s13, %s11
  loop: start=0, step=1, limit=4
  $region2: #{fpnmil_forward.1} parent=0 // loop_pre_header
    _
  $region3: #{fpnmil_forward.1} parent=0 // loop_header
    %s16 = sphi 0, %s20
    %p17 = scmp.ge.s32.totalorder %s16, 4
    %s23 = sphi 0, %s35
    %s24 = sphi 0, %s31
    %s25 = sphi 0, %s23
    %s26 = sphi 0, %s24
    %s27 = sphi 0, %s25
    %s28 = sphi 0, %s26
    %s40 = sphi 0, %s42
    %s43 = sphi 0, %s40
    %s44 = sphi 0, %s43
    %s60 = sphi 0, %s44
    %s68 = sphi 0, %s70
    %s71 = sphi 0, %s68
    %s72 = sphi 0, %s71
    %s88 = sphi 0, %s72
    %s96 = sphi 0, %s98
    %s99 = sphi 0, %s96
    %s100 = sphi 0, %s99
    %s116 = sphi 0, %s100
    %s124 = sphi 0, %s126
    %s127 = sphi 0, %s124
    %s128 = sphi 0, %s127
    %s144 = sphi 0, %s128
    %s148 = sphi 0, %s148
    %s150 = sphi 0, %s148
    %s151 = sphi 0, %s150
    %s165 = sphi 0, %s151
    %s169 = sphi 0, %s169
    %s171 = sphi 0, %s169
    %s172 = sphi 0, %s171
    %s186 = sphi 0, %s172
    %s190 = sphi 0, %s190
    %s192 = sphi 0, %s190
    %s193 = sphi 0, %s192
    %s207 = sphi 0, %s193
    %s211 = sphi 0, %s211
    %s213 = sphi 0, %s211
    %s214 = sphi 0, %s213
    %s228 = sphi 0, %s214
    %s232 = sphi 0, %s232
    %s234 = sphi 0, %s232
    %s235 = sphi 0, %s234
    %s249 = sphi 0, %s235
    %s253 = sphi 0, %s253
    %s255 = sphi 0, %s253
    %s256 = sphi 0, %s255
    %s270 = sphi 0, %s256
    %s276 = sphi 0, %s278
    %s279 = sphi 0, %s276
    %s280 = sphi 0, %s279
    %s296 = sphi 0, %s280
  $region4: #{fpnmil_forward.1} parent=0 // loop_header_branch
    %19 = sbr.rel (%p17) target = $region8
  $region5: #{fpnmil_forward.1} parent=0 // loop_body
    %s21 = ssub.s32 %s16, 1
    %s22 = ssub.s32 %s16, 2
    %s29 = sadd.s32 1, %s24
    %p30 = scmp.ge.s32.totalorder %s29, 1
    %s31 = scalar_select %p30, 0, %s29
    %s32 = sadd.s32 1, %s23
    %s33 = scalar_select %p30, %s32, %s23
    %p34 = scmp.ge.s32.totalorder %s33, 2
    %s35 = scalar_select %p34, 0, %s33
    %s36 = ssub.s32 %s23, %s35
    %s37 = ssub.s32 %s24, %s31
    %s38 = sor.u32 %s36, %s37
    %p39 = scmp.eq.s32.totalorder %s38, 0
    %s41 = sadd.s32 %s40, 1
    %s42 = scalar_select %p39, %s40, %s41
    %p45 = pneg %p39
    %p46 = scmp.eq.s32.totalorder %s16, 1
    %p47 = por %p45, %p46
    %p48 = scmp.ne.s32.totalorder %s40, %s43
    %p49 = scmp.eq.s32.totalorder %s16, 0
    %p50 = por %p48, %p49
    %p51 = scmp.ne.s32.totalorder %s40, %s43
    %p52 = scmp.eq.s32.totalorder %s21, 1
    %p53 = por %p51, %p52
    %p54 = scmp.ne.s32.totalorder %s43, %s44
    %p55 = scmp.eq.s32.totalorder %s21, 0
    %p56 = por %p54, %p55
    %p57 = scmp.ne.s32.totalorder %s43, %s44
    %p58 = scmp.eq.s32.totalorder %s22, 1
    %p59 = por %p57, %p58
    %p61 = scmp.ne.s32.totalorder %s44, %s60
    %p62 = scmp.eq.s32.totalorder %s22, 0
    %p63 = por %p61, %p62
    %s64 = ssub.s32 %s23, %s35
    %s65 = ssub.s32 %s24, %s31
    %s66 = sor.u32 %s64, %s65
    %p67 = scmp.eq.s32.totalorder %s66, 0
    %s69 = sadd.s32 %s68, 1
    %s70 = scalar_select %p67, %s68, %s69
    %p73 = pneg %p67
    %p74 = scmp.eq.s32.totalorder %s16, 1
    %p75 = por %p73, %p74
    %p76 = scmp.ne.s32.totalorder %s68, %s71
    %p77 = scmp.eq.s32.totalorder %s16, 0
    %p78 = por %p76, %p77
    %p79 = scmp.ne.s32.totalorder %s68, %s71
    %p80 = scmp.eq.s32.totalorder %s21, 1
    %p81 = por %p79, %p80
    %p82 = scmp.ne.s32.totalorder %s71, %s72
    %p83 = scmp.eq.s32.totalorder %s21, 0
    %p84 = por %p82, %p83
    %p85 = scmp.ne.s32.totalorder %s71, %s72
    %p86 = scmp.eq.s32.totalorder %s22, 1
    %p87 = por %p85, %p86
    %p89 = scmp.ne.s32.totalorder %s72, %s88
    %p90 = scmp.eq.s32.totalorder %s22, 0
    %p91 = por %p89, %p90
    %s92 = ssub.s32 %s23, %s35
    %s93 = ssub.s32 %s24, %s31
    %s94 = sor.u32 %s92, %s93
    %p95 = scmp.eq.s32.totalorder %s94, 0
    %s97 = sadd.s32 %s96, 1
    %s98 = scalar_select %p95, %s96, %s97
    %p101 = pneg %p95
    %p102 = scmp.eq.s32.totalorder %s16, 1
    %p103 = por %p101, %p102
    %p104 = scmp.ne.s32.totalorder %s96, %s99
    %p105 = scmp.eq.s32.totalorder %s16, 0
    %p106 = por %p104, %p105
    %p107 = scmp.ne.s32.totalorder %s96, %s99
    %p108 = scmp.eq.s32.totalorder %s21, 1
    %p109 = por %p107, %p108
    %p110 = scmp.ne.s32.totalorder %s99, %s100
    %p111 = scmp.eq.s32.totalorder %s21, 0
    %p112 = por %p110, %p111
    %p113 = scmp.ne.s32.totalorder %s99, %s100
    %p114 = scmp.eq.s32.totalorder %s22, 1
    %p115 = por %p113, %p114
    %p117 = scmp.ne.s32.totalorder %s100, %s116
    %p118 = scmp.eq.s32.totalorder %s22, 0
    %p119 = por %p117, %p118
    %s120 = ssub.s32 %s23, %s35
    %s121 = ssub.s32 %s24, %s31
    %s122 = sor.u32 %s120, %s121
    %p123 = scmp.eq.s32.totalorder %s122, 0
    %s125 = sadd.s32 %s124, 1
    %s126 = scalar_select %p123, %s124, %s125
    %p129 = pneg %p123
    %p130 = scmp.eq.s32.totalorder %s16, 1
    %p131 = por %p129, %p130
    %p132 = scmp.ne.s32.totalorder %s124, %s127
    %p133 = scmp.eq.s32.totalorder %s16, 0
    %p134 = por %p132, %p133
    %p135 = scmp.ne.s32.totalorder %s124, %s127
    %p136 = scmp.eq.s32.totalorder %s21, 1
    %p137 = por %p135, %p136
    %p138 = scmp.ne.s32.totalorder %s127, %s128
    %p139 = scmp.eq.s32.totalorder %s21, 0
    %p140 = por %p138, %p139
    %p141 = scmp.ne.s32.totalorder %s127, %s128
    %p142 = scmp.eq.s32.totalorder %s22, 1
    %p143 = por %p141, %p142
    %p145 = scmp.ne.s32.totalorder %s128, %s144
    %p146 = scmp.eq.s32.totalorder %s22, 0
    %p147 = por %p145, %p146
    %s149 = sadd.s32 %s148, 1
    %p152 = scmp.eq.s32.totalorder %s16, 1
    %p153 = scmp.ne.s32.totalorder %s148, %s150
    %p154 = scmp.eq.s32.totalorder %s16, 0
    %p155 = por %p153, %p154
    %p156 = scmp.ne.s32.totalorder %s148, %s150
    %p157 = scmp.eq.s32.totalorder %s21, 1
    %p158 = por %p156, %p157
    %p159 = scmp.ne.s32.totalorder %s150, %s151
    %p160 = scmp.eq.s32.totalorder %s21, 0
    %p161 = por %p159, %p160
    %p162 = scmp.ne.s32.totalorder %s150, %s151
    %p163 = scmp.eq.s32.totalorder %s22, 1
    %p164 = por %p162, %p163
    %p166 = scmp.ne.s32.totalorder %s151, %s165
    %p167 = scmp.eq.s32.totalorder %s22, 0
    %p168 = por %p166, %p167
    %s170 = sadd.s32 %s169, 1
    %p173 = scmp.eq.s32.totalorder %s16, 1
    %p174 = scmp.ne.s32.totalorder %s169, %s171
    %p175 = scmp.eq.s32.totalorder %s16, 0
    %p176 = por %p174, %p175
    %p177 = scmp.ne.s32.totalorder %s169, %s171
    %p178 = scmp.eq.s32.totalorder %s21, 1
    %p179 = por %p177, %p178
    %p180 = scmp.ne.s32.totalorder %s171, %s172
    %p181 = scmp.eq.s32.totalorder %s21, 0
    %p182 = por %p180, %p181
    %p183 = scmp.ne.s32.totalorder %s171, %s172
    %p184 = scmp.eq.s32.totalorder %s22, 1
    %p185 = por %p183, %p184
    %p187 = scmp.ne.s32.totalorder %s172, %s186
    %p188 = scmp.eq.s32.totalorder %s22, 0
    %p189 = por %p187, %p188
    %s191 = sadd.s32 %s190, 1
    %p194 = scmp.eq.s32.totalorder %s16, 1
    %p195 = scmp.ne.s32.totalorder %s190, %s192
    %p196 = scmp.eq.s32.totalorder %s16, 0
    %p197 = por %p195, %p196
    %p198 = scmp.ne.s32.totalorder %s190, %s192
    %p199 = scmp.eq.s32.totalorder %s21, 1
    %p200 = por %p198, %p199
    %p201 = scmp.ne.s32.totalorder %s192, %s193
    %p202 = scmp.eq.s32.totalorder %s21, 0
    %p203 = por %p201, %p202
    %p204 = scmp.ne.s32.totalorder %s192, %s193
    %p205 = scmp.eq.s32.totalorder %s22, 1
    %p206 = por %p204, %p205
    %p208 = scmp.ne.s32.totalorder %s193, %s207
    %p209 = scmp.eq.s32.totalorder %s22, 0
    %p210 = por %p208, %p209
    %s212 = sadd.s32 %s211, 1
    %p215 = scmp.eq.s32.totalorder %s16, 1
    %p216 = scmp.ne.s32.totalorder %s211, %s213
    %p217 = scmp.eq.s32.totalorder %s16, 0
    %p218 = por %p216, %p217
    %p219 = scmp.ne.s32.totalorder %s211, %s213
    %p220 = scmp.eq.s32.totalorder %s21, 1
    %p221 = por %p219, %p220
    %p222 = scmp.ne.s32.totalorder %s213, %s214
    %p223 = scmp.eq.s32.totalorder %s21, 0
    %p224 = por %p222, %p223
    %p225 = scmp.ne.s32.totalorder %s213, %s214
    %p226 = scmp.eq.s32.totalorder %s22, 1
    %p227 = por %p225, %p226
    %p229 = scmp.ne.s32.totalorder %s214, %s228
    %p230 = scmp.eq.s32.totalorder %s22, 0
    %p231 = por %p229, %p230
    %s233 = sadd.s32 %s232, 1
    %p236 = scmp.eq.s32.totalorder %s16, 1
    %p237 = scmp.ne.s32.totalorder %s232, %s234
    %p238 = scmp.eq.s32.totalorder %s16, 0
    %p239 = por %p237, %p238
    %p240 = scmp.ne.s32.totalorder %s232, %s234
    %p241 = scmp.eq.s32.totalorder %s21, 1
    %p242 = por %p240, %p241
    %p243 = scmp.ne.s32.totalorder %s234, %s235
    %p244 = scmp.eq.s32.totalorder %s21, 0
    %p245 = por %p243, %p244
    %p246 = scmp.ne.s32.totalorder %s234, %s235
    %p247 = scmp.eq.s32.totalorder %s22, 1
    %p248 = por %p246, %p247
    %p250 = scmp.ne.s32.totalorder %s235, %s249
    %p251 = scmp.eq.s32.totalorder %s22, 0
    %p252 = por %p250, %p251
    %s254 = sadd.s32 %s253, 1
    %p257 = scmp.eq.s32.totalorder %s16, 1
    %p258 = scmp.ne.s32.totalorder %s253, %s255
    %p259 = scmp.eq.s32.totalorder %s16, 0
    %p260 = por %p258, %p259
    %p261 = scmp.ne.s32.totalorder %s253, %s255
    %p262 = scmp.eq.s32.totalorder %s21, 1
    %p263 = por %p261, %p262
    %p264 = scmp.ne.s32.totalorder %s255, %s256
    %p265 = scmp.eq.s32.totalorder %s21, 0
    %p266 = por %p264, %p265
    %p267 = scmp.ne.s32.totalorder %s255, %s256
    %p268 = scmp.eq.s32.totalorder %s22, 1
    %p269 = por %p267, %p268
    %p271 = scmp.ne.s32.totalorder %s256, %s270
    %p272 = scmp.eq.s32.totalorder %s22, 0
    %p273 = por %p271, %p272
    %s274 = ssub.s32 %s23, %s35
    %p275 = scmp.eq.s32.totalorder %s274, 0
    %s277 = sadd.s32 %s276, 1
    %s278 = scalar_select %p275, %s276, %s277
    %p281 = pneg %p275
    %p282 = scmp.eq.s32.totalorder %s16, 1
    %p283 = por %p281, %p282
    %p284 = scmp.ne.s32.totalorder %s276, %s279
    %p285 = scmp.eq.s32.totalorder %s16, 0
    %p286 = por %p284, %p285
    %p287 = scmp.ne.s32.totalorder %s276, %s279
    %p288 = scmp.eq.s32.totalorder %s21, 1
    %p289 = por %p287, %p288
    %p290 = scmp.ne.s32.totalorder %s279, %s280
    %p291 = scmp.eq.s32.totalorder %s21, 0
    %p292 = por %p290, %p291
    %p293 = scmp.ne.s32.totalorder %s279, %s280
    %p294 = scmp.eq.s32.totalorder %s22, 1
    %p295 = por %p293, %p294
    %p297 = scmp.ne.s32.totalorder %s280, %s296
    %p298 = scmp.eq.s32.totalorder %s22, 0
    %p299 = por %p297, %p298
    %p300 = scmp.le.s32.totalorder 1, %s16
    %p301 = scmp.lt.s32.totalorder %s16, 3
    %p302 = pnand %p300, %p301
    %p303 = pneg %p302
    // Predicated region
    $region9: #{fpnmil_forward.1} parent=5 // pred_check
      _
    $region10: #{fpnmil_forward.1} parent=5 // pred_check_branch
      %305 = sbr.rel (%p302) target = $region12
    $region11: #{fpnmil_forward.1} parent=5 // pred_region
      %s306 = ssub.s32 %s16, 1
      // Predicated region
      $region13: #{fpnmil_forward.1} parent=11 // pred_check
        %p307 = pneg %p161
      $region14: #{fpnmil_forward.1} parent=11 // pred_check_branch
        %309 = sbr.rel (%p307) target = $region16
      $region15: #{fpnmil_forward.1} parent=11 // pred_region
        _
      $region16: #{fpnmil_forward.1} parent=11 // pred_fallthru
        _
      // Predicated region
      $region17: #{fpnmil_forward.1} parent=11 // pred_check
        %p310 = pneg %p182
      $region18: #{fpnmil_forward.1} parent=11 // pred_check_branch
        %312 = sbr.rel (%p310) target = $region20
      $region19: #{fpnmil_forward.1} parent=11 // pred_region
        _
      $region20: #{fpnmil_forward.1} parent=11 // pred_fallthru
        _
      // Predicated region
      $region21: #{fpnmil_forward.1} parent=11 // pred_check
        %p313 = pneg %p203
      $region22: #{fpnmil_forward.1} parent=11 // pred_check_branch
        %315 = sbr.rel (%p313) target = $region24
      $region23: #{fpnmil_forward.1} parent=11 // pred_region
        _
      $region24: #{fpnmil_forward.1} parent=11 // pred_fallthru
        _
      // Predicated region
      $region25: #{fpnmil_forward.1} parent=11 // pred_check
        %p316 = pneg %p224
      $region26: #{fpnmil_forward.1} parent=11 // pred_check_branch
        %318 = sbr.rel (%p316) target = $region28
      $region27: #{fpnmil_forward.1} parent=11 // pred_region
        _
      $region28: #{fpnmil_forward.1} parent=11 // pred_fallthru
        _
      // Predicated region
      $region29: #{fpnmil_forward.1} parent=11 // pred_check
        %p319 = pneg %p245
      $region30: #{fpnmil_forward.1} parent=11 // pred_check_branch
        %321 = sbr.rel (%p319) target = $region32
      $region31: #{fpnmil_forward.1} parent=11 // pred_region
        _
      $region32: #{fpnmil_forward.1} parent=11 // pred_fallthru
        _
      // Predicated region
      $region33: #{fpnmil_forward.1} parent=11 // pred_check
        %p322 = pneg %p266
      $region34: #{fpnmil_forward.1} parent=11 // pred_check_branch
        %324 = sbr.rel (%p322) target = $region36
      $region35: #{fpnmil_forward.1} parent=11 // pred_region
        _
      $region36: #{fpnmil_forward.1} parent=11 // pred_fallthru
        _
    $region12: #{fpnmil_forward.1} parent=5 // pred_fallthru
      _
    %p325 = scmp.lt.s32.totalorder %s16, 2
    // Predicated region
    $region37: #{fpnmil_forward.1} parent=5 // pred_check
      %p326 = pneg %p325
    $region38: #{fpnmil_forward.1} parent=5 // pred_check_branch
      %328 = sbr.rel (%p326) target = $region40
    $region39: #{fpnmil_forward.1} parent=5 // pred_region
      // Predicated region
      $region41: #{fpnmil_forward.1} parent=39 // pred_check
        %p329 = pneg %p50
      $region42: #{fpnmil_forward.1} parent=39 // pred_check_branch
        %331 = sbr.rel (%p329) target = $region44
      $region43: #{fpnmil_forward.1} parent=39 // pred_region
        %s332 = smul.u32 4, %s24
        %p333 = scmp.lt.s32.totalorder %s23, 1
        %s334 = scalar_select %p333, %s23, 1
        %p335 = scmp.lt.s32.totalorder %s332, 3
        %s336 = scalar_select %p335, %s332, 3
        %s337 = smul.addr %s336, 8
        %s338 = smul.addr %s334, 32
        %s339 = sadd.s32 %s337, %s338
        %s340 = smul.addr %s339, 4
        %s341 = scalar_lea.vmem %s0, %s340
        %s342 = smul.u32 4, %s24
      $region44: #{fpnmil_forward.1} parent=39 // pred_fallthru
        _
      // Predicated region
      $region45: #{fpnmil_forward.1} parent=39 // pred_check
        %p343 = pneg %p78
      $region46: #{fpnmil_forward.1} parent=39 // pred_check_branch
        %345 = sbr.rel (%p343) target = $region48
      $region47: #{fpnmil_forward.1} parent=39 // pred_region
        %s346 = smul.u32 4, %s24
        %p347 = scmp.lt.s32.totalorder %s23, 1
        %s348 = scalar_select %p347, %s23, 1
        %p349 = scmp.lt.s32.totalorder %s346, 3
        %s350 = scalar_select %p349, %s346, 3
        %s351 = smul.addr %s350, 2
        %s352 = smul.addr %s348, 8
        %s353 = sadd.s32 %s351, %s352
        %s354 = smul.addr %s353, 4
        %s355 = scalar_lea.vmem %s1, %s354
        %s356 = smul.u32 4, %s24
      $region48: #{fpnmil_forward.1} parent=39 // pred_fallthru
        _
      // Predicated region
      $region49: #{fpnmil_forward.1} parent=39 // pred_check
        %p357 = pneg %p106
      $region50: #{fpnmil_forward.1} parent=39 // pred_check_branch
        %359 = sbr.rel (%p357) target = $region52
      $region51: #{fpnmil_forward.1} parent=39 // pred_region
        %s360 = smul.u32 4, %s24
        %p361 = scmp.lt.s32.totalorder %s23, 1
        %s362 = scalar_select %p361, %s23, 1
        %p363 = scmp.lt.s32.totalorder %s360, 3
        %s364 = scalar_select %p363, %s360, 3
        %s365 = smul.addr %s364, 2
        %s366 = smul.addr %s362, 8
        %s367 = sadd.s32 %s365, %s366
        %s368 = smul.addr %s367, 2
        %s369 = scalar_lea.vmem %s2, %s368
        %s370 = smul.u32 4, %s24
      $region52: #{fpnmil_forward.1} parent=39 // pred_fallthru
        _
      // Predicated region
      $region53: #{fpnmil_forward.1} parent=39 // pred_check
        %p371 = pneg %p134
      $region54: #{fpnmil_forward.1} parent=39 // pred_check_branch
        %373 = sbr.rel (%p371) target = $region56
      $region55: #{fpnmil_forward.1} parent=39 // pred_region
        %s374 = smul.u32 4, %s24
        %p375 = scmp.lt.s32.totalorder %s23, 1
        %s376 = scalar_select %p375, %s23, 1
        %p377 = scmp.lt.s32.totalorder %s374, 3
        %s378 = scalar_select %p377, %s374, 3
        %s379 = smul.addr %s378, 4
        %s380 = smul.addr %s376, 16
        %s381 = sadd.s32 %s379, %s380
        %s382 = scalar_lea.vmem %s3, %s381
        %s383 = smul.u32 4, %s24
      $region56: #{fpnmil_forward.1} parent=39 // pred_fallthru
        _
    $region40: #{fpnmil_forward.1} parent=5 // pred_fallthru
      _
    %p384 = scmp.le.s32.totalorder 1, %s16
    %p385 = scmp.lt.s32.totalorder %s16, 3
    %p386 = pnand %p384, %p385
    %p387 = pneg %p386
    // Predicated region
    $region57: #{fpnmil_forward.1} parent=5 // pred_check
      _
    $region58: #{fpnmil_forward.1} parent=5 // pred_check_branch
      %389 = sbr.rel (%p386) target = $region60
    $region59: #{fpnmil_forward.1} parent=5 // pred_region
      %s390 = ssub.s32 %s16, 1
      %s391 = smul.u32 4, %s26
      %p392 = scmp.lt.s32.totalorder %s25, 1
      %s393 = scalar_select %p392, %s25, 1
      %p394 = scmp.lt.s32.totalorder %s391, 3
      %s395 = scalar_select %p394, %s391, 3
      %s396 = smul.addr %s395, 8
      %s397 = smul.addr %s393, 32
      %s398 = sadd.s32 %s396, %s397
      %s399 = smul.addr %s398, 4
      %s400 = scalar_lea.vmem %s0, %s399
      %p401 = pneg %p56
      %p402 = pneg %p53
      %s403 = smul.u32 4, %s26
      %p404 = scmp.lt.s32.totalorder %s25, 1
      %s405 = scalar_select %p404, %s25, 1
      %p406 = scmp.lt.s32.totalorder %s403, 3
      %s407 = scalar_select %p406, %s403, 3
      %s408 = smul.addr %s407, 2
      %s409 = smul.addr %s405, 8
      %s410 = sadd.s32 %s408, %s409
      %s411 = smul.addr %s410, 4
      %s412 = scalar_lea.vmem %s1, %s411
      %p413 = pneg %p84
      %p414 = pneg %p81
      %s415 = smul.u32 4, %s26
      %p416 = scmp.lt.s32.totalorder %s25, 1
      %s417 = scalar_select %p416, %s25, 1
      %p418 = scmp.lt.s32.totalorder %s415, 3
      %s419 = scalar_select %p418, %s415, 3
      %s420 = smul.addr %s419, 2
      %s421 = smul.addr %s417, 8
      %s422 = sadd.s32 %s420, %s421
      %s423 = smul.addr %s422, 2
      %s424 = scalar_lea.vmem %s2, %s423
      %p425 = pneg %p112
      %p426 = pneg %p109
      %s427 = smul.u32 4, %s26
      %p428 = scmp.lt.s32.totalorder %s25, 1
      %s429 = scalar_select %p428, %s25, 1
      %p430 = scmp.lt.s32.totalorder %s427, 3
      %s431 = scalar_select %p430, %s427, 3
      %s432 = smul.addr %s431, 4
      %s433 = smul.addr %s429, 16
      %s434 = sadd.s32 %s432, %s433
      %s435 = scalar_lea.vmem %s3, %s434
      %p436 = pneg %p140
      %p437 = pneg %p137
      %p438 = pneg %p161
      %p439 = pneg %p158
      %p440 = pneg %p182
      %p441 = pneg %p179
      %p442 = pneg %p203
      %p443 = pneg %p200
      %p444 = pneg %p224
      %p445 = pneg %p221
      %p446 = pneg %p245
      %p447 = pneg %p242
      %p448 = pneg %p266
      %p449 = pneg %p263
      %p450 = pneg %p292
      %p451 = pneg %p289
      %p452 = scmp.lt.s32.totalorder %s25, 1
      %s453 = scalar_select %p452, %s25, 1
      %s454 = smul.addr %s453, 4
      %s455 = scalar_lea.vmem %s10, %s454
      %s456 = smul.u32 4, %s26
      %p457 = scmp.lt.s32.totalorder %s25, 1
      %s458 = scalar_select %p457, %s25, 1
      %p459 = scmp.lt.s32.totalorder %s456, 3
      %s460 = scalar_select %p459, %s456, 3
      %s461 = smul.addr %s460, 8
      %s462 = smul.addr %s458, 32
      %s463 = sadd.s32 %s461, %s462
      %s464 = smul.addr %s463, 4
      %s465 = scalar_lea.vmem %s0, %s464
      %s466 = smul.u32 4, %s26
      %s467 = smul.u32 4, %s26
      %p468 = scmp.lt.s32.totalorder %s25, 1
      %s469 = scalar_select %p468, %s25, 1
      %p470 = scmp.lt.s32.totalorder %s467, 3
      %s471 = scalar_select %p470, %s467, 3
      %s472 = smul.addr %s471, 2
      %s473 = smul.addr %s469, 8
      %s474 = sadd.s32 %s472, %s473
      %s475 = smul.addr %s474, 4
      %s476 = scalar_lea.vmem %s1, %s475
      %s477 = smul.u32 4, %s26
      %s478 = smul.u32 4, %s26
      %p479 = scmp.lt.s32.totalorder %s25, 1
      %s480 = scalar_select %p479, %s25, 1
      %p481 = scmp.lt.s32.totalorder %s478, 3
      %s482 = scalar_select %p481, %s478, 3
      %s483 = smul.addr %s482, 2
      %s484 = smul.addr %s480, 8
      %s485 = sadd.s32 %s483, %s484
      %s486 = smul.addr %s485, 2
      %s487 = scalar_lea.vmem %s2, %s486
      %s488 = smul.u32 4, %s26
      %s489 = smul.u32 4, %s26
      %p490 = scmp.lt.s32.totalorder %s25, 1
      %s491 = scalar_select %p490, %s25, 1
      %p492 = scmp.lt.s32.totalorder %s489, 3
      %s493 = scalar_select %p492, %s489, 3
      %s494 = smul.addr %s493, 4
      %s495 = smul.addr %s491, 16
      %s496 = sadd.s32 %s494, %s495
      %s497 = scalar_lea.vmem %s3, %s496
      %s498 = smul.u32 4, %s26
      %p499 = scmp.lt.s32.totalorder %s25, 1
      %s500 = scalar_select %p499, %s25, 1
      %s501 = smul.addr %s500, 4
      %s502 = scalar_lea.vmem %s10, %s501
      loop: start=0, step=1, limit=4
      $region61: #{fpnmil_forward.1} parent=59 // loop_pre_header
        _
      $region62: #{fpnmil_forward.1} parent=59 // loop_header
        %s505 = sphi 0, %s509
        %p506 = scmp.ge.s32.totalorder %s505, 4
        %v510 = vphi -inf, %v1746
        %v511 = vphi -inf, %v1747
        %v512 = vphi -inf, %v1748
        %v513 = vphi -inf, %v1749
      $region63: #{fpnmil_forward.1} parent=59 // loop_header_branch
        %508 = sbr.rel (%p506) target = $region67
      $region64: #{fpnmil_forward.1} parent=59 // loop_body
        %s514 = smul.u32 %s505, 8
        %s515 = smul.addr %s514, 4
        %s516 = scalar_lea.vmem %s465, %s515
        %v517 = vld [vmem:[%s516] sm:$0xf]
        %v518 = vld [vmem:[%s516 + $0x4] sm:$0xf]
        %v519 = vld [vmem:[%s516 + $0x8] sm:$0xf]
        %v520 = vld [vmem:[%s516 + $0xc] sm:$0xf]
        %v521 = vld [vmem:[%s516 + $0x10] sm:$0xf]
        %v522 = vld [vmem:[%s516 + $0x14] sm:$0xf]
        %v523 = vld [vmem:[%s516 + $0x18] sm:$0xf]
        %v524 = vld [vmem:[%s516 + $0x1c] sm:$0xf]
        %v525 = vld [vmem:[%s4] sm:$0xff]
        %v526 = vld [vmem:[%s4 + $0x8] sm:$0xff]
        %v527 = vld [vmem:[%s4 + $0x10] sm:$0xff]
        %v528 = vld [vmem:[%s4 + $0x18] sm:$0xff]
        %v529 = vld [vmem:[%s4 + $0x20] sm:$0xff]
        %v530 = vld [vmem:[%s4 + $0x28] sm:$0xff]
        %v531 = vld [vmem:[%s4 + $0x30] sm:$0xff]
        %v532 = vld [vmem:[%s4 + $0x38] sm:$0xff]
        %v533 = vld [vmem:[%s4 + $0x40] sm:$0xff]
        %v534 = vld [vmem:[%s4 + $0x48] sm:$0xff]
        %v535 = vld [vmem:[%s4 + $0x50] sm:$0xff]
        %v536 = vld [vmem:[%s4 + $0x58] sm:$0xff]
        %v537 = vld [vmem:[%s4 + $0x60] sm:$0xff]
        %v538 = vld [vmem:[%s4 + $0x68] sm:$0xff]
        %v539 = vld [vmem:[%s4 + $0x70] sm:$0xff]
        %v540 = vld [vmem:[%s4 + $0x78] sm:$0xff]
        %v541 = vld [vmem:[%s5] sm:$0xf]
        %v543 = vperm.slane %v541, 0
        %v544 = vperm.slane %v541, 1
        %v545 = vperm.slane %v541, 2
        %v546 = vperm.slane %v541, 3
        %v559 = vunpack.c.l.b16 %v517
        %v560 = vunpack.c.l.b16 %v518
        %v561 = vunpack.c.l.b16 %v519
        %v562 = vunpack.c.l.b16 %v520
        %v563 = vunpack.c.l.b16 %v521
        %v564 = vunpack.c.l.b16 %v522
        %v565 = vunpack.c.l.b16 %v523
        %v566 = vunpack.c.l.b16 %v524
        %v567 = vpack.c.b16 %v560, %v559
        %v568 = vpack.c.b16 %v562, %v561
        %v569 = vpack.c.b16 %v564, %v563
        %v570 = vpack.c.b16 %v566, %v565
        %v587 = vunpack.c.l.b16 %v525
        %v588 = vunpack.c.h.b16 %v525
        %v589 = vunpack.c.l.b16 %v526
        %v590 = vunpack.c.h.b16 %v526
        %v591 = vunpack.c.l.b16 %v527
        %v592 = vunpack.c.h.b16 %v527
        %v593 = vunpack.c.l.b16 %v528
        %v594 = vunpack.c.h.b16 %v528
        %v595 = vunpack.c.l.b16 %v529
        %v596 = vunpack.c.h.b16 %v529
        %v597 = vunpack.c.l.b16 %v530
        %v598 = vunpack.c.h.b16 %v530
        %v599 = vunpack.c.l.b16 %v531
        %v600 = vunpack.c.h.b16 %v531
        %v601 = vunpack.c.l.b16 %v532
        %v602 = vunpack.c.h.b16 %v532
        %v603 = vunpack.c.l.b16 %v533
        %v604 = vunpack.c.h.b16 %v533
        %v605 = vunpack.c.l.b16 %v534
        %v606 = vunpack.c.h.b16 %v534
        %v607 = vunpack.c.l.b16 %v535
        %v608 = vunpack.c.h.b16 %v535
        %v609 = vunpack.c.l.b16 %v536
        %v610 = vunpack.c.h.b16 %v536
        %v611 = vunpack.c.l.b16 %v537
        %v612 = vunpack.c.h.b16 %v537
        %v613 = vunpack.c.l.b16 %v538
        %v614 = vunpack.c.h.b16 %v538
        %v615 = vunpack.c.l.b16 %v539
        %v616 = vunpack.c.h.b16 %v539
        %v617 = vunpack.c.l.b16 %v540
        %v618 = vunpack.c.h.b16 %v540
        %v619 = vpack.c.b16 %v591, %v587
        %v620 = vpack.c.b16 %v592, %v588
        %v621 = vpack.c.b16 %v593, %v589
        %v622 = vpack.c.b16 %v594, %v590
        %v623 = vpack.c.b16 %v599, %v595
        %v624 = vpack.c.b16 %v600, %v596
        %v625 = vpack.c.b16 %v601, %v597
        %v626 = vpack.c.b16 %v602, %v598
        %v627 = vpack.c.b16 %v607, %v603
        %v628 = vpack.c.b16 %v608, %v604
        %v629 = vpack.c.b16 %v609, %v605
        %v630 = vpack.c.b16 %v610, %v606
        %v631 = vpack.c.b16 %v615, %v611
        %v632 = vpack.c.b16 %v616, %v612
        %v633 = vpack.c.b16 %v617, %v613
        %v634 = vpack.c.b16 %v618, %v614
        %vm651 = vcmask 523264
        %v653 = vsel %vm651, %v567, 0
        %v656 = vsel %vm651, %v568, 0
        %v659 = vsel %vm651, %v569, 0
        %v662 = vsel %vm651, %v570, 0
        %664 = vmatpush.bf16.msra.mxu0 0
        %665 = vmatpush.bf16.msra.mxu0 0
        %666 = vmatpush.bf16.msra.mxu0 0
        %667 = vmatpush.bf16.msra.mxu0 0
        %668 = vmatpush.bf16.msra.mxu0 %v631
        %669 = vmatpush.bf16.msra.mxu0 %v627
        %670 = vmatpush.bf16.msra.mxu0 %v623
        %671 = vmatpush.bf16.msra.mxu0 %v619
        %672 = vmatmul.bf16.gmra.mxu0 %v653
        %v673 = vpop.f32.mrf.mxu0
        %v674 = vadd.f32 %v543, %v673
        %v675 = vpop.f32.mrf.mxu0
        %v676 = vadd.f32 %v543, %v675
        %677 = vmatmul.bf16.gmra.mxu0 %v656
        %v678 = vpop.f32.mrf.mxu0
        %v679 = vadd.f32 %v543, %v678
        %v680 = vpop.f32.mrf.mxu0
        %v681 = vadd.f32 %v543, %v680
        %682 = vmatmul.bf16.gmra.mxu0 %v659
        %v683 = vpop.f32.mrf.mxu0
        %v684 = vadd.f32 %v543, %v683
        %v685 = vpop.f32.mrf.mxu0
        %v686 = vadd.f32 %v543, %v685
        %687 = vmatmul.bf16.gmra.mxu0 %v662
        %v688 = vpop.f32.mrf.mxu0
        %v689 = vadd.f32 %v543, %v688
        %v690 = vpop.f32.mrf.mxu0
        %v691 = vadd.f32 %v543, %v690
        %692 = vdwg.mxu0
        %693 = vmatpush.bf16.msra.mxu0 0
        %694 = vmatpush.bf16.msra.mxu0 0
        %695 = vmatpush.bf16.msra.mxu0 0
        %696 = vmatpush.bf16.msra.mxu0 0
        %697 = vmatpush.bf16.msra.mxu0 %v632
        %698 = vmatpush.bf16.msra.mxu0 %v628
        %699 = vmatpush.bf16.msra.mxu0 %v624
        %700 = vmatpush.bf16.msra.mxu0 %v620
        %701 = vmatmul.bf16.gmra.mxu0 %v653
        %v702 = vpop.f32.mrf.mxu0
        %v703 = vadd.f32 %v544, %v702
        %v704 = vpop.f32.mrf.mxu0
        %v705 = vadd.f32 %v544, %v704
        %706 = vmatmul.bf16.gmra.mxu0 %v656
        %v707 = vpop.f32.mrf.mxu0
        %v708 = vadd.f32 %v544, %v707
        %v709 = vpop.f32.mrf.mxu0
        %v710 = vadd.f32 %v544, %v709
        %711 = vmatmul.bf16.gmra.mxu0 %v659
        %v712 = vpop.f32.mrf.mxu0
        %v713 = vadd.f32 %v544, %v712
        %v714 = vpop.f32.mrf.mxu0
        %v715 = vadd.f32 %v544, %v714
        %716 = vmatmul.bf16.gmra.mxu0 %v662
        %v717 = vpop.f32.mrf.mxu0
        %v718 = vadd.f32 %v544, %v717
        %v719 = vpop.f32.mrf.mxu0
        %v720 = vadd.f32 %v544, %v719
        %721 = vdwg.mxu0
        %722 = vmatpush.bf16.msra.mxu0 0
        %723 = vmatpush.bf16.msra.mxu0 0
        %724 = vmatpush.bf16.msra.mxu0 0
        %725 = vmatpush.bf16.msra.mxu0 0
        %726 = vmatpush.bf16.msra.mxu0 %v633
        %727 = vmatpush.bf16.msra.mxu0 %v629
        %728 = vmatpush.bf16.msra.mxu0 %v625
        %729 = vmatpush.bf16.msra.mxu0 %v621
        %730 = vmatmul.bf16.gmra.mxu0 %v653
        %v731 = vpop.f32.mrf.mxu0
        %v732 = vadd.f32 %v545, %v731
        %v733 = vpop.f32.mrf.mxu0
        %v734 = vadd.f32 %v545, %v733
        %735 = vmatmul.bf16.gmra.mxu0 %v656
        %v736 = vpop.f32.mrf.mxu0
        %v737 = vadd.f32 %v545, %v736
        %v738 = vpop.f32.mrf.mxu0
        %v739 = vadd.f32 %v545, %v738
        %740 = vmatmul.bf16.gmra.mxu0 %v659
        %v741 = vpop.f32.mrf.mxu0
        %v742 = vadd.f32 %v545, %v741
        %v743 = vpop.f32.mrf.mxu0
        %v744 = vadd.f32 %v545, %v743
        %745 = vmatmul.bf16.gmra.mxu0 %v662
        %v746 = vpop.f32.mrf.mxu0
        %v747 = vadd.f32 %v545, %v746
        %v748 = vpop.f32.mrf.mxu0
        %v749 = vadd.f32 %v545, %v748
        %750 = vdwg.mxu0
        %751 = vmatpush.bf16.msra.mxu0 0
        %752 = vmatpush.bf16.msra.mxu0 0
        %753 = vmatpush.bf16.msra.mxu0 0
        %754 = vmatpush.bf16.msra.mxu0 0
        %755 = vmatpush.bf16.msra.mxu0 %v634
        %756 = vmatpush.bf16.msra.mxu0 %v630
        %757 = vmatpush.bf16.msra.mxu0 %v626
        %758 = vmatpush.bf16.msra.mxu0 %v622
        %759 = vmatmul.bf16.gmra.mxu0 %v653
        %v760 = vpop.f32.mrf.mxu0
        %v761 = vadd.f32 %v546, %v760
        %v762 = vpop.f32.mrf.mxu0
        %v763 = vadd.f32 %v546, %v762
        %764 = vmatmul.bf16.gmra.mxu0 %v656
        %v765 = vpop.f32.mrf.mxu0
        %v766 = vadd.f32 %v546, %v765
        %v767 = vpop.f32.mrf.mxu0
        %v768 = vadd.f32 %v546, %v767
        %769 = vmatmul.bf16.gmra.mxu0 %v659
        %v770 = vpop.f32.mrf.mxu0
        %v771 = vadd.f32 %v546, %v770
        %v772 = vpop.f32.mrf.mxu0
        %v773 = vadd.f32 %v546, %v772
        %774 = vmatmul.bf16.gmra.mxu0 %v662
        %v775 = vpop.f32.mrf.mxu0
        %v776 = vadd.f32 %v546, %v775
        %v777 = vpop.f32.mrf.mxu0
        %v778 = vadd.f32 %v546, %v777
        %779 = vdwg.mxu0
        %v780 = vmax.f32 %v674, 0.0
        %v781 = vmax.f32 %v703, 0.0
        %v782 = vmax.f32 %v732, 0.0
        %v783 = vmax.f32 %v761, 0.0
        %v784 = vmax.f32 %v676, 0.0
        %v785 = vmax.f32 %v705, 0.0
        %v786 = vmax.f32 %v734, 0.0
        %v787 = vmax.f32 %v763, 0.0
        %v788 = vmax.f32 %v679, 0.0
        %v789 = vmax.f32 %v708, 0.0
        %v790 = vmax.f32 %v737, 0.0
        %v791 = vmax.f32 %v766, 0.0
        %v792 = vmax.f32 %v681, 0.0
        %v793 = vmax.f32 %v710, 0.0
        %v794 = vmax.f32 %v739, 0.0
        %v795 = vmax.f32 %v768, 0.0
        %v796 = vmax.f32 %v684, 0.0
        %v797 = vmax.f32 %v713, 0.0
        %v798 = vmax.f32 %v742, 0.0
        %v799 = vmax.f32 %v771, 0.0
        %v800 = vmax.f32 %v686, 0.0
        %v801 = vmax.f32 %v715, 0.0
        %v802 = vmax.f32 %v744, 0.0
        %v803 = vmax.f32 %v773, 0.0
        %v804 = vmax.f32 %v689, 0.0
        %v805 = vmax.f32 %v718, 0.0
        %v806 = vmax.f32 %v747, 0.0
        %v807 = vmax.f32 %v776, 0.0
        %v808 = vmax.f32 %v691, 0.0
        %v809 = vmax.f32 %v720, 0.0
        %v810 = vmax.f32 %v749, 0.0
        %v811 = vmax.f32 %v778, 0.0
        %v812 = vadd.f32 %v780, %v784
        %v813 = vadd.f32 %v812, %v788
        %v814 = vadd.f32 %v813, %v792
        %v815 = vadd.f32 %v814, %v796
        %v816 = vadd.f32 %v815, %v800
        %v817 = vadd.f32 %v816, %v804
        %v818 = vadd.f32 %v817, %v808
        %v819 = vrot.slane %v818, 4
        %v820 = vadd.f32 %v818, %v819
        %v821 = vrot.slane %v820, 2
        %v822 = vadd.f32 %v820, %v821
        %v823 = vrot.slane %v822, 1
        %v824 = vadd.f32 %v822, %v823
        %v825 = vadd.f32 %v781, %v785
        %v826 = vadd.f32 %v825, %v789
        %v827 = vadd.f32 %v826, %v793
        %v828 = vadd.f32 %v827, %v797
        %v829 = vadd.f32 %v828, %v801
        %v830 = vadd.f32 %v829, %v805
        %v831 = vadd.f32 %v830, %v809
        %v832 = vrot.slane %v831, 4
        %v833 = vadd.f32 %v831, %v832
        %v834 = vrot.slane %v833, 2
        %v835 = vadd.f32 %v833, %v834
        %v836 = vrot.slane %v835, 1
        %v837 = vadd.f32 %v835, %v836
        %v838 = vadd.f32 %v782, %v786
        %v839 = vadd.f32 %v838, %v790
        %v840 = vadd.f32 %v839, %v794
        %v841 = vadd.f32 %v840, %v798
        %v842 = vadd.f32 %v841, %v802
        %v843 = vadd.f32 %v842, %v806
        %v844 = vadd.f32 %v843, %v810
        %v845 = vrot.slane %v844, 4
        %v846 = vadd.f32 %v844, %v845
        %v847 = vrot.slane %v846, 2
        %v848 = vadd.f32 %v846, %v847
        %v849 = vrot.slane %v848, 1
        %v850 = vadd.f32 %v848, %v849
        %v851 = vadd.f32 %v783, %v787
        %v852 = vadd.f32 %v851, %v791
        %v853 = vadd.f32 %v852, %v795
        %v854 = vadd.f32 %v853, %v799
        %v855 = vadd.f32 %v854, %v803
        %v856 = vadd.f32 %v855, %v807
        %v857 = vadd.f32 %v856, %v811
        %v858 = vrot.slane %v857, 4
        %v859 = vadd.f32 %v857, %v858
        %v860 = vrot.slane %v859, 2
        %v861 = vadd.f32 %v859, %v860
        %v862 = vrot.slane %v861, 1
        %v863 = vadd.f32 %v861, %v862
        %v864 = vmul.f32 %v824, 0.015625
        %v865 = vmul.f32 %v837, 0.015625
        %v866 = vmul.f32 %v850, 0.015625
        %v867 = vmul.f32 %v863, 0.015625
        %s868 = smul.u32 %s505, 2
        %s869 = smul.addr %s868, 4
        %s870 = scalar_lea.vmem %s476, %s869
        %v871 = vld [vmem:[%s870] sm:$0xf]
        %v872 = vld [vmem:[%s870 + $0x4] sm:$0xf]
        %v873 = vld [vmem:[%s6] sm:$0xff]
        %v874 = vld [vmem:[%s6 + $0x8] sm:$0xff]
        %v875 = vld [vmem:[%s6 + $0x10] sm:$0xff]
        %v876 = vld [vmem:[%s6 + $0x18] sm:$0xff]
        %v877 = vld [vmem:[%s6 + $0x20] sm:$0xff]
        %v878 = vld [vmem:[%s6 + $0x28] sm:$0xff]
        %v879 = vld [vmem:[%s6 + $0x30] sm:$0xff]
        %v880 = vld [vmem:[%s6 + $0x38] sm:$0xff]
        %v881 = vld [vmem:[%s6 + $0x40] sm:$0xff]
        %v882 = vld [vmem:[%s6 + $0x48] sm:$0xff]
        %v883 = vld [vmem:[%s6 + $0x50] sm:$0xff]
        %v884 = vld [vmem:[%s6 + $0x58] sm:$0xff]
        %v885 = vld [vmem:[%s6 + $0x60] sm:$0xff]
        %v886 = vld [vmem:[%s6 + $0x68] sm:$0xff]
        %v887 = vld [vmem:[%s6 + $0x70] sm:$0xff]
        %v888 = vld [vmem:[%s6 + $0x78] sm:$0xff]
        %v889 = vld [vmem:[%s6 + $0x80] sm:$0xff]
        %v890 = vld [vmem:[%s6 + $0x88] sm:$0xff]
        %v891 = vld [vmem:[%s6 + $0x90] sm:$0xff]
        %v892 = vld [vmem:[%s6 + $0x98] sm:$0xff]
        %v893 = vld [vmem:[%s6 + $0xa0] sm:$0xff]
        %v894 = vld [vmem:[%s6 + $0xa8] sm:$0xff]
        %v895 = vld [vmem:[%s6 + $0xb0] sm:$0xff]
        %v896 = vld [vmem:[%s6 + $0xb8] sm:$0xff]
        %v897 = vld [vmem:[%s6 + $0xc0] sm:$0xff]
        %v898 = vld [vmem:[%s6 + $0xc8] sm:$0xff]
        %v899 = vld [vmem:[%s6 + $0xd0] sm:$0xff]
        %v900 = vld [vmem:[%s6 + $0xd8] sm:$0xff]
        %v901 = vld [vmem:[%s6 + $0xe0] sm:$0xff]
        %v902 = vld [vmem:[%s6 + $0xe8] sm:$0xff]
        %v903 = vld [vmem:[%s6 + $0xf0] sm:$0xff]
        %v904 = vld [vmem:[%s6 + $0xf8] sm:$0xff]
        %v905 = vld [vmem:[%s7] sm:$0xf]
        %v907 = vperm.slane %v905, 0
        %v908 = vperm.slane %v905, 1
        %v909 = vperm.slane %v905, 2
        %v910 = vperm.slane %v905, 3
        %v917 = vunpack.c.l.b16 %v871
        %v918 = vunpack.c.l.b16 %v872
        %v919 = vpack.c.b16 %v918, %v917
        %v953 = vunpack.c.l.b16 %v873
        %v954 = vunpack.c.h.b16 %v873
        %v955 = vunpack.c.l.b16 %v874
        %v956 = vunpack.c.h.b16 %v874
        %v957 = vunpack.c.l.b16 %v875
        %v958 = vunpack.c.h.b16 %v875
        %v959 = vunpack.c.l.b16 %v876
        %v960 = vunpack.c.h.b16 %v876
        %v961 = vunpack.c.l.b16 %v877
        %v962 = vunpack.c.h.b16 %v877
        %v963 = vunpack.c.l.b16 %v878
        %v964 = vunpack.c.h.b16 %v878
        %v965 = vunpack.c.l.b16 %v879
        %v966 = vunpack.c.h.b16 %v879
        %v967 = vunpack.c.l.b16 %v880
        %v968 = vunpack.c.h.b16 %v880
        %v969 = vunpack.c.l.b16 %v881
        %v970 = vunpack.c.h.b16 %v881
        %v971 = vunpack.c.l.b16 %v882
        %v972 = vunpack.c.h.b16 %v882
        %v973 = vunpack.c.l.b16 %v883
        %v974 = vunpack.c.h.b16 %v883
        %v975 = vunpack.c.l.b16 %v884
        %v976 = vunpack.c.h.b16 %v884
        %v977 = vunpack.c.l.b16 %v885
        %v978 = vunpack.c.h.b16 %v885
        %v979 = vunpack.c.l.b16 %v886
        %v980 = vunpack.c.h.b16 %v886
        %v981 = vunpack.c.l.b16 %v887
        %v982 = vunpack.c.h.b16 %v887
        %v983 = vunpack.c.l.b16 %v888
        %v984 = vunpack.c.h.b16 %v888
        %v985 = vunpack.c.l.b16 %v889
        %v986 = vunpack.c.h.b16 %v889
        %v987 = vunpack.c.l.b16 %v890
        %v988 = vunpack.c.h.b16 %v890
        %v989 = vunpack.c.l.b16 %v891
        %v990 = vunpack.c.h.b16 %v891
        %v991 = vunpack.c.l.b16 %v892
        %v992 = vunpack.c.h.b16 %v892
        %v993 = vunpack.c.l.b16 %v893
        %v994 = vunpack.c.h.b16 %v893
        %v995 = vunpack.c.l.b16 %v894
        %v996 = vunpack.c.h.b16 %v894
        %v997 = vunpack.c.l.b16 %v895
        %v998 = vunpack.c.h.b16 %v895
        %v999 = vunpack.c.l.b16 %v896
        %v1000 = vunpack.c.h.b16 %v896
        %v1001 = vunpack.c.l.b16 %v897
        %v1002 = vunpack.c.h.b16 %v897
        %v1003 = vunpack.c.l.b16 %v898
        %v1004 = vunpack.c.h.b16 %v898
        %v1005 = vunpack.c.l.b16 %v899
        %v1006 = vunpack.c.h.b16 %v899
        %v1007 = vunpack.c.l.b16 %v900
        %v1008 = vunpack.c.h.b16 %v900
        %v1009 = vunpack.c.l.b16 %v901
        %v1010 = vunpack.c.h.b16 %v901
        %v1011 = vunpack.c.l.b16 %v902
        %v1012 = vunpack.c.h.b16 %v902
        %v1013 = vunpack.c.l.b16 %v903
        %v1014 = vunpack.c.h.b16 %v903
        %v1015 = vunpack.c.l.b16 %v904
        %v1016 = vunpack.c.h.b16 %v904
        %v1017 = vpack.c.b16 %v957, %v953
        %v1018 = vpack.c.b16 %v958, %v954
        %v1019 = vpack.c.b16 %v959, %v955
        %v1020 = vpack.c.b16 %v960, %v956
        %v1021 = vpack.c.b16 %v965, %v961
        %v1022 = vpack.c.b16 %v966, %v962
        %v1023 = vpack.c.b16 %v967, %v963
        %v1024 = vpack.c.b16 %v968, %v964
        %v1025 = vpack.c.b16 %v973, %v969
        %v1026 = vpack.c.b16 %v974, %v970
        %v1027 = vpack.c.b16 %v975, %v971
        %v1028 = vpack.c.b16 %v976, %v972
        %v1029 = vpack.c.b16 %v981, %v977
        %v1030 = vpack.c.b16 %v982, %v978
        %v1031 = vpack.c.b16 %v983, %v979
        %v1032 = vpack.c.b16 %v984, %v980
        %v1033 = vpack.c.b16 %v989, %v985
        %v1034 = vpack.c.b16 %v990, %v986
        %v1035 = vpack.c.b16 %v991, %v987
        %v1036 = vpack.c.b16 %v992, %v988
        %v1037 = vpack.c.b16 %v997, %v993
        %v1038 = vpack.c.b16 %v998, %v994
        %v1039 = vpack.c.b16 %v999, %v995
        %v1040 = vpack.c.b16 %v1000, %v996
        %v1041 = vpack.c.b16 %v1005, %v1001
        %v1042 = vpack.c.b16 %v1006, %v1002
        %v1043 = vpack.c.b16 %v1007, %v1003
        %v1044 = vpack.c.b16 %v1008, %v1004
        %v1045 = vpack.c.b16 %v1013, %v1009
        %v1046 = vpack.c.b16 %v1014, %v1010
        %v1047 = vpack.c.b16 %v1015, %v1011
        %v1048 = vpack.c.b16 %v1016, %v1012
        %1081 = vmatpush.bf16.msra.mxu0 %v1045
        %1082 = vmatpush.bf16.msra.mxu0 %v1041
        %1083 = vmatpush.bf16.msra.mxu0 %v1037
        %1084 = vmatpush.bf16.msra.mxu0 %v1033
        %1085 = vmatpush.bf16.msra.mxu0 %v1029
        %1086 = vmatpush.bf16.msra.mxu0 %v1025
        %1087 = vmatpush.bf16.msra.mxu0 %v1021
        %1088 = vmatpush.bf16.msra.mxu0 %v1017
        %1089 = vmatmul.bf16.gmra.mxu0 %v919
        %v1090 = vpop.f32.mrf.mxu0
        %v1091 = vadd.f32 %v907, %v1090
        %v1092 = vpop.f32.mrf.mxu0
        %v1093 = vadd.f32 %v907, %v1092
        %1094 = vdwg.mxu0
        %1095 = vmatpush.bf16.msra.mxu0 %v1046
        %1096 = vmatpush.bf16.msra.mxu0 %v1042
        %1097 = vmatpush.bf16.msra.mxu0 %v1038
        %1098 = vmatpush.bf16.msra.mxu0 %v1034
        %1099 = vmatpush.bf16.msra.mxu0 %v1030
        %1100 = vmatpush.bf16.msra.mxu0 %v1026
        %1101 = vmatpush.bf16.msra.mxu0 %v1022
        %1102 = vmatpush.bf16.msra.mxu0 %v1018
        %1103 = vmatmul.bf16.gmra.mxu0 %v919
        %v1104 = vpop.f32.mrf.mxu0
        %v1105 = vadd.f32 %v908, %v1104
        %v1106 = vpop.f32.mrf.mxu0
        %v1107 = vadd.f32 %v908, %v1106
        %1108 = vdwg.mxu0
        %1109 = vmatpush.bf16.msra.mxu0 %v1047
        %1110 = vmatpush.bf16.msra.mxu0 %v1043
        %1111 = vmatpush.bf16.msra.mxu0 %v1039
        %1112 = vmatpush.bf16.msra.mxu0 %v1035
        %1113 = vmatpush.bf16.msra.mxu0 %v1031
        %1114 = vmatpush.bf16.msra.mxu0 %v1027
        %1115 = vmatpush.bf16.msra.mxu0 %v1023
        %1116 = vmatpush.bf16.msra.mxu0 %v1019
        %1117 = vmatmul.bf16.gmra.mxu0 %v919
        %v1118 = vpop.f32.mrf.mxu0
        %v1119 = vadd.f32 %v909, %v1118
        %v1120 = vpop.f32.mrf.mxu0
        %v1121 = vadd.f32 %v909, %v1120
        %1122 = vdwg.mxu0
        %1123 = vmatpush.bf16.msra.mxu0 %v1048
        %1124 = vmatpush.bf16.msra.mxu0 %v1044
        %1125 = vmatpush.bf16.msra.mxu0 %v1040
        %1126 = vmatpush.bf16.msra.mxu0 %v1036
        %1127 = vmatpush.bf16.msra.mxu0 %v1032
        %1128 = vmatpush.bf16.msra.mxu0 %v1028
        %1129 = vmatpush.bf16.msra.mxu0 %v1024
        %1130 = vmatpush.bf16.msra.mxu0 %v1020
        %1131 = vmatmul.bf16.gmra.mxu0 %v919
        %v1132 = vpop.f32.mrf.mxu0
        %v1133 = vadd.f32 %v910, %v1132
        %v1134 = vpop.f32.mrf.mxu0
        %v1135 = vadd.f32 %v910, %v1134
        %1136 = vdwg.mxu0
        %v1137 = vmax.f32 %v1091, 0.0
        %v1138 = vmax.f32 %v1105, 0.0
        %v1139 = vmax.f32 %v1119, 0.0
        %v1140 = vmax.f32 %v1133, 0.0
        %v1141 = vmax.f32 %v1093, 0.0
        %v1142 = vmax.f32 %v1107, 0.0
        %v1143 = vmax.f32 %v1121, 0.0
        %v1144 = vmax.f32 %v1135, 0.0
        %v1145 = vadd.f32 %v1137, %v1141
        %v1146 = vrot.slane %v1145, 4
        %v1147 = vadd.f32 %v1145, %v1146
        %v1148 = vrot.slane %v1147, 2
        %v1149 = vadd.f32 %v1147, %v1148
        %v1150 = vrot.slane %v1149, 1
        %v1151 = vadd.f32 %v1149, %v1150
        %v1152 = vadd.f32 %v1138, %v1142
        %v1153 = vrot.slane %v1152, 4
        %v1154 = vadd.f32 %v1152, %v1153
        %v1155 = vrot.slane %v1154, 2
        %v1156 = vadd.f32 %v1154, %v1155
        %v1157 = vrot.slane %v1156, 1
        %v1158 = vadd.f32 %v1156, %v1157
        %v1159 = vadd.f32 %v1139, %v1143
        %v1160 = vrot.slane %v1159, 4
        %v1161 = vadd.f32 %v1159, %v1160
        %v1162 = vrot.slane %v1161, 2
        %v1163 = vadd.f32 %v1161, %v1162
        %v1164 = vrot.slane %v1163, 1
        %v1165 = vadd.f32 %v1163, %v1164
        %v1166 = vadd.f32 %v1140, %v1144
        %v1167 = vrot.slane %v1166, 4
        %v1168 = vadd.f32 %v1166, %v1167
        %v1169 = vrot.slane %v1168, 2
        %v1170 = vadd.f32 %v1168, %v1169
        %v1171 = vrot.slane %v1170, 1
        %v1172 = vadd.f32 %v1170, %v1171
        %v1173 = vmul.f32 %v1151, 0.0625
        %v1174 = vmul.f32 %v1158, 0.0625
        %v1175 = vmul.f32 %v1165, 0.0625
        %v1176 = vmul.f32 %v1172, 0.0625
        %s1177 = smul.addr %s868, 2
        %s1178 = scalar_lea.vmem %s487, %s1177
        %v1179 = vld [vmem:[%s1178] sm:$0xf]
        %v1180 = vld [vmem:[%s8] sm:$0xff]
        %v1181 = vld [vmem:[%s8 + $0x8] sm:$0xff]
        %v1182 = vld [vmem:[%s8 + $0x10] sm:$0xff]
        %v1183 = vld [vmem:[%s8 + $0x18] sm:$0xff]
        %v1184 = vld [vmem:[%s8 + $0x20] sm:$0xff]
        %v1185 = vld [vmem:[%s8 + $0x28] sm:$0xff]
        %v1186 = vld [vmem:[%s8 + $0x30] sm:$0xff]
        %v1187 = vld [vmem:[%s8 + $0x38] sm:$0xff]
        %v1188 = vld [vmem:[%s8 + $0x40] sm:$0xff]
        %v1189 = vld [vmem:[%s8 + $0x48] sm:$0xff]
        %v1190 = vld [vmem:[%s8 + $0x50] sm:$0xff]
        %v1191 = vld [vmem:[%s8 + $0x58] sm:$0xff]
        %v1192 = vld [vmem:[%s8 + $0x60] sm:$0xff]
        %v1193 = vld [vmem:[%s8 + $0x68] sm:$0xff]
        %v1194 = vld [vmem:[%s8 + $0x70] sm:$0xff]
        %v1195 = vld [vmem:[%s8 + $0x78] sm:$0xff]
        %v1196 = vld [vmem:[%s8 + $0x80] sm:$0xff]
        %v1197 = vld [vmem:[%s8 + $0x88] sm:$0xff]
        %v1198 = vld [vmem:[%s8 + $0x90] sm:$0xff]
        %v1199 = vld [vmem:[%s8 + $0x98] sm:$0xff]
        %v1200 = vld [vmem:[%s8 + $0xa0] sm:$0xff]
        %v1201 = vld [vmem:[%s8 + $0xa8] sm:$0xff]
        %v1202 = vld [vmem:[%s8 + $0xb0] sm:$0xff]
        %v1203 = vld [vmem:[%s8 + $0xb8] sm:$0xff]
        %v1204 = vld [vmem:[%s8 + $0xc0] sm:$0xff]
        %v1205 = vld [vmem:[%s8 + $0xc8] sm:$0xff]
        %v1206 = vld [vmem:[%s8 + $0xd0] sm:$0xff]
        %v1207 = vld [vmem:[%s8 + $0xd8] sm:$0xff]
        %v1208 = vld [vmem:[%s8 + $0xe0] sm:$0xff]
        %v1209 = vld [vmem:[%s8 + $0xe8] sm:$0xff]
        %v1210 = vld [vmem:[%s8 + $0xf0] sm:$0xff]
        %v1211 = vld [vmem:[%s8 + $0xf8] sm:$0xff]
        %v1212 = vld [vmem:[%s8 + $0x100] sm:$0xff]
        %v1213 = vld [vmem:[%s8 + $0x108] sm:$0xff]
        %v1214 = vld [vmem:[%s8 + $0x110] sm:$0xff]
        %v1215 = vld [vmem:[%s8 + $0x118] sm:$0xff]
        %v1216 = vld [vmem:[%s8 + $0x120] sm:$0xff]
        %v1217 = vld [vmem:[%s8 + $0x128] sm:$0xff]
        %v1218 = vld [vmem:[%s8 + $0x130] sm:$0xff]
        %v1219 = vld [vmem:[%s8 + $0x138] sm:$0xff]
        %v1220 = vld [vmem:[%s8 + $0x140] sm:$0xff]
        %v1221 = vld [vmem:[%s8 + $0x148] sm:$0xff]
        %v1222 = vld [vmem:[%s8 + $0x150] sm:$0xff]
        %v1223 = vld [vmem:[%s8 + $0x158] sm:$0xff]
        %v1224 = vld [vmem:[%s8 + $0x160] sm:$0xff]
        %v1225 = vld [vmem:[%s8 + $0x168] sm:$0xff]
        %v1226 = vld [vmem:[%s8 + $0x170] sm:$0xff]
        %v1227 = vld [vmem:[%s8 + $0x178] sm:$0xff]
        %v1228 = vld [vmem:[%s8 + $0x180] sm:$0xff]
        %v1229 = vld [vmem:[%s8 + $0x188] sm:$0xff]
        %v1230 = vld [vmem:[%s8 + $0x190] sm:$0xff]
        %v1231 = vld [vmem:[%s8 + $0x198] sm:$0xff]
        %v1232 = vld [vmem:[%s8 + $0x1a0] sm:$0xff]
        %v1233 = vld [vmem:[%s8 + $0x1a8] sm:$0xff]
        %v1234 = vld [vmem:[%s8 + $0x1b0] sm:$0xff]
        %v1235 = vld [vmem:[%s8 + $0x1b8] sm:$0xff]
        %v1236 = vld [vmem:[%s8 + $0x1c0] sm:$0xff]
        %v1237 = vld [vmem:[%s8 + $0x1c8] sm:$0xff]
        %v1238 = vld [vmem:[%s8 + $0x1d0] sm:$0xff]
        %v1239 = vld [vmem:[%s8 + $0x1d8] sm:$0xff]
        %v1240 = vld [vmem:[%s8 + $0x1e0] sm:$0xff]
        %v1241 = vld [vmem:[%s8 + $0x1e8] sm:$0xff]
        %v1242 = vld [vmem:[%s8 + $0x1f0] sm:$0xff]
        %v1243 = vld [vmem:[%s8 + $0x1f8] sm:$0xff]
        %v1244 = vld [vmem:[%s9] sm:$0xf]
        %v1246 = vperm.slane %v1244, 0
        %v1247 = vperm.slane %v1244, 1
        %v1248 = vperm.slane %v1244, 2
        %v1249 = vperm.slane %v1244, 3
        %1255 = vst [vmem:[#allocation1] ss:$4 sm:$0xff] %v1179
        %v1256 = vld.sshfl [vmem:[#allocation1] sm:$0xff pattern:$0x73625140]
        %v1257 = vld.sshfl [vmem:[#allocation1 + $0x8] sm:$0xff pattern:$0x73625140]
        %v1324 = vunpack.c.l.b16 %v1180
        %v1325 = vunpack.c.h.b16 %v1180
        %v1326 = vunpack.c.l.b16 %v1181
        %v1327 = vunpack.c.h.b16 %v1181
        %v1328 = vunpack.c.l.b16 %v1182
        %v1329 = vunpack.c.h.b16 %v1182
        %v1330 = vunpack.c.l.b16 %v1183
        %v1331 = vunpack.c.h.b16 %v1183
        %v1332 = vunpack.c.l.b16 %v1184
        %v1333 = vunpack.c.h.b16 %v1184
        %v1334 = vunpack.c.l.b16 %v1185
        %v1335 = vunpack.c.h.b16 %v1185
        %v1336 = vunpack.c.l.b16 %v1186
        %v1337 = vunpack.c.h.b16 %v1186
        %v1338 = vunpack.c.l.b16 %v1187
        %v1339 = vunpack.c.h.b16 %v1187
        %v1340 = vunpack.c.l.b16 %v1188
        %v1341 = vunpack.c.h.b16 %v1188
        %v1342 = vunpack.c.l.b16 %v1189
        %v1343 = vunpack.c.h.b16 %v1189
        %v1344 = vunpack.c.l.b16 %v1190
        %v1345 = vunpack.c.h.b16 %v1190
        %v1346 = vunpack.c.l.b16 %v1191
        %v1347 = vunpack.c.h.b16 %v1191
        %v1348 = vunpack.c.l.b16 %v1192
        %v1349 = vunpack.c.h.b16 %v1192
        %v1350 = vunpack.c.l.b16 %v1193
        %v1351 = vunpack.c.h.b16 %v1193
        %v1352 = vunpack.c.l.b16 %v1194
        %v1353 = vunpack.c.h.b16 %v1194
        %v1354 = vunpack.c.l.b16 %v1195
        %v1355 = vunpack.c.h.b16 %v1195
        %v1356 = vunpack.c.l.b16 %v1196
        %v1357 = vunpack.c.h.b16 %v1196
        %v1358 = vunpack.c.l.b16 %v1197
        %v1359 = vunpack.c.h.b16 %v1197
        %v1360 = vunpack.c.l.b16 %v1198
        %v1361 = vunpack.c.h.b16 %v1198
        %v1362 = vunpack.c.l.b16 %v1199
        %v1363 = vunpack.c.h.b16 %v1199
        %v1364 = vunpack.c.l.b16 %v1200
        %v1365 = vunpack.c.h.b16 %v1200
        %v1366 = vunpack.c.l.b16 %v1201
        %v1367 = vunpack.c.h.b16 %v1201
        %v1368 = vunpack.c.l.b16 %v1202
        %v1369 = vunpack.c.h.b16 %v1202
        %v1370 = vunpack.c.l.b16 %v1203
        %v1371 = vunpack.c.h.b16 %v1203
        %v1372 = vunpack.c.l.b16 %v1204
        %v1373 = vunpack.c.h.b16 %v1204
        %v1374 = vunpack.c.l.b16 %v1205
        %v1375 = vunpack.c.h.b16 %v1205
        %v1376 = vunpack.c.l.b16 %v1206
        %v1377 = vunpack.c.h.b16 %v1206
        %v1378 = vunpack.c.l.b16 %v1207
        %v1379 = vunpack.c.h.b16 %v1207
        %v1380 = vunpack.c.l.b16 %v1208
        %v1381 = vunpack.c.h.b16 %v1208
        %v1382 = vunpack.c.l.b16 %v1209
        %v1383 = vunpack.c.h.b16 %v1209
        %v1384 = vunpack.c.l.b16 %v1210
        %v1385 = vunpack.c.h.b16 %v1210
        %v1386 = vunpack.c.l.b16 %v1211
        %v1387 = vunpack.c.h.b16 %v1211
        %v1388 = vunpack.c.l.b16 %v1212
        %v1389 = vunpack.c.h.b16 %v1212
        %v1390 = vunpack.c.l.b16 %v1213
        %v1391 = vunpack.c.h.b16 %v1213
        %v1392 = vunpack.c.l.b16 %v1214
        %v1393 = vunpack.c.h.b16 %v1214
        %v1394 = vunpack.c.l.b16 %v1215
        %v1395 = vunpack.c.h.b16 %v1215
        %v1396 = vunpack.c.l.b16 %v1216
        %v1397 = vunpack.c.h.b16 %v1216
        %v1398 = vunpack.c.l.b16 %v1217
        %v1399 = vunpack.c.h.b16 %v1217
        %v1400 = vunpack.c.l.b16 %v1218
        %v1401 = vunpack.c.h.b16 %v1218
        %v1402 = vunpack.c.l.b16 %v1219
        %v1403 = vunpack.c.h.b16 %v1219
        %v1404 = vunpack.c.l.b16 %v1220
        %v1405 = vunpack.c.h.b16 %v1220
        %v1406 = vunpack.c.l.b16 %v1221
        %v1407 = vunpack.c.h.b16 %v1221
        %v1408 = vunpack.c.l.b16 %v1222
        %v1409 = vunpack.c.h.b16 %v1222
        %v1410 = vunpack.c.l.b16 %v1223
        %v1411 = vunpack.c.h.b16 %v1223
        %v1412 = vunpack.c.l.b16 %v1224
        %v1413 = vunpack.c.h.b16 %v1224
        %v1414 = vunpack.c.l.b16 %v1225
        %v1415 = vunpack.c.h.b16 %v1225
        %v1416 = vunpack.c.l.b16 %v1226
        %v1417 = vunpack.c.h.b16 %v1226
        %v1418 = vunpack.c.l.b16 %v1227
        %v1419 = vunpack.c.h.b16 %v1227
        %v1420 = vunpack.c.l.b16 %v1228
        %v1421 = vunpack.c.h.b16 %v1228
        %v1422 = vunpack.c.l.b16 %v1229
        %v1423 = vunpack.c.h.b16 %v1229
        %v1424 = vunpack.c.l.b16 %v1230
        %v1425 = vunpack.c.h.b16 %v1230
        %v1426 = vunpack.c.l.b16 %v1231
        %v1427 = vunpack.c.h.b16 %v1231
        %v1428 = vunpack.c.l.b16 %v1232
        %v1429 = vunpack.c.h.b16 %v1232
        %v1430 = vunpack.c.l.b16 %v1233
        %v1431 = vunpack.c.h.b16 %v1233
        %v1432 = vunpack.c.l.b16 %v1234
        %v1433 = vunpack.c.h.b16 %v1234
        %v1434 = vunpack.c.l.b16 %v1235
        %v1435 = vunpack.c.h.b16 %v1235
        %v1436 = vunpack.c.l.b16 %v1236
        %v1437 = vunpack.c.h.b16 %v1236
        %v1438 = vunpack.c.l.b16 %v1237
        %v1439 = vunpack.c.h.b16 %v1237
        %v1440 = vunpack.c.l.b16 %v1238
        %v1441 = vunpack.c.h.b16 %v1238
        %v1442 = vunpack.c.l.b16 %v1239
        %v1443 = vunpack.c.h.b16 %v1239
        %v1444 = vunpack.c.l.b16 %v1240
        %v1445 = vunpack.c.h.b16 %v1240
        %v1446 = vunpack.c.l.b16 %v1241
        %v1447 = vunpack.c.h.b16 %v1241
        %v1448 = vunpack.c.l.b16 %v1242
        %v1449 = vunpack.c.h.b16 %v1242
        %v1450 = vunpack.c.l.b16 %v1243
        %v1451 = vunpack.c.h.b16 %v1243
        %v1452 = vpack.c.b16 %v1328, %v1324
        %v1453 = vpack.c.b16 %v1329, %v1325
        %v1454 = vpack.c.b16 %v1330, %v1326
        %v1455 = vpack.c.b16 %v1331, %v1327
        %v1456 = vpack.c.b16 %v1336, %v1332
        %v1457 = vpack.c.b16 %v1337, %v1333
        %v1458 = vpack.c.b16 %v1338, %v1334
        %v1459 = vpack.c.b16 %v1339, %v1335
        %v1460 = vpack.c.b16 %v1344, %v1340
        %v1461 = vpack.c.b16 %v1345, %v1341
        %v1462 = vpack.c.b16 %v1346, %v1342
        %v1463 = vpack.c.b16 %v1347, %v1343
        %v1464 = vpack.c.b16 %v1352, %v1348
        %v1465 = vpack.c.b16 %v1353, %v1349
        %v1466 = vpack.c.b16 %v1354, %v1350
        %v1467 = vpack.c.b16 %v1355, %v1351
        %v1468 = vpack.c.b16 %v1360, %v1356
        %v1469 = vpack.c.b16 %v1361, %v1357
        %v1470 = vpack.c.b16 %v1362, %v1358
        %v1471 = vpack.c.b16 %v1363, %v1359
        %v1472 = vpack.c.b16 %v1368, %v1364
        %v1473 = vpack.c.b16 %v1369, %v1365
        %v1474 = vpack.c.b16 %v1370, %v1366
        %v1475 = vpack.c.b16 %v1371, %v1367
        %v1476 = vpack.c.b16 %v1376, %v1372
        %v1477 = vpack.c.b16 %v1377, %v1373
        %v1478 = vpack.c.b16 %v1378, %v1374
        %v1479 = vpack.c.b16 %v1379, %v1375
        %v1480 = vpack.c.b16 %v1384, %v1380
        %v1481 = vpack.c.b16 %v1385, %v1381
        %v1482 = vpack.c.b16 %v1386, %v1382
        %v1483 = vpack.c.b16 %v1387, %v1383
        %v1484 = vpack.c.b16 %v1392, %v1388
        %v1485 = vpack.c.b16 %v1393, %v1389
        %v1486 = vpack.c.b16 %v1394, %v1390
        %v1487 = vpack.c.b16 %v1395, %v1391
        %v1488 = vpack.c.b16 %v1400, %v1396
        %v1489 = vpack.c.b16 %v1401, %v1397
        %v1490 = vpack.c.b16 %v1402, %v1398
        %v1491 = vpack.c.b16 %v1403, %v1399
        %v1492 = vpack.c.b16 %v1408, %v1404
        %v1493 = vpack.c.b16 %v1409, %v1405
        %v1494 = vpack.c.b16 %v1410, %v1406
        %v1495 = vpack.c.b16 %v1411, %v1407
        %v1496 = vpack.c.b16 %v1416, %v1412
        %v1497 = vpack.c.b16 %v1417, %v1413
        %v1498 = vpack.c.b16 %v1418, %v1414
        %v1499 = vpack.c.b16 %v1419, %v1415
        %v1500 = vpack.c.b16 %v1424, %v1420
        %v1501 = vpack.c.b16 %v1425, %v1421
        %v1502 = vpack.c.b16 %v1426, %v1422
        %v1503 = vpack.c.b16 %v1427, %v1423
        %v1504 = vpack.c.b16 %v1432, %v1428
        %v1505 = vpack.c.b16 %v1433, %v1429
        %v1506 = vpack.c.b16 %v1434, %v1430
        %v1507 = vpack.c.b16 %v1435, %v1431
        %v1508 = vpack.c.b16 %v1440, %v1436
        %v1509 = vpack.c.b16 %v1441, %v1437
        %v1510 = vpack.c.b16 %v1442, %v1438
        %v1511 = vpack.c.b16 %v1443, %v1439
        %v1512 = vpack.c.b16 %v1448, %v1444
        %v1513 = vpack.c.b16 %v1449, %v1445
        %v1514 = vpack.c.b16 %v1450, %v1446
        %v1515 = vpack.c.b16 %v1451, %v1447
        %1580 = vmatpush.bf16.msra.mxu0 %v1480
        %1581 = vmatpush.bf16.msra.mxu0 %v1476
        %1582 = vmatpush.bf16.msra.mxu0 %v1472
        %1583 = vmatpush.bf16.msra.mxu0 %v1468
        %1584 = vmatpush.bf16.msra.mxu0 %v1464
        %1585 = vmatpush.bf16.msra.mxu0 %v1460
        %1586 = vmatpush.bf16.msra.mxu0 %v1456
        %1587 = vmatpush.bf16.msra.mxu0 %v1452
        %1588 = vmatmul.bf16.gmra.mxu0 %v1256
        %v1589 = vpop.f32.mrf.mxu0
        %v1590 = vadd.f32 %v1246, %v1589
        %v1591 = vpop.f32.mrf.mxu0
        %1592 = vdwg.mxu0
        %1593 = vmatpush.bf16.msra.mxu0 %v1512
        %1594 = vmatpush.bf16.msra.mxu0 %v1508
        %1595 = vmatpush.bf16.msra.mxu0 %v1504
        %1596 = vmatpush.bf16.msra.mxu0 %v1500
        %1597 = vmatpush.bf16.msra.mxu0 %v1496
        %1598 = vmatpush.bf16.msra.mxu0 %v1492
        %1599 = vmatpush.bf16.msra.mxu0 %v1488
        %1600 = vmatpush.bf16.msra.mxu0 %v1484
        %1601 = vmatmul.bf16.gmra.mxu0 %v1257
        %v1602 = vpop.f32.mrf.mxu0
        %v1603 = vadd.f32 %v1590, %v1602
        %v1604 = vpop.f32.mrf.mxu0
        %1605 = vdwg.mxu0
        %1606 = vmatpush.bf16.msra.mxu0 %v1481
        %1607 = vmatpush.bf16.msra.mxu0 %v1477
        %1608 = vmatpush.bf16.msra.mxu0 %v1473
        %1609 = vmatpush.bf16.msra.mxu0 %v1469
        %1610 = vmatpush.bf16.msra.mxu0 %v1465
        %1611 = vmatpush.bf16.msra.mxu0 %v1461
        %1612 = vmatpush.bf16.msra.mxu0 %v1457
        %1613 = vmatpush.bf16.msra.mxu0 %v1453
        %1614 = vmatmul.bf16.gmra.mxu0 %v1256
        %v1615 = vpop.f32.mrf.mxu0
        %v1616 = vadd.f32 %v1247, %v1615
        %v1617 = vpop.f32.mrf.mxu0
        %1618 = vdwg.mxu0
        %1619 = vmatpush.bf16.msra.mxu0 %v1513
        %1620 = vmatpush.bf16.msra.mxu0 %v1509
        %1621 = vmatpush.bf16.msra.mxu0 %v1505
        %1622 = vmatpush.bf16.msra.mxu0 %v1501
        %1623 = vmatpush.bf16.msra.mxu0 %v1497
        %1624 = vmatpush.bf16.msra.mxu0 %v1493
        %1625 = vmatpush.bf16.msra.mxu0 %v1489
        %1626 = vmatpush.bf16.msra.mxu0 %v1485
        %1627 = vmatmul.bf16.gmra.mxu0 %v1257
        %v1628 = vpop.f32.mrf.mxu0
        %v1629 = vadd.f32 %v1616, %v1628
        %v1630 = vpop.f32.mrf.mxu0
        %1631 = vdwg.mxu0
        %1632 = vmatpush.bf16.msra.mxu0 %v1482
        %1633 = vmatpush.bf16.msra.mxu0 %v1478
        %1634 = vmatpush.bf16.msra.mxu0 %v1474
        %1635 = vmatpush.bf16.msra.mxu0 %v1470
        %1636 = vmatpush.bf16.msra.mxu0 %v1466
        %1637 = vmatpush.bf16.msra.mxu0 %v1462
        %1638 = vmatpush.bf16.msra.mxu0 %v1458
        %1639 = vmatpush.bf16.msra.mxu0 %v1454
        %1640 = vmatmul.bf16.gmra.mxu0 %v1256
        %v1641 = vpop.f32.mrf.mxu0
        %v1642 = vadd.f32 %v1248, %v1641
        %v1643 = vpop.f32.mrf.mxu0
        %1644 = vdwg.mxu0
        %1645 = vmatpush.bf16.msra.mxu0 %v1514
        %1646 = vmatpush.bf16.msra.mxu0 %v1510
        %1647 = vmatpush.bf16.msra.mxu0 %v1506
        %1648 = vmatpush.bf16.msra.mxu0 %v1502
        %1649 = vmatpush.bf16.msra.mxu0 %v1498
        %1650 = vmatpush.bf16.msra.mxu0 %v1494
        %1651 = vmatpush.bf16.msra.mxu0 %v1490
        %1652 = vmatpush.bf16.msra.mxu0 %v1486
        %1653 = vmatmul.bf16.gmra.mxu0 %v1257
        %v1654 = vpop.f32.mrf.mxu0
        %v1655 = vadd.f32 %v1642, %v1654
        %v1656 = vpop.f32.mrf.mxu0
        %1657 = vdwg.mxu0
        %1658 = vmatpush.bf16.msra.mxu0 %v1483
        %1659 = vmatpush.bf16.msra.mxu0 %v1479
        %1660 = vmatpush.bf16.msra.mxu0 %v1475
        %1661 = vmatpush.bf16.msra.mxu0 %v1471
        %1662 = vmatpush.bf16.msra.mxu0 %v1467
        %1663 = vmatpush.bf16.msra.mxu0 %v1463
        %1664 = vmatpush.bf16.msra.mxu0 %v1459
        %1665 = vmatpush.bf16.msra.mxu0 %v1455
        %1666 = vmatmul.bf16.gmra.mxu0 %v1256
        %v1667 = vpop.f32.mrf.mxu0
        %v1668 = vadd.f32 %v1249, %v1667
        %v1669 = vpop.f32.mrf.mxu0
        %1670 = vdwg.mxu0
        %1671 = vmatpush.bf16.msra.mxu0 %v1515
        %1672 = vmatpush.bf16.msra.mxu0 %v1511
        %1673 = vmatpush.bf16.msra.mxu0 %v1507
        %1674 = vmatpush.bf16.msra.mxu0 %v1503
        %1675 = vmatpush.bf16.msra.mxu0 %v1499
        %1676 = vmatpush.bf16.msra.mxu0 %v1495
        %1677 = vmatpush.bf16.msra.mxu0 %v1491
        %1678 = vmatpush.bf16.msra.mxu0 %v1487
        %1679 = vmatmul.bf16.gmra.mxu0 %v1257
        %v1680 = vpop.f32.mrf.mxu0
        %v1681 = vadd.f32 %v1668, %v1680
        %v1682 = vpop.f32.mrf.mxu0
        %1683 = vdwg.mxu0
        %v1684 = vmax.f32 %v1603, 0.0
        %v1685 = vmax.f32 %v1629, 0.0
        %v1686 = vmax.f32 %v1655, 0.0
        %v1687 = vmax.f32 %v1681, 0.0
        %vm1688 = vcmask 1043456
        %v1689 = vsel %vm1688, %v1684, 0.0
        %v1690 = vrot.slane %v1689, 4
        %v1691 = vadd.f32 %v1689, %v1690
        %v1692 = vrot.slane %v1691, 2
        %v1693 = vadd.f32 %v1691, %v1692
        %v1694 = vrot.slane %v1693, 1
        %v1695 = vadd.f32 %v1693, %v1694
        %v1696 = vsel %vm1688, %v1685, 0.0
        %v1697 = vrot.slane %v1696, 4
        %v1698 = vadd.f32 %v1696, %v1697
        %v1699 = vrot.slane %v1698, 2
        %v1700 = vadd.f32 %v1698, %v1699
        %v1701 = vrot.slane %v1700, 1
        %v1702 = vadd.f32 %v1700, %v1701
        %v1703 = vsel %vm1688, %v1686, 0.0
        %v1704 = vrot.slane %v1703, 4
        %v1705 = vadd.f32 %v1703, %v1704
        %v1706 = vrot.slane %v1705, 2
        %v1707 = vadd.f32 %v1705, %v1706
        %v1708 = vrot.slane %v1707, 1
        %v1709 = vadd.f32 %v1707, %v1708
        %v1710 = vsel %vm1688, %v1687, 0.0
        %v1711 = vrot.slane %v1710, 4
        %v1712 = vadd.f32 %v1710, %v1711
        %v1713 = vrot.slane %v1712, 2
        %v1714 = vadd.f32 %v1712, %v1713
        %v1715 = vrot.slane %v1714, 1
        %v1716 = vadd.f32 %v1714, %v1715
        %v1717 = vmul.f32 %v1695, 0.25
        %v1718 = vmul.f32 %v1702, 0.25
        %v1719 = vmul.f32 %v1709, 0.25
        %v1720 = vmul.f32 %v1716, 0.25
        %s1721 = smul.u32 %s505, 4
        %s1722 = scalar_lea.vmem %s497, %s1721
        %v1723 = vld [vmem:[%s1722] sm:$0xf]
        %v1724 = vadd.f32 %v1723, 0.0
        %v1725 = vadd.f32 %v864, %v1173
        %v1726 = vadd.f32 %v865, %v1174
        %v1727 = vadd.f32 %v866, %v1175
        %v1728 = vadd.f32 %v867, %v1176
        %v1729 = vadd.f32 %v1725, %v1717
        %v1730 = vadd.f32 %v1726, %v1718
        %v1731 = vadd.f32 %v1727, %v1719
        %v1732 = vadd.f32 %v1728, %v1720
        %v1734 = vperm.slane %v1724, 0
        %v1735 = vperm.slane %v1724, 1
        %v1736 = vperm.slane %v1724, 2
        %v1737 = vperm.slane %v1724, 3
        %v1742 = vadd.f32 %v1729, %v1734
        %v1743 = vadd.f32 %v1730, %v1735
        %v1744 = vadd.f32 %v1731, %v1736
        %v1745 = vadd.f32 %v1732, %v1737
        %v1746 = vmax.f32 %v510, %v1742
        %v1747 = vmax.f32 %v511, %v1743
        %v1748 = vmax.f32 %v512, %v1744
        %v1749 = vmax.f32 %v513, %v1745
      $region65: #{fpnmil_forward.1} parent=59 // loop_footer
        %s509 = sadd.s32 1, %s505
      $region66: #{fpnmil_forward.1} parent=59 // loop_footer_branch
        %504 = sbr.rel target = $region62
      $region67: #{fpnmil_forward.1} parent=59 // loop_exit
        _
      %p1750 = scmp.eq.s32.totalorder %s26, 0
      // Predicated region
      $region68: #{fpnmil_forward.1} parent=59 // pred_check
        %p1751 = pneg %p1750
      $region69: #{fpnmil_forward.1} parent=59 // pred_check_branch
        %1753 = sbr.rel (%p1751) target = $region71
      $region70: #{fpnmil_forward.1} parent=59 // pred_region
        %v1758 = vrot.slane %v511, 7
        %v1759 = vrot.slane %v512, 6
        %v1760 = vrot.slane %v513, 5
        %vm1761 = vcmask 1040384
        %v1762 = vsel %vm1761, %v510, %v1758
        %vm1763 = vcmask 1042434
        %v1764 = vsel %vm1763, %v1759, %v1760
        %vm1765 = vcmask 1041408
        %v1766 = vsel %vm1765, %v1762, %v1764
        %v1768 = vlaneseq
        %vm1769 = vcmp.ge.s32.totalorder %v1768, 0
        %vm1770 = vcmp.lt.s32.totalorder %v1768, 512
        %vm1771 = vmand %vm1769, %vm1770
        %1772 = vst.msk [vmem:[%s502] sm:$0xf] %vm1771, %v1766
      $region71: #{fpnmil_forward.1} parent=59 // pred_fallthru
        _
      %p1773 = scmp.ne.s32.totalorder %s26, 0
      // Predicated region
      $region72: #{fpnmil_forward.1} parent=59 // pred_check
        %p1774 = pneg %p1773
      $region73: #{fpnmil_forward.1} parent=59 // pred_check_branch
        %1776 = sbr.rel (%p1774) target = $region75
      $region74: #{fpnmil_forward.1} parent=59 // pred_region
        %v1777 = vld [vmem:[%s502] sm:$0xf]
        %v1782 = vrot.slane %v511, 7
        %v1783 = vrot.slane %v512, 6
        %v1784 = vrot.slane %v513, 5
        %vm1785 = vcmask 1040384
        %v1786 = vsel %vm1785, %v510, %v1782
        %vm1787 = vcmask 1042434
        %v1788 = vsel %vm1787, %v1783, %v1784
        %vm1789 = vcmask 1041408
        %v1790 = vsel %vm1789, %v1786, %v1788
        %v1792 = vmax.f32 %v1777, %v1790
        %v1793 = vlaneseq
        %vm1794 = vcmp.ge.s32.totalorder %v1793, 0
        %vm1795 = vcmp.lt.s32.totalorder %v1793, 512
        %vm1796 = vmand %vm1794, %vm1795
        %1797 = vst.msk [vmem:[%s502] sm:$0xf] %vm1796, %v1792
      $region75: #{fpnmil_forward.1} parent=59 // pred_fallthru
        _
      %p1798 = scmp.lt.s32.totalorder %s25, 1
      %s1799 = scalar_select %p1798, %s25, 1
      %s1800 = smul.addr %s1799, 4
      %s1801 = scalar_lea.vmem %s10, %s1800
      // Predicated region
      $region76: #{fpnmil_forward.1} parent=59 // pred_check
        %p1802 = pneg %p289
      $region77: #{fpnmil_forward.1} parent=59 // pred_check_branch
        %1804 = sbr.rel (%p1802) target = $region79
      $region78: #{fpnmil_forward.1} parent=59 // pred_region
        _
      $region79: #{fpnmil_forward.1} parent=59 // pred_fallthru
        _
    $region60: #{fpnmil_forward.1} parent=5 // pred_fallthru
      _
    %p1805 = scmp.le.s32.totalorder 2, %s16
    // Predicated region
    $region80: #{fpnmil_forward.1} parent=5 // pred_check
      %p1806 = pneg %p1805
    $region81: #{fpnmil_forward.1} parent=5 // pred_check_branch
      %1808 = sbr.rel (%p1806) target = $region83
    $region82: #{fpnmil_forward.1} parent=5 // pred_region
      %s1809 = ssub.s32 %s16, 2
      // Predicated region
      $region84: #{fpnmil_forward.1} parent=82 // pred_check
        %p1810 = pneg %p295
      $region85: #{fpnmil_forward.1} parent=82 // pred_check_branch
        %1812 = sbr.rel (%p1810) target = $region87
      $region86: #{fpnmil_forward.1} parent=82 // pred_region
        %p1813 = scmp.lt.s32.totalorder %s27, 1
        %s1814 = scalar_select %p1813, %s27, 1
        %s1815 = smul.addr %s1814, 4
        %s1816 = scalar_lea.vmem %s10, %s1815
      $region87: #{fpnmil_forward.1} parent=82 // pred_fallthru
        _
    $region83: #{fpnmil_forward.1} parent=5 // pred_fallthru
      _
  $region6: #{fpnmil_forward.1} parent=0 // loop_footer
    %s20 = sadd.s32 1, %s16
  $region7: #{fpnmil_forward.1} parent=0 // loop_footer_branch
    %15 = sbr.rel target = $region3
  $region8: #{fpnmil_forward.1} parent=0 // loop_exit
    _

</llo_original>
